<compile_context>
chip_gen: v7x
topology: tpu7x:2x2x1
jax: 0.10.0
libtpu: 0.0.40
codegen_flags: <defaults>
</compile_context>

<pallas_src>
import jax
import jax.numpy as jnp
from jax import lax
from jax.experimental import pallas as pl
from jax.experimental.pallas import tpu as pltpu

IN_DIM = 768
H_DIM = 4096
TH = 2048           # hidden-dim tile per grid step (multiple of 128)
N_SPLIT = 2         # outer "parallel" split of the hidden dim (v7x: one per TC)
NEG_SLOPE = 0.01    # F.leaky_relu default


def _partial_kernel(a_ref, b_ref, w1_ref, b1_ref, w2_ref, out_ref, acc_ref):
    k = pl.program_id(1)

    @pl.when(k == 0)
    def _():
        acc_ref[...] = jnp.zeros_like(acc_ref)

    # d = rep_a - rep_b (cast to bf16 to feed the MXU; weights are bf16).
    d = (a_ref[...] - b_ref[...]).astype(jnp.bfloat16)            # (B, 768)

    # Hidden tile: (B, TH) = d @ W1_tile^T.  W1_tile is a contiguous
    # (TH, 768) slab; contract on axis 1 of both operands (transposed RHS).
    h = lax.dot_general(d, w1_ref[...],
                        dimension_numbers=(((1,), (1,)), ((), ())),
                        preferred_element_type=jnp.float32)       # (B, TH)
    h = h + b1_ref[...]
    h = jnp.where(h >= 0, h, NEG_SLOPE * h)                       # leaky_relu

    # Second linear (out_features = 1): lane-resident partial accumulation.
    # Sum the TH/128 static 128-lane blocks with plain VALU adds; the single
    # cross-lane reduction happens once, in the JAX epilogue.
    hw = h * w2_ref[...]                                          # (B, TH)
    part = hw[:, :128]
    for j in range(1, TH // 128):
        part = part + hw[:, j * 128:(j + 1) * 128]
    acc_ref[...] += part

    @pl.when(k == pl.num_programs(1) - 1)
    def _():
        out_ref[...] = acc_ref[...]


@jax.jit
def mse_align_sts_loss(rep_a, rep_b, w1_hb, b1, w2_row, b2, labels):
    """rep_a, rep_b: (B, 768) f32; w1_hb: (4096, 768) bf16 (hidden-major so
    every tile is one contiguous HBM slab); b1: (1, 4096) f32;
    w2_row: (1, 4096) f32; b2: (1, 1) f32; labels: (B, 1) f32.
    Returns scalar f32 loss."""
    B = rep_a.shape[0]
    n_inner = H_DIM // (N_SPLIT * TH)

    w1_bytes = H_DIM * IN_DIM * 2                       # bf16 weight stream
    small_bytes = (2 * B * IN_DIM + 2 * H_DIM + N_SPLIT * B * 128 + B) * 4
    cost = pl.CostEstimate(flops=2 * B * IN_DIM * H_DIM + 4 * B * H_DIM,
                           transcendentals=0,
                           bytes_accessed=w1_bytes + small_bytes)

    partials = pl.pallas_call(
        _partial_kernel,
        out_shape=jax.ShapeDtypeStruct((N_SPLIT, B, 128), jnp.float32),
        grid_spec=pltpu.PrefetchScalarGridSpec(
            num_scalar_prefetch=0,
            grid=(N_SPLIT, n_inner),
            in_specs=[
                pl.BlockSpec((B, IN_DIM), lambda c, k: (0, 0)),             # rep_a
                pl.BlockSpec((B, IN_DIM), lambda c, k: (0, 0)),             # rep_b
                pl.BlockSpec((TH, IN_DIM),
                             lambda c, k: (c * n_inner + k, 0)),            # W1 tile
                pl.BlockSpec((1, TH), lambda c, k: (0, c * n_inner + k)),   # b1 tile
                pl.BlockSpec((1, TH), lambda c, k: (0, c * n_inner + k)),   # W2 tile
            ],
            out_specs=pl.BlockSpec((None, B, 128), lambda c, k: (c, 0, 0)),
            scratch_shapes=[pltpu.VMEM((B, 128), jnp.float32)],
        ),
        compiler_params=pltpu.CompilerParams(
            dimension_semantics=("parallel", "arbitrary")),
        cost_estimate=cost,
    )(rep_a, rep_b, w1_hb, b1, w2_row)

    # Tiny epilogue: cross-lane + cross-core reduce, second bias, MSE.
    y = partials.sum(axis=(0, 2)).reshape(B, 1) + b2[0, 0]
    return jnp.mean((y - labels) ** 2)


def _init_params(key):
    """Deterministic init mimicking nn.Linear defaults (U(-1/sqrt(in), 1/sqrt(in)))."""
    k1, k2, k3, k4 = jax.random.split(key, 4)
    bound1 = 1.0 / jnp.sqrt(IN_DIM)
    bound2 = 1.0 / jnp.sqrt(H_DIM)
    # nn.Linear stores weight as (out_features, in_features); keep that layout
    # (contiguous tiles) and cast to bf16 to halve the HBM stream.
    w1 = jax.random.uniform(k1, (H_DIM, IN_DIM), jnp.float32, -bound1, bound1)
    w1_hb = w1.astype(jnp.bfloat16)
    b1 = jax.random.uniform(k2, (1, H_DIM), jnp.float32, -bound1, bound1)
    w2_row = jax.random.uniform(k3, (1, H_DIM), jnp.float32, -bound2, bound2)
    b2 = jax.random.uniform(k4, (1, 1), jnp.float32, -bound2, bound2)
    return w1_hb, b1, w2_row, b2


def _reference(rep_a, rep_b, w1_hb, b1, w2_row, b2, labels):
    d = (rep_a - rep_b).astype(jnp.bfloat16)
    h = lax.dot_general(d, w1_hb, dimension_numbers=(((1,), (1,)), ((), ())),
                        preferred_element_type=jnp.float32)
    h = h + b1
    h = jnp.where(h >= 0, h, NEG_SLOPE * h)
    y = jnp.sum(h * w2_row, axis=-1, keepdims=True) + b2[0, 0]
    return jnp.mean((y - labels) ** 2)


if __name__ == "__main__":
    key = jax.random.PRNGKey(0)
    kp, ka, kb, kl = jax.random.split(key, 4)

    B = 8  # small batch; self.model(...) outputs treated as precomputed embeddings
    rep_a = jax.random.normal(ka, (B, IN_DIM), jnp.float32)
    rep_b = jax.random.normal(kb, (B, IN_DIM), jnp.float32)
    labels = jax.random.normal(kl, (B, 1), jnp.float32)

    w1_hb, b1, w2_row, b2 = _init_params(kp)

    loss = mse_align_sts_loss(rep_a, rep_b, w1_hb, b1, w2_row, b2, labels)
    loss = jax.block_until_ready(loss)

    ref = _reference(rep_a, rep_b, w1_hb, b1, w2_row, b2, labels)
    assert jnp.allclose(loss, ref, rtol=1e-3, atol=1e-3), (loss, ref)

    print("KERNEL_OK")
</pallas_src>

<mosaic_0001>
module attributes {stable_mosaic.version = 11 : i64} {
  func.func @_partial_kernel(%arg0: i32, %arg1: i32, %arg2: memref<8x768xf32, #tpu.memory_space<vmem>>, %arg3: memref<8x768xf32, #tpu.memory_space<vmem>>, %arg4: memref<2048x768xbf16, #tpu.memory_space<vmem>>, %arg5: memref<1x2048xf32, #tpu.memory_space<vmem>>, %arg6: memref<1x2048xf32, #tpu.memory_space<vmem>>, %arg7: memref<1x8x128xf32, #tpu.memory_space<vmem>>, %arg8: memref<8x128xf32, #tpu.memory_space<vmem>>) attributes {dimension_semantics = [#tpu.dimension_semantics<parallel>, #tpu.dimension_semantics<arbitrary>], iteration_bounds = array<i64: 2, 1>, scalar_prefetch = 0 : i64, scratch_operands = 1 : i64, tpu.core_type = #tpu.core_type<tc>, window_params = [{pipeline_mode = #tpu.pipeline_mode<synchronous>, transform_indices = @transform_0, window_bounds = array<i64: 8, 768>}, {pipeline_mode = #tpu.pipeline_mode<synchronous>, transform_indices = @transform_1, window_bounds = array<i64: 8, 768>}, {transform_indices = @transform_2, window_bounds = array<i64: 2048, 768>}, {transform_indices = @transform_3, window_bounds = array<i64: 1, 2048>}, {transform_indices = @transform_4, window_bounds = array<i64: 1, 2048>}, {transform_indices = @transform_5, window_bounds = array<i64: 1, 8, 128>}]} {
    %c0_i32 = arith.constant 0 : i32
    %0 = arith.cmpi eq, %arg1, %c0_i32 : i32
    %1 = arith.extui %0 : i1 to i32
    %c0_i32_0 = arith.constant 0 : i32
    %2 = arith.cmpi ne, %1, %c0_i32_0 : i32
    scf.if %2 {
      %cst_18 = arith.constant 0.000000e+00 : f32
      %57 = vector.broadcast %cst_18 : f32 to vector<8x128xf32>
      %c0_19 = arith.constant 0 : index
      %c0_20 = arith.constant 0 : index
      %58 = vector.load %arg8[%c0_19, %c0_20] : memref<8x128xf32, #tpu.memory_space<vmem>>, vector<8x128xf32>
      tpu.vector_store %arg8[%c0_19, %c0_20], %57 {strides = array<i32>} : memref<8x128xf32, #tpu.memory_space<vmem>>, vector<8x128xf32>,
    } else {
    }
    %c0 = arith.constant 0 : index
    %c0_1 = arith.constant 0 : index
    %3 = vector.load %arg2[%c0, %c0_1] : memref<8x768xf32, #tpu.memory_space<vmem>>, vector<8x768xf32>
    %c0_2 = arith.constant 0 : index
    %c0_3 = arith.constant 0 : index
    %4 = vector.load %arg3[%c0_2, %c0_3] : memref<8x768xf32, #tpu.memory_space<vmem>>, vector<8x768xf32>
    %5 = arith.subf %3, %4 : vector<8x768xf32>
    %6 = arith.truncf %5 : vector<8x768xf32> to vector<8x768xbf16>
    %c0_4 = arith.constant 0 : index
    %c0_5 = arith.constant 0 : index
    %7 = vector.load %arg4[%c0_4, %c0_5] : memref<2048x768xbf16, #tpu.memory_space<vmem>>, vector<2048x768xbf16>
    %cst = arith.constant dense<0.000000e+00> : vector<8x2048xf32>
    %8 = tpu.matmul %6, %7, %cst {dimension_numbers = #tpu.dot_dimension_numbers<[1], [1], [0], [0], [0, 0, 1, 0], [], []>} : vector<8x768xbf16>, vector<2048x768xbf16>, vector<8x2048xf32> -> vector<8x2048xf32>
    %c0_6 = arith.constant 0 : index
    %c0_7 = arith.constant 0 : index
    %9 = vector.load %arg5[%c0_6, %c0_7] : memref<1x2048xf32, #tpu.memory_space<vmem>>, vector<1x2048xf32>
    %10 = vector.broadcast %9 : vector<1x2048xf32> to vector<8x2048xf32>
    %11 = arith.addf %8, %10 : vector<8x2048xf32>
    %cst_8 = arith.constant 0.000000e+00 : f32
    %12 = vector.broadcast %cst_8 : f32 to vector<8x2048xf32>
    %13 = arith.cmpf oge, %11, %12 : vector<8x2048xf32>
    %cst_9 = arith.constant 0.00999999977 : f32
    %14 = vector.broadcast %cst_9 : f32 to vector<8x2048xf32>
    %15 = arith.mulf %14, %11 : vector<8x2048xf32>
    %16 = arith.select %13, %11, %15 : vector<8x2048xi1>, vector<8x2048xf32>
    %c0_10 = arith.constant 0 : index
    %c0_11 = arith.constant 0 : index
    %17 = vector.load %arg6[%c0_10, %c0_11] : memref<1x2048xf32, #tpu.memory_space<vmem>>, vector<1x2048xf32>
    %18 = vector.broadcast %17 : vector<1x2048xf32> to vector<8x2048xf32>
    %19 = arith.mulf %16, %18 : vector<8x2048xf32>
    %20 = vector.extract_strided_slice %19 {offsets = [0, 0], sizes = [8, 128], strides = [1, 1]} : vector<8x2048xf32> to vector<8x128xf32>
    %21 = vector.extract_strided_slice %19 {offsets = [0, 128], sizes = [8, 128], strides = [1, 1]} : vector<8x2048xf32> to vector<8x128xf32>
    %22 = arith.addf %20, %21 : vector<8x128xf32>
    %23 = vector.extract_strided_slice %19 {offsets = [0, 256], sizes = [8, 128], strides = [1, 1]} : vector<8x2048xf32> to vector<8x128xf32>
    %24 = arith.addf %22, %23 : vector<8x128xf32>
    %25 = vector.extract_strided_slice %19 {offsets = [0, 384], sizes = [8, 128], strides = [1, 1]} : vector<8x2048xf32> to vector<8x128xf32>
    %26 = arith.addf %24, %25 : vector<8x128xf32>
    %27 = vector.extract_strided_slice %19 {offsets = [0, 512], sizes = [8, 128], strides = [1, 1]} : vector<8x2048xf32> to vector<8x128xf32>
    %28 = arith.addf %26, %27 : vector<8x128xf32>
    %29 = vector.extract_strided_slice %19 {offsets = [0, 640], sizes = [8, 128], strides = [1, 1]} : vector<8x2048xf32> to vector<8x128xf32>
    %30 = arith.addf %28, %29 : vector<8x128xf32>
    %31 = vector.extract_strided_slice %19 {offsets = [0, 768], sizes = [8, 128], strides = [1, 1]} : vector<8x2048xf32> to vector<8x128xf32>
    %32 = arith.addf %30, %31 : vector<8x128xf32>
    %33 = vector.extract_strided_slice %19 {offsets = [0, 896], sizes = [8, 128], strides = [1, 1]} : vector<8x2048xf32> to vector<8x128xf32>
    %34 = arith.addf %32, %33 : vector<8x128xf32>
    %35 = vector.extract_strided_slice %19 {offsets = [0, 1024], sizes = [8, 128], strides = [1, 1]} : vector<8x2048xf32> to vector<8x128xf32>
    %36 = arith.addf %34, %35 : vector<8x128xf32>
    %37 = vector.extract_strided_slice %19 {offsets = [0, 1152], sizes = [8, 128], strides = [1, 1]} : vector<8x2048xf32> to vector<8x128xf32>
    %38 = arith.addf %36, %37 : vector<8x128xf32>
    %39 = vector.extract_strided_slice %19 {offsets = [0, 1280], sizes = [8, 128], strides = [1, 1]} : vector<8x2048xf32> to vector<8x128xf32>
    %40 = arith.addf %38, %39 : vector<8x128xf32>
    %41 = vector.extract_strided_slice %19 {offsets = [0, 1408], sizes = [8, 128], strides = [1, 1]} : vector<8x2048xf32> to vector<8x128xf32>
    %42 = arith.addf %40, %41 : vector<8x128xf32>
    %43 = vector.extract_strided_slice %19 {offsets = [0, 1536], sizes = [8, 128], strides = [1, 1]} : vector<8x2048xf32> to vector<8x128xf32>
    %44 = arith.addf %42, %43 : vector<8x128xf32>
    %45 = vector.extract_strided_slice %19 {offsets = [0, 1664], sizes = [8, 128], strides = [1, 1]} : vector<8x2048xf32> to vector<8x128xf32>
    %46 = arith.addf %44, %45 : vector<8x128xf32>
    %47 = vector.extract_strided_slice %19 {offsets = [0, 1792], sizes = [8, 128], strides = [1, 1]} : vector<8x2048xf32> to vector<8x128xf32>
    %48 = arith.addf %46, %47 : vector<8x128xf32>
    %49 = vector.extract_strided_slice %19 {offsets = [0, 1920], sizes = [8, 128], strides = [1, 1]} : vector<8x2048xf32> to vector<8x128xf32>
    %50 = arith.addf %48, %49 : vector<8x128xf32>
    %c0_12 = arith.constant 0 : index
    %c0_13 = arith.constant 0 : index
    %51 = vector.load %arg8[%c0_12, %c0_13] : memref<8x128xf32, #tpu.memory_space<vmem>>, vector<8x128xf32>
    %52 = arith.addf %51, %50 : vector<8x128xf32>
    %c0_14 = arith.constant 0 : index
    %c0_15 = arith.constant 0 : index
    %53 = vector.load %arg8[%c0_14, %c0_15] : memref<8x128xf32, #tpu.memory_space<vmem>>, vector<8x128xf32>
    tpu.vector_store %arg8[%c0_14, %c0_15], %52 {strides = array<i32>} : memref<8x128xf32, #tpu.memory_space<vmem>>, vector<8x128xf32>,
    %c0_i32_16 = arith.constant 0 : i32
    %54 = arith.cmpi eq, %arg1, %c0_i32_16 : i32
    %55 = arith.extui %54 : i1 to i32
    %c0_i32_17 = arith.constant 0 : i32
    %56 = arith.cmpi ne, %55, %c0_i32_17 : i32
    scf.if %56 {
      %c0_18 = arith.constant 0 : index
      %c0_19 = arith.constant 0 : index
      %57 = vector.load %arg8[%c0_18, %c0_19] : memref<8x128xf32, #tpu.memory_space<vmem>>, vector<8x128xf32>
      %c0_20 = arith.constant 0 : index
      %c0_21 = arith.constant 0 : index
      %c0_22 = arith.constant 0 : index
      %58 = vector.load %arg7[%c0_20, %c0_21, %c0_22] : memref<1x8x128xf32, #tpu.memory_space<vmem>>, vector<1x8x128xf32>
      %59 = vector.shape_cast %58 : vector<1x8x128xf32> to vector<8x128xf32>
      %60 = vector.shape_cast %57 : vector<8x128xf32> to vector<1x8x128xf32>
      tpu.vector_store %arg7[%c0_20, %c0_21, %c0_22], %60 {strides = array<i32>} : memref<1x8x128xf32, #tpu.memory_space<vmem>>, vector<1x8x128xf32>,
    } else {
    }
    return
  }
  func.func @transform_0(%arg0: i32, %arg1: i32) -> (i32, i32) {
    %c0_i32 = arith.constant 0 : i32
    %c0_i32_0 = arith.constant 0 : i32
    %c0_i32_1 = arith.constant 0 : i32
    return %c0_i32, %c0_i32_0 : i32, i32
  }
  func.func @transform_1(%arg0: i32, %arg1: i32) -> (i32, i32) {
    %c0_i32 = arith.constant 0 : i32
    %c0_i32_0 = arith.constant 0 : i32
    %c0_i32_1 = arith.constant 0 : i32
    return %c0_i32, %c0_i32_0 : i32, i32
  }
  func.func @transform_2(%arg0: i32, %arg1: i32) -> (i32, i32) {
    %c1_i32 = arith.constant 1 : i32
    %0 = arith.muli %arg0, %c1_i32 : i32
    %1 = arith.addi %0, %arg1 : i32
    %c0_i32 = arith.constant 0 : i32
    %c0_i32_0 = arith.constant 0 : i32
    return %1, %c0_i32 : i32, i32
  }
  func.func @transform_3(%arg0: i32, %arg1: i32) -> (i32, i32) {
    %c1_i32 = arith.constant 1 : i32
    %0 = arith.muli %arg0, %c1_i32 : i32
    %1 = arith.addi %0, %arg1 : i32
    %c0_i32 = arith.constant 0 : i32
    %c0_i32_0 = arith.constant 0 : i32
    return %c0_i32, %1 : i32, i32
  }
  func.func @transform_4(%arg0: i32, %arg1: i32) -> (i32, i32) {
    %c1_i32 = arith.constant 1 : i32
    %0 = arith.muli %arg0, %c1_i32 : i32
    %1 = arith.addi %0, %arg1 : i32
    %c0_i32 = arith.constant 0 : i32
    %c0_i32_0 = arith.constant 0 : i32
    return %c0_i32, %1 : i32, i32
  }
  func.func @transform_5(%arg0: i32, %arg1: i32) -> (i32, i32, i32) {
    %c0_i32 = arith.constant 0 : i32
    %c0_i32_0 = arith.constant 0 : i32
    %c0_i32_1 = arith.constant 0 : i32
    return %arg0, %c0_i32, %c0_i32_0 : i32, i32, i32
  }
}

</mosaic_0001>

<llo_original>
// kernel: mse_align_sts_loss.1
$region0: #{mse_align_sts_loss.1}
  #allocation0 [shape = 'u32[]', space=smem, size = 0x4, offset = 0x4, fixed_abs, tag = 'smem constant byte address 0x4 - core index']
  #allocation1 [shape = 'u32[144,128]{1,0:T(1,128)}', space=vmem, size = 0x12000, scoped, tag = 'internal scratch']
  #allocation2 [shape = 'f32[8,128]{1,0:T(8,128)}', space=vmem, size = 0x1000, scoped, tag = 'scratch operand']
  %s0 = inlined_call_operand.hbm [shape: f32[8,768], index: 0, kind: input, shape index: {}]
  %s1 = inlined_call_operand.hbm [shape: f32[8,768], index: 1, kind: input, shape index: {}]
  %s2 = inlined_call_operand.hbm [shape: bf16[4096,768], index: 2, kind: input, shape index: {}]
  %s3 = inlined_call_operand.hbm [shape: f32[1,4096], index: 3, kind: input, shape index: {}]
  %s4 = inlined_call_operand.hbm [shape: f32[1,4096], index: 4, kind: input, shape index: {}]
  %s5 = inlined_call_operand.vmem [shape: f32[2,8,128], index: 5, kind: output, shape index: {}]
  %s6 = sld [smem:[#allocation0]]
  $region81: #{mse_align_sts_loss.1} parent=0
    _
  %s8 = ssub.s32 1, %s6
  %s9 = scalar_select 0, %s8, %s6
  $region1: #{mse_align_sts_loss.1} parent=0
    #allocation3 [shape = 'u8[24576]{0}', space=vmem, size = 0x6000, scoped, tag = 'input window, operand 0, single buffered']
    #allocation4 [shape = 's32[2]{0}', space=sflag, size = 0x8, scoped, tag = 'scoped memory for mse_align_sts_loss.1']
    #allocation5 [shape = 'u8[24576]{0}', space=vmem, size = 0x6000, scoped, tag = 'input window, operand 1, single buffered']
    #allocation6 [shape = 's32[1]{0}', space=sflag, size = 0x4, scoped, tag = 'scoped memory for mse_align_sts_loss.1']
    #allocation7 [shape = 'u8[6291456]{0}', space=vmem, size = 0x600000, scoped, tag = 'input window, operand 2']
    #allocation8 [shape = 'u8[16384]{0}', space=vmem, size = 0x4000, scoped, tag = 'input window, operand 3']
    #allocation9 [shape = 'u8[16384]{0}', space=vmem, size = 0x4000, scoped, tag = 'input window, operand 4']
    %10 = vsyncpa [#allocation4], 0
    %11 = vsyncpa [#allocation6], 0
    loop: start=0, step=1, limit=4
    $region2: #{mse_align_sts_loss.1} parent=1 // loop_pre_header
      _
    $region3: #{mse_align_sts_loss.1} parent=1 // loop_header
      %s13 = sphi 0, %s17
      %p14 = scmp.ge.s32.totalorder %s13, 4
      %s20 = sphi 0, %s32
      %s21 = sphi 0, %s28
      %s22 = sphi 0, %s20
      %s23 = sphi 0, %s21
      %s24 = sphi 0, %s22
      %s25 = sphi 0, %s23
      %s33 = sphi 0, %s33
      %s35 = sphi 0, %s33
      %s36 = sphi 0, %s35
      %s50 = sphi 0, %s36
      %s54 = sphi 0, %s54
      %s56 = sphi 0, %s54
      %s57 = sphi 0, %s56
      %s71 = sphi 0, %s57
      %s79 = sphi 0, %s81
      %s82 = sphi 0, %s79
      %s83 = sphi 0, %s82
      %s99 = sphi 0, %s83
      %s107 = sphi 0, %s109
      %s110 = sphi 0, %s107
      %s111 = sphi 0, %s110
      %s127 = sphi 0, %s111
      %s135 = sphi 0, %s137
      %s138 = sphi 0, %s135
      %s139 = sphi 0, %s138
      %s155 = sphi 0, %s139
      %s161 = sphi 0, %s163
      %s164 = sphi 0, %s161
      %s165 = sphi 0, %s164
      %s181 = sphi 0, %s165
    $region4: #{mse_align_sts_loss.1} parent=1 // loop_header_branch
      %16 = sbr.rel (%p14) target = $region8
    $region5: #{mse_align_sts_loss.1} parent=1 // loop_body
      %s18 = ssub.s32 %s13, 1
      %s19 = ssub.s32 %s13, 2
      %s26 = sadd.s32 1, %s21
      %p27 = scmp.ge.s32.totalorder %s26, 1
      %s28 = scalar_select %p27, 0, %s26
      %s29 = sadd.s32 1, %s20
      %s30 = scalar_select %p27, %s29, %s20
      %p31 = scmp.ge.s32.totalorder %s30, 2
      %s32 = scalar_select %p31, 0, %s30
      %s34 = sadd.s32 %s33, 1
      %p37 = scmp.eq.s32.totalorder %s13, 1
      %p38 = scmp.ne.s32.totalorder %s33, %s35
      %p39 = scmp.eq.s32.totalorder %s13, 0
      %p40 = por %p38, %p39
      %p41 = scmp.ne.s32.totalorder %s33, %s35
      %p42 = scmp.eq.s32.totalorder %s18, 1
      %p43 = por %p41, %p42
      %p44 = scmp.ne.s32.totalorder %s35, %s36
      %p45 = scmp.eq.s32.totalorder %s18, 0
      %p46 = por %p44, %p45
      %p47 = scmp.ne.s32.totalorder %s35, %s36
      %p48 = scmp.eq.s32.totalorder %s19, 1
      %p49 = por %p47, %p48
      %p51 = scmp.ne.s32.totalorder %s36, %s50
      %p52 = scmp.eq.s32.totalorder %s19, 0
      %p53 = por %p51, %p52
      %s55 = sadd.s32 %s54, 1
      %p58 = scmp.eq.s32.totalorder %s13, 1
      %p59 = scmp.ne.s32.totalorder %s54, %s56
      %p60 = scmp.eq.s32.totalorder %s13, 0
      %p61 = por %p59, %p60
      %p62 = scmp.ne.s32.totalorder %s54, %s56
      %p63 = scmp.eq.s32.totalorder %s18, 1
      %p64 = por %p62, %p63
      %p65 = scmp.ne.s32.totalorder %s56, %s57
      %p66 = scmp.eq.s32.totalorder %s18, 0
      %p67 = por %p65, %p66
      %p68 = scmp.ne.s32.totalorder %s56, %s57
      %p69 = scmp.eq.s32.totalorder %s19, 1
      %p70 = por %p68, %p69
      %p72 = scmp.ne.s32.totalorder %s57, %s71
      %p73 = scmp.eq.s32.totalorder %s19, 0
      %p74 = por %p72, %p73
      %s75 = sadd.s32 %s20, %s21
      %s76 = sadd.s32 %s32, %s28
      %s77 = ssub.s32 %s75, %s76
      %p78 = scmp.eq.s32.totalorder %s77, 0
      %s80 = sadd.s32 %s79, 1
      %s81 = scalar_select %p78, %s79, %s80
      %p84 = pneg %p78
      %p85 = scmp.eq.s32.totalorder %s13, 1
      %p86 = por %p84, %p85
      %p87 = scmp.ne.s32.totalorder %s79, %s82
      %p88 = scmp.eq.s32.totalorder %s13, 0
      %p89 = por %p87, %p88
      %p90 = scmp.ne.s32.totalorder %s79, %s82
      %p91 = scmp.eq.s32.totalorder %s18, 1
      %p92 = por %p90, %p91
      %p93 = scmp.ne.s32.totalorder %s82, %s83
      %p94 = scmp.eq.s32.totalorder %s18, 0
      %p95 = por %p93, %p94
      %p96 = scmp.ne.s32.totalorder %s82, %s83
      %p97 = scmp.eq.s32.totalorder %s19, 1
      %p98 = por %p96, %p97
      %p100 = scmp.ne.s32.totalorder %s83, %s99
      %p101 = scmp.eq.s32.totalorder %s19, 0
      %p102 = por %p100, %p101
      %s103 = sadd.s32 %s20, %s21
      %s104 = sadd.s32 %s32, %s28
      %s105 = ssub.s32 %s103, %s104
      %p106 = scmp.eq.s32.totalorder %s105, 0
      %s108 = sadd.s32 %s107, 1
      %s109 = scalar_select %p106, %s107, %s108
      %p112 = pneg %p106
      %p113 = scmp.eq.s32.totalorder %s13, 1
      %p114 = por %p112, %p113
      %p115 = scmp.ne.s32.totalorder %s107, %s110
      %p116 = scmp.eq.s32.totalorder %s13, 0
      %p117 = por %p115, %p116
      %p118 = scmp.ne.s32.totalorder %s107, %s110
      %p119 = scmp.eq.s32.totalorder %s18, 1
      %p120 = por %p118, %p119
      %p121 = scmp.ne.s32.totalorder %s110, %s111
      %p122 = scmp.eq.s32.totalorder %s18, 0
      %p123 = por %p121, %p122
      %p124 = scmp.ne.s32.totalorder %s110, %s111
      %p125 = scmp.eq.s32.totalorder %s19, 1
      %p126 = por %p124, %p125
      %p128 = scmp.ne.s32.totalorder %s111, %s127
      %p129 = scmp.eq.s32.totalorder %s19, 0
      %p130 = por %p128, %p129
      %s131 = sadd.s32 %s20, %s21
      %s132 = sadd.s32 %s32, %s28
      %s133 = ssub.s32 %s131, %s132
      %p134 = scmp.eq.s32.totalorder %s133, 0
      %s136 = sadd.s32 %s135, 1
      %s137 = scalar_select %p134, %s135, %s136
      %p140 = pneg %p134
      %p141 = scmp.eq.s32.totalorder %s13, 1
      %p142 = por %p140, %p141
      %p143 = scmp.ne.s32.totalorder %s135, %s138
      %p144 = scmp.eq.s32.totalorder %s13, 0
      %p145 = por %p143, %p144
      %p146 = scmp.ne.s32.totalorder %s135, %s138
      %p147 = scmp.eq.s32.totalorder %s18, 1
      %p148 = por %p146, %p147
      %p149 = scmp.ne.s32.totalorder %s138, %s139
      %p150 = scmp.eq.s32.totalorder %s18, 0
      %p151 = por %p149, %p150
      %p152 = scmp.ne.s32.totalorder %s138, %s139
      %p153 = scmp.eq.s32.totalorder %s19, 1
      %p154 = por %p152, %p153
      %p156 = scmp.ne.s32.totalorder %s139, %s155
      %p157 = scmp.eq.s32.totalorder %s19, 0
      %p158 = por %p156, %p157
      %s159 = ssub.s32 %s20, %s32
      %p160 = scmp.eq.s32.totalorder %s159, 0
      %s162 = sadd.s32 %s161, 1
      %s163 = scalar_select %p160, %s161, %s162
      %p166 = pneg %p160
      %p167 = scmp.eq.s32.totalorder %s13, 1
      %p168 = por %p166, %p167
      %p169 = scmp.ne.s32.totalorder %s161, %s164
      %p170 = scmp.eq.s32.totalorder %s13, 0
      %p171 = por %p169, %p170
      %p172 = scmp.ne.s32.totalorder %s161, %s164
      %p173 = scmp.eq.s32.totalorder %s18, 1
      %p174 = por %p172, %p173
      %p175 = scmp.ne.s32.totalorder %s164, %s165
      %p176 = scmp.eq.s32.totalorder %s18, 0
      %p177 = por %p175, %p176
      %p178 = scmp.ne.s32.totalorder %s164, %s165
      %p179 = scmp.eq.s32.totalorder %s19, 1
      %p180 = por %p178, %p179
      %p182 = scmp.ne.s32.totalorder %s165, %s181
      %p183 = scmp.eq.s32.totalorder %s19, 0
      %p184 = por %p182, %p183
      %p185 = scmp.le.s32.totalorder 1, %s13
      %p186 = scmp.lt.s32.totalorder %s13, 3
      %p187 = pnand %p185, %p186
      %p188 = pneg %p187
      // Predicated region
      $region9: #{mse_align_sts_loss.1} parent=5 // pred_check
        _
      $region10: #{mse_align_sts_loss.1} parent=5 // pred_check_branch
        %190 = sbr.rel (%p187) target = $region12
      $region11: #{mse_align_sts_loss.1} parent=5 // pred_region
        %s191 = ssub.s32 %s13, 1
        // Predicated region
        $region13: #{mse_align_sts_loss.1} parent=11 // pred_check
          %p192 = pneg %p46
        $region14: #{mse_align_sts_loss.1} parent=11 // pred_check_branch
          %194 = sbr.rel (%p192) target = $region16
        $region15: #{mse_align_sts_loss.1} parent=11 // pred_region
          %s196 = ssub.s32 768, 768
          %197 = vsyncadd [#allocation4], %s196
          %s199 = sshll.u32 [#allocation3], 4
          %s200 = int_to_ptr.vmem [resolvable:$true] %s199
          %202 = dma.hbm_to_vmem [thread:$0]  %s0, 768, %s200, [#allocation4]
        $region16: #{mse_align_sts_loss.1} parent=11 // pred_fallthru
          _
        // Predicated region
        $region17: #{mse_align_sts_loss.1} parent=11 // pred_check
          %p203 = pneg %p67
        $region18: #{mse_align_sts_loss.1} parent=11 // pred_check_branch
          %205 = sbr.rel (%p203) target = $region20
        $region19: #{mse_align_sts_loss.1} parent=11 // pred_region
          %s207 = ssub.s32 768, 768
          %208 = vsyncadd [#allocation6], %s207
          %s210 = sshll.u32 [#allocation5], 4
          %s211 = int_to_ptr.vmem [resolvable:$true] %s210
          %213 = dma.hbm_to_vmem [thread:$0]  %s1, 768, %s211, [#allocation6]
        $region20: #{mse_align_sts_loss.1} parent=11 // pred_fallthru
          _
      $region12: #{mse_align_sts_loss.1} parent=5 // pred_fallthru
        _
      %p214 = scmp.lt.s32.totalorder %s13, 2
      // Predicated region
      $region21: #{mse_align_sts_loss.1} parent=5 // pred_check
        %p215 = pneg %p214
      $region22: #{mse_align_sts_loss.1} parent=5 // pred_check_branch
        %217 = sbr.rel (%p215) target = $region24
      $region23: #{mse_align_sts_loss.1} parent=5 // pred_region
        // Predicated region
        $region25: #{mse_align_sts_loss.1} parent=23 // pred_check
          %p218 = pneg %p89
        $region26: #{mse_align_sts_loss.1} parent=23 // pred_check_branch
          %220 = sbr.rel (%p218) target = $region28
        $region27: #{mse_align_sts_loss.1} parent=23 // pred_region
          %s221 = sand.u32 %s13, 1
          %s222 = scalar_lea.sflag [#allocation4], %s221
          %s223 = sand.u32 %s79, 1
          %s224 = smul.addr %s223, 6144
          %s225 = scalar_lea.vmem [#allocation7], %s224
          %s226 = sadd.s32 %s20, %s21
          %s227 = smul.u32 256, %s226
          %s229 = ssub.s32 98304, 98304
          %230 = vsyncadd %s222, %s229
          %s231 = smul.addr %s227, 6
          %s232 = smul.addr %s231, 64
          %s233 = scalar_lea.hbm %s2, %s232
          %s234 = sshll.u32 %s225, 4
          %s235 = int_to_ptr.vmem [resolvable:$true] %s234
          %240 = dma.hbm_to_vmem [thread:$0]  %s233, 98304, %s235, %s222, 384, 384, 24
        $region28: #{mse_align_sts_loss.1} parent=23 // pred_fallthru
          _
        // Predicated region
        $region29: #{mse_align_sts_loss.1} parent=23 // pred_check
          %p241 = pneg %p117
        $region30: #{mse_align_sts_loss.1} parent=23 // pred_check_branch
          %243 = sbr.rel (%p241) target = $region32
        $region31: #{mse_align_sts_loss.1} parent=23 // pred_region
          %s244 = sand.u32 %s13, 1
          %s245 = scalar_lea.sflag [#allocation4], %s244
          %s246 = sand.u32 %s107, 1
          %s247 = smul.addr %s246, 16
          %s248 = scalar_lea.vmem [#allocation8], %s247
          %s249 = sadd.s32 %s20, %s21
          %s250 = smul.u32 16, %s249
          %s252 = ssub.s32 256, 256
          %253 = vsyncadd %s245, %s252
          %s254 = smul.addr %s250, 16
          %s255 = scalar_lea.hbm %s3, %s254
          %s257 = sshll.u32 %s248, 4
          %s258 = int_to_ptr.vmem [resolvable:$true] %s257
          %260 = dma.hbm_to_vmem [thread:$0]  %s255, 256, %s258, %s245
        $region32: #{mse_align_sts_loss.1} parent=23 // pred_fallthru
          _
        // Predicated region
        $region33: #{mse_align_sts_loss.1} parent=23 // pred_check
          %p261 = pneg %p145
        $region34: #{mse_align_sts_loss.1} parent=23 // pred_check_branch
          %263 = sbr.rel (%p261) target = $region36
        $region35: #{mse_align_sts_loss.1} parent=23 // pred_region
          %s264 = sand.u32 %s13, 1
          %s265 = scalar_lea.sflag [#allocation4], %s264
          %s266 = sand.u32 %s135, 1
          %s267 = smul.addr %s266, 16
          %s268 = scalar_lea.vmem [#allocation9], %s267
          %s269 = sadd.s32 %s20, %s21
          %s270 = smul.u32 16, %s269
          %s272 = ssub.s32 256, 256
          %273 = vsyncadd %s265, %s272
          %s274 = smul.addr %s270, 16
          %s275 = scalar_lea.hbm %s4, %s274
          %s277 = sshll.u32 %s268, 4
          %s278 = int_to_ptr.vmem [resolvable:$true] %s277
          %280 = dma.hbm_to_vmem [thread:$0]  %s275, 256, %s278, %s265
        $region36: #{mse_align_sts_loss.1} parent=23 // pred_fallthru
          _
      $region24: #{mse_align_sts_loss.1} parent=5 // pred_fallthru
        _
      %p281 = scmp.le.s32.totalorder 1, %s13
      %p282 = scmp.lt.s32.totalorder %s13, 3
      %p283 = pnand %p281, %p282
      %p284 = pneg %p283
      // Predicated region
      $region37: #{mse_align_sts_loss.1} parent=5 // pred_check
        _
      $region38: #{mse_align_sts_loss.1} parent=5 // pred_check_branch
        %286 = sbr.rel (%p283) target = $region40
      $region39: #{mse_align_sts_loss.1} parent=5 // pred_region
        %s287 = ssub.s32 %s13, 1
        // Predicated region
        $region41: #{mse_align_sts_loss.1} parent=39 // pred_check
          %p288 = pneg %p46
        $region42: #{mse_align_sts_loss.1} parent=39 // pred_check_branch
          %290 = sbr.rel (%p288) target = $region44
        $region43: #{mse_align_sts_loss.1} parent=39 // pred_region
          %291 = dma.done [#allocation4], 768
        $region44: #{mse_align_sts_loss.1} parent=39 // pred_fallthru
          _
        // Predicated region
        $region45: #{mse_align_sts_loss.1} parent=39 // pred_check
          %p292 = pneg %p67
        $region46: #{mse_align_sts_loss.1} parent=39 // pred_check_branch
          %294 = sbr.rel (%p292) target = $region48
        $region47: #{mse_align_sts_loss.1} parent=39 // pred_region
          %295 = dma.done [#allocation6], 768
        $region48: #{mse_align_sts_loss.1} parent=39 // pred_fallthru
          _
        %s296 = sand.u32 %s18, 1
        %s297 = scalar_lea.sflag [#allocation4], %s296
        %s298 = sand.u32 %s82, 1
        %s299 = smul.addr %s298, 6144
        %s300 = scalar_lea.vmem [#allocation7], %s299
        // Predicated region
        $region49: #{mse_align_sts_loss.1} parent=39 // pred_check
          %p301 = pneg %p95
        $region50: #{mse_align_sts_loss.1} parent=39 // pred_check_branch
          %303 = sbr.rel (%p301) target = $region52
        $region51: #{mse_align_sts_loss.1} parent=39 // pred_region
          %304 = dma.done %s297, 98304
        $region52: #{mse_align_sts_loss.1} parent=39 // pred_fallthru
          _
        %s305 = sand.u32 %s18, 1
        %s306 = scalar_lea.sflag [#allocation4], %s305
        %s307 = sand.u32 %s110, 1
        %s308 = smul.addr %s307, 16
        %s309 = scalar_lea.vmem [#allocation8], %s308
        // Predicated region
        $region53: #{mse_align_sts_loss.1} parent=39 // pred_check
          %p310 = pneg %p123
        $region54: #{mse_align_sts_loss.1} parent=39 // pred_check_branch
          %312 = sbr.rel (%p310) target = $region56
        $region55: #{mse_align_sts_loss.1} parent=39 // pred_region
          %313 = dma.done %s306, 256
        $region56: #{mse_align_sts_loss.1} parent=39 // pred_fallthru
          _
        %s314 = sand.u32 %s18, 1
        %s315 = scalar_lea.sflag [#allocation4], %s314
        %s316 = sand.u32 %s138, 1
        %s317 = smul.addr %s316, 16
        %s318 = scalar_lea.vmem [#allocation9], %s317
        // Predicated region
        $region57: #{mse_align_sts_loss.1} parent=39 // pred_check
          %p319 = pneg %p151
        $region58: #{mse_align_sts_loss.1} parent=39 // pred_check_branch
          %321 = sbr.rel (%p319) target = $region60
        $region59: #{mse_align_sts_loss.1} parent=39 // pred_region
          %322 = dma.done %s315, 256
        $region60: #{mse_align_sts_loss.1} parent=39 // pred_fallthru
          _
        %p323 = pneg %p46
        %p324 = pneg %p43
        %p325 = pneg %p67
        %p326 = pneg %p64
        %s327 = sand.u32 %s18, 1
        %s328 = scalar_lea.sflag [#allocation4], %s327
        %s329 = sand.u32 %s82, 1
        %s330 = smul.addr %s329, 6144
        %s331 = scalar_lea.vmem [#allocation7], %s330
        %p332 = pneg %p95
        %p333 = pneg %p92
        %s334 = sand.u32 %s18, 1
        %s335 = scalar_lea.sflag [#allocation4], %s334
        %s336 = sand.u32 %s110, 1
        %s337 = smul.addr %s336, 16
        %s338 = scalar_lea.vmem [#allocation8], %s337
        %p339 = pneg %p123
        %p340 = pneg %p120
        %s341 = sand.u32 %s18, 1
        %s342 = scalar_lea.sflag [#allocation4], %s341
        %s343 = sand.u32 %s138, 1
        %s344 = smul.addr %s343, 16
        %s345 = scalar_lea.vmem [#allocation9], %s344
        %p346 = pneg %p151
        %p347 = pneg %p148
        %p348 = pneg %p177
        %p349 = pneg %p174
        %p350 = scmp.lt.s32.totalorder %s22, 1
        %s351 = scalar_select %p350, %s22, 1
        %s352 = smul.addr %s351, 8
        %s353 = scalar_lea.vmem %s5, %s352
        %s354 = sadd.s32 %s22, %s23
        %s355 = smul.u32 256, %s354
        %s356 = sadd.s32 %s22, %s23
        %s357 = smul.u32 16, %s356
        %s358 = sadd.s32 %s22, %s23
        %s359 = smul.u32 16, %s358
        %p360 = scmp.lt.s32.totalorder %s22, 1
        %s361 = scalar_select %p360, %s22, 1
        %s362 = smul.addr %s361, 8
        %s363 = scalar_lea.vmem %s5, %s362
        %p364 = scmp.eq.s32.totalorder %s23, 0
        // Predicated region
        $region61: #{mse_align_sts_loss.1} parent=39 // pred_check
          %p365 = pneg %p364
        $region62: #{mse_align_sts_loss.1} parent=39 // pred_check_branch
          %367 = sbr.rel (%p365) target = $region64
        $region63: #{mse_align_sts_loss.1} parent=39 // pred_region
          %368 = vst [vmem:[#allocation2] sm:$0xff] 0.0
        $region64: #{mse_align_sts_loss.1} parent=39 // pred_fallthru
          _
        %v369 = vld [vmem:[#allocation3] sm:$0xff]
        %v370 = vld [vmem:[#allocation3 + $0x8] sm:$0xff]
        %v371 = vld [vmem:[#allocation3 + $0x10] sm:$0xff]
        %v372 = vld [vmem:[#allocation3 + $0x18] sm:$0xff]
        %v373 = vld [vmem:[#allocation3 + $0x20] sm:$0xff]
        %v374 = vld [vmem:[#allocation3 + $0x28] sm:$0xff]
        %v375 = vld [vmem:[#allocation5] sm:$0xff]
        %v376 = vld [vmem:[#allocation5 + $0x8] sm:$0xff]
        %v377 = vld [vmem:[#allocation5 + $0x10] sm:$0xff]
        %v378 = vld [vmem:[#allocation5 + $0x18] sm:$0xff]
        %v379 = vld [vmem:[#allocation5 + $0x20] sm:$0xff]
        %v380 = vld [vmem:[#allocation5 + $0x28] sm:$0xff]
        %v381 = vsub.f32 %v369, %v375
        %v382 = vsub.f32 %v370, %v376
        %v383 = vsub.f32 %v371, %v377
        %v384 = vsub.f32 %v372, %v378
        %v385 = vsub.f32 %v373, %v379
        %v386 = vsub.f32 %v374, %v380
        %v387 = vpack.c.bf16 %v381, %v381
        %v388 = vpack.c.bf16 %v382, %v382
        %v389 = vpack.c.bf16 %v383, %v383
        %v390 = vpack.c.bf16 %v384, %v384
        %v391 = vpack.c.bf16 %v385, %v385
        %v392 = vpack.c.bf16 %v386, %v386
        %v393 = vld [vmem:[%s300] sm:$0xff]
        %v394 = vld [vmem:[%s300 + $0x8] sm:$0xff]
        %v395 = vld [vmem:[%s300 + $0x10] sm:$0xff]
        %v396 = vld [vmem:[%s300 + $0x18] sm:$0xff]
        %v397 = vld [vmem:[%s300 + $0x20] sm:$0xff]
        %v398 = vld [vmem:[%s300 + $0x28] sm:$0xff]
        %v399 = vld [vmem:[%s300 + $0x30] sm:$0xff]
        %v400 = vld [vmem:[%s300 + $0x38] sm:$0xff]
        %v401 = vld [vmem:[%s300 + $0x40] sm:$0xff]
        %v402 = vld [vmem:[%s300 + $0x48] sm:$0xff]
        %v403 = vld [vmem:[%s300 + $0x50] sm:$0xff]
        %v404 = vld [vmem:[%s300 + $0x58] sm:$0xff]
        %v405 = vld [vmem:[%s300 + $0x60] sm:$0xff]
        %v406 = vld [vmem:[%s300 + $0x68] sm:$0xff]
        %v407 = vld [vmem:[%s300 + $0x70] sm:$0xff]
        %v408 = vld [vmem:[%s300 + $0x78] sm:$0xff]
        %v409 = vld [vmem:[%s300 + $0x80] sm:$0xff]
        %v410 = vld [vmem:[%s300 + $0x88] sm:$0xff]
        %v411 = vld [vmem:[%s300 + $0x90] sm:$0xff]
        %v412 = vld [vmem:[%s300 + $0x98] sm:$0xff]
        %v413 = vld [vmem:[%s300 + $0xa0] sm:$0xff]
        %v414 = vld [vmem:[%s300 + $0xa8] sm:$0xff]
        %v415 = vld [vmem:[%s300 + $0xb0] sm:$0xff]
        %v416 = vld [vmem:[%s300 + $0xb8] sm:$0xff]
        %v417 = vld [vmem:[%s300 + $0xc0] sm:$0xff]
        %v418 = vld [vmem:[%s300 + $0xc8] sm:$0xff]
        %v419 = vld [vmem:[%s300 + $0xd0] sm:$0xff]
        %v420 = vld [vmem:[%s300 + $0xd8] sm:$0xff]
        %v421 = vld [vmem:[%s300 + $0xe0] sm:$0xff]
        %v422 = vld [vmem:[%s300 + $0xe8] sm:$0xff]
        %v423 = vld [vmem:[%s300 + $0xf0] sm:$0xff]
        %v424 = vld [vmem:[%s300 + $0xf8] sm:$0xff]
        %v425 = vld [vmem:[%s300 + $0x100] sm:$0xff]
        %v426 = vld [vmem:[%s300 + $0x108] sm:$0xff]
        %v427 = vld [vmem:[%s300 + $0x110] sm:$0xff]
        %v428 = vld [vmem:[%s300 + $0x118] sm:$0xff]
        %v429 = vld [vmem:[%s300 + $0x120] sm:$0xff]
        %v430 = vld [vmem:[%s300 + $0x128] sm:$0xff]
        %v431 = vld [vmem:[%s300 + $0x130] sm:$0xff]
        %v432 = vld [vmem:[%s300 + $0x138] sm:$0xff]
        %v433 = vld [vmem:[%s300 + $0x140] sm:$0xff]
        %v434 = vld [vmem:[%s300 + $0x148] sm:$0xff]
        %v435 = vld [vmem:[%s300 + $0x150] sm:$0xff]
        %v436 = vld [vmem:[%s300 + $0x158] sm:$0xff]
        %v437 = vld [vmem:[%s300 + $0x160] sm:$0xff]
        %v438 = vld [vmem:[%s300 + $0x168] sm:$0xff]
        %v439 = vld [vmem:[%s300 + $0x170] sm:$0xff]
        %v440 = vld [vmem:[%s300 + $0x178] sm:$0xff]
        %v441 = vld [vmem:[%s300 + $0x180] sm:$0xff]
        %v442 = vld [vmem:[%s300 + $0x188] sm:$0xff]
        %v443 = vld [vmem:[%s300 + $0x190] sm:$0xff]
        %v444 = vld [vmem:[%s300 + $0x198] sm:$0xff]
        %v445 = vld [vmem:[%s300 + $0x1a0] sm:$0xff]
        %v446 = vld [vmem:[%s300 + $0x1a8] sm:$0xff]
        %v447 = vld [vmem:[%s300 + $0x1b0] sm:$0xff]
        %v448 = vld [vmem:[%s300 + $0x1b8] sm:$0xff]
        %v449 = vld [vmem:[%s300 + $0x1c0] sm:$0xff]
        %v450 = vld [vmem:[%s300 + $0x1c8] sm:$0xff]
        %v451 = vld [vmem:[%s300 + $0x1d0] sm:$0xff]
        %v452 = vld [vmem:[%s300 + $0x1d8] sm:$0xff]
        %v453 = vld [vmem:[%s300 + $0x1e0] sm:$0xff]
        %v454 = vld [vmem:[%s300 + $0x1e8] sm:$0xff]
        %v455 = vld [vmem:[%s300 + $0x1f0] sm:$0xff]
        %v456 = vld [vmem:[%s300 + $0x1f8] sm:$0xff]
        %v457 = vld [vmem:[%s300 + $0x200] sm:$0xff]
        %v458 = vld [vmem:[%s300 + $0x208] sm:$0xff]
        %v459 = vld [vmem:[%s300 + $0x210] sm:$0xff]
        %v460 = vld [vmem:[%s300 + $0x218] sm:$0xff]
        %v461 = vld [vmem:[%s300 + $0x220] sm:$0xff]
        %v462 = vld [vmem:[%s300 + $0x228] sm:$0xff]
        %v463 = vld [vmem:[%s300 + $0x230] sm:$0xff]
        %v464 = vld [vmem:[%s300 + $0x238] sm:$0xff]
        %v465 = vld [vmem:[%s300 + $0x240] sm:$0xff]
        %v466 = vld [vmem:[%s300 + $0x248] sm:$0xff]
        %v467 = vld [vmem:[%s300 + $0x250] sm:$0xff]
        %v468 = vld [vmem:[%s300 + $0x258] sm:$0xff]
        %v469 = vld [vmem:[%s300 + $0x260] sm:$0xff]
        %v470 = vld [vmem:[%s300 + $0x268] sm:$0xff]
        %v471 = vld [vmem:[%s300 + $0x270] sm:$0xff]
        %v472 = vld [vmem:[%s300 + $0x278] sm:$0xff]
        %v473 = vld [vmem:[%s300 + $0x280] sm:$0xff]
        %v474 = vld [vmem:[%s300 + $0x288] sm:$0xff]
        %v475 = vld [vmem:[%s300 + $0x290] sm:$0xff]
        %v476 = vld [vmem:[%s300 + $0x298] sm:$0xff]
        %v477 = vld [vmem:[%s300 + $0x2a0] sm:$0xff]
        %v478 = vld [vmem:[%s300 + $0x2a8] sm:$0xff]
        %v479 = vld [vmem:[%s300 + $0x2b0] sm:$0xff]
        %v480 = vld [vmem:[%s300 + $0x2b8] sm:$0xff]
        %v481 = vld [vmem:[%s300 + $0x2c0] sm:$0xff]
        %v482 = vld [vmem:[%s300 + $0x2c8] sm:$0xff]
        %v483 = vld [vmem:[%s300 + $0x2d0] sm:$0xff]
        %v484 = vld [vmem:[%s300 + $0x2d8] sm:$0xff]
        %v485 = vld [vmem:[%s300 + $0x2e0] sm:$0xff]
        %v486 = vld [vmem:[%s300 + $0x2e8] sm:$0xff]
        %v487 = vld [vmem:[%s300 + $0x2f0] sm:$0xff]
        %v488 = vld [vmem:[%s300 + $0x2f8] sm:$0xff]
        %v489 = vld [vmem:[%s300 + $0x300] sm:$0xff]
        %v490 = vld [vmem:[%s300 + $0x308] sm:$0xff]
        %v491 = vld [vmem:[%s300 + $0x310] sm:$0xff]
        %v492 = vld [vmem:[%s300 + $0x318] sm:$0xff]
        %v493 = vld [vmem:[%s300 + $0x320] sm:$0xff]
        %v494 = vld [vmem:[%s300 + $0x328] sm:$0xff]
        %v495 = vld [vmem:[%s300 + $0x330] sm:$0xff]
        %v496 = vld [vmem:[%s300 + $0x338] sm:$0xff]
        %v497 = vld [vmem:[%s300 + $0x340] sm:$0xff]
        %v498 = vld [vmem:[%s300 + $0x348] sm:$0xff]
        %v499 = vld [vmem:[%s300 + $0x350] sm:$0xff]
        %v500 = vld [vmem:[%s300 + $0x358] sm:$0xff]
        %v501 = vld [vmem:[%s300 + $0x360] sm:$0xff]
        %v502 = vld [vmem:[%s300 + $0x368] sm:$0xff]
        %v503 = vld [vmem:[%s300 + $0x370] sm:$0xff]
        %v504 = vld [vmem:[%s300 + $0x378] sm:$0xff]
        %v505 = vld [vmem:[%s300 + $0x380] sm:$0xff]
        %v506 = vld [vmem:[%s300 + $0x388] sm:$0xff]
        %v507 = vld [vmem:[%s300 + $0x390] sm:$0xff]
        %v508 = vld [vmem:[%s300 + $0x398] sm:$0xff]
        %v509 = vld [vmem:[%s300 + $0x3a0] sm:$0xff]
        %v510 = vld [vmem:[%s300 + $0x3a8] sm:$0xff]
        %v511 = vld [vmem:[%s300 + $0x3b0] sm:$0xff]
        %v512 = vld [vmem:[%s300 + $0x3b8] sm:$0xff]
        %v513 = vld [vmem:[%s300 + $0x3c0] sm:$0xff]
        %v514 = vld [vmem:[%s300 + $0x3c8] sm:$0xff]
        %v515 = vld [vmem:[%s300 + $0x3d0] sm:$0xff]
        %v516 = vld [vmem:[%s300 + $0x3d8] sm:$0xff]
        %v517 = vld [vmem:[%s300 + $0x3e0] sm:$0xff]
        %v518 = vld [vmem:[%s300 + $0x3e8] sm:$0xff]
        %v519 = vld [vmem:[%s300 + $0x3f0] sm:$0xff]
        %v520 = vld [vmem:[%s300 + $0x3f8] sm:$0xff]
        %v521 = vld [vmem:[%s300 + $0x400] sm:$0xff]
        %v522 = vld [vmem:[%s300 + $0x408] sm:$0xff]
        %v523 = vld [vmem:[%s300 + $0x410] sm:$0xff]
        %v524 = vld [vmem:[%s300 + $0x418] sm:$0xff]
        %v525 = vld [vmem:[%s300 + $0x420] sm:$0xff]
        %v526 = vld [vmem:[%s300 + $0x428] sm:$0xff]
        %v527 = vld [vmem:[%s300 + $0x430] sm:$0xff]
        %v528 = vld [vmem:[%s300 + $0x438] sm:$0xff]
        %v529 = vld [vmem:[%s300 + $0x440] sm:$0xff]
        %v530 = vld [vmem:[%s300 + $0x448] sm:$0xff]
        %v531 = vld [vmem:[%s300 + $0x450] sm:$0xff]
        %v532 = vld [vmem:[%s300 + $0x458] sm:$0xff]
        %v533 = vld [vmem:[%s300 + $0x460] sm:$0xff]
        %v534 = vld [vmem:[%s300 + $0x468] sm:$0xff]
        %v535 = vld [vmem:[%s300 + $0x470] sm:$0xff]
        %v536 = vld [vmem:[%s300 + $0x478] sm:$0xff]
        %v537 = vld [vmem:[%s300 + $0x480] sm:$0xff]
        %v538 = vld [vmem:[%s300 + $0x488] sm:$0xff]
        %v539 = vld [vmem:[%s300 + $0x490] sm:$0xff]
        %v540 = vld [vmem:[%s300 + $0x498] sm:$0xff]
        %v541 = vld [vmem:[%s300 + $0x4a0] sm:$0xff]
        %v542 = vld [vmem:[%s300 + $0x4a8] sm:$0xff]
        %v543 = vld [vmem:[%s300 + $0x4b0] sm:$0xff]
        %v544 = vld [vmem:[%s300 + $0x4b8] sm:$0xff]
        %v545 = vld [vmem:[%s300 + $0x4c0] sm:$0xff]
        %v546 = vld [vmem:[%s300 + $0x4c8] sm:$0xff]
        %v547 = vld [vmem:[%s300 + $0x4d0] sm:$0xff]
        %v548 = vld [vmem:[%s300 + $0x4d8] sm:$0xff]
        %v549 = vld [vmem:[%s300 + $0x4e0] sm:$0xff]
        %v550 = vld [vmem:[%s300 + $0x4e8] sm:$0xff]
        %v551 = vld [vmem:[%s300 + $0x4f0] sm:$0xff]
        %v552 = vld [vmem:[%s300 + $0x4f8] sm:$0xff]
        %v553 = vld [vmem:[%s300 + $0x500] sm:$0xff]
        %v554 = vld [vmem:[%s300 + $0x508] sm:$0xff]
        %v555 = vld [vmem:[%s300 + $0x510] sm:$0xff]
        %v556 = vld [vmem:[%s300 + $0x518] sm:$0xff]
        %v557 = vld [vmem:[%s300 + $0x520] sm:$0xff]
        %v558 = vld [vmem:[%s300 + $0x528] sm:$0xff]
        %v559 = vld [vmem:[%s300 + $0x530] sm:$0xff]
        %v560 = vld [vmem:[%s300 + $0x538] sm:$0xff]
        %v561 = vld [vmem:[%s300 + $0x540] sm:$0xff]
        %v562 = vld [vmem:[%s300 + $0x548] sm:$0xff]
        %v563 = vld [vmem:[%s300 + $0x550] sm:$0xff]
        %v564 = vld [vmem:[%s300 + $0x558] sm:$0xff]
        %v565 = vld [vmem:[%s300 + $0x560] sm:$0xff]
        %v566 = vld [vmem:[%s300 + $0x568] sm:$0xff]
        %v567 = vld [vmem:[%s300 + $0x570] sm:$0xff]
        %v568 = vld [vmem:[%s300 + $0x578] sm:$0xff]
        %v569 = vld [vmem:[%s300 + $0x580] sm:$0xff]
        %v570 = vld [vmem:[%s300 + $0x588] sm:$0xff]
        %v571 = vld [vmem:[%s300 + $0x590] sm:$0xff]
        %v572 = vld [vmem:[%s300 + $0x598] sm:$0xff]
        %v573 = vld [vmem:[%s300 + $0x5a0] sm:$0xff]
        %v574 = vld [vmem:[%s300 + $0x5a8] sm:$0xff]
        %v575 = vld [vmem:[%s300 + $0x5b0] sm:$0xff]
        %v576 = vld [vmem:[%s300 + $0x5b8] sm:$0xff]
        %v577 = vld [vmem:[%s300 + $0x5c0] sm:$0xff]
        %v578 = vld [vmem:[%s300 + $0x5c8] sm:$0xff]
        %v579 = vld [vmem:[%s300 + $0x5d0] sm:$0xff]
        %v580 = vld [vmem:[%s300 + $0x5d8] sm:$0xff]
        %v581 = vld [vmem:[%s300 + $0x5e0] sm:$0xff]
        %v582 = vld [vmem:[%s300 + $0x5e8] sm:$0xff]
        %v583 = vld [vmem:[%s300 + $0x5f0] sm:$0xff]
        %v584 = vld [vmem:[%s300 + $0x5f8] sm:$0xff]
        %v585 = vld [vmem:[%s300 + $0x600] sm:$0xff]
        %v586 = vld [vmem:[%s300 + $0x608] sm:$0xff]
        %v587 = vld [vmem:[%s300 + $0x610] sm:$0xff]
        %v588 = vld [vmem:[%s300 + $0x618] sm:$0xff]
        %v589 = vld [vmem:[%s300 + $0x620] sm:$0xff]
        %v590 = vld [vmem:[%s300 + $0x628] sm:$0xff]
        %v591 = vld [vmem:[%s300 + $0x630] sm:$0xff]
        %v592 = vld [vmem:[%s300 + $0x638] sm:$0xff]
        %v593 = vld [vmem:[%s300 + $0x640] sm:$0xff]
        %v594 = vld [vmem:[%s300 + $0x648] sm:$0xff]
        %v595 = vld [vmem:[%s300 + $0x650] sm:$0xff]
        %v596 = vld [vmem:[%s300 + $0x658] sm:$0xff]
        %v597 = vld [vmem:[%s300 + $0x660] sm:$0xff]
        %v598 = vld [vmem:[%s300 + $0x668] sm:$0xff]
        %v599 = vld [vmem:[%s300 + $0x670] sm:$0xff]
        %v600 = vld [vmem:[%s300 + $0x678] sm:$0xff]
        %v601 = vld [vmem:[%s300 + $0x680] sm:$0xff]
        %v602 = vld [vmem:[%s300 + $0x688] sm:$0xff]
        %v603 = vld [vmem:[%s300 + $0x690] sm:$0xff]
        %v604 = vld [vmem:[%s300 + $0x698] sm:$0xff]
        %v605 = vld [vmem:[%s300 + $0x6a0] sm:$0xff]
        %v606 = vld [vmem:[%s300 + $0x6a8] sm:$0xff]
        %v607 = vld [vmem:[%s300 + $0x6b0] sm:$0xff]
        %v608 = vld [vmem:[%s300 + $0x6b8] sm:$0xff]
        %v609 = vld [vmem:[%s300 + $0x6c0] sm:$0xff]
        %v610 = vld [vmem:[%s300 + $0x6c8] sm:$0xff]
        %v611 = vld [vmem:[%s300 + $0x6d0] sm:$0xff]
        %v612 = vld [vmem:[%s300 + $0x6d8] sm:$0xff]
        %v613 = vld [vmem:[%s300 + $0x6e0] sm:$0xff]
        %v614 = vld [vmem:[%s300 + $0x6e8] sm:$0xff]
        %v615 = vld [vmem:[%s300 + $0x6f0] sm:$0xff]
        %v616 = vld [vmem:[%s300 + $0x6f8] sm:$0xff]
        %v617 = vld [vmem:[%s300 + $0x700] sm:$0xff]
        %v618 = vld [vmem:[%s300 + $0x708] sm:$0xff]
        %v619 = vld [vmem:[%s300 + $0x710] sm:$0xff]
        %v620 = vld [vmem:[%s300 + $0x718] sm:$0xff]
        %v621 = vld [vmem:[%s300 + $0x720] sm:$0xff]
        %v622 = vld [vmem:[%s300 + $0x728] sm:$0xff]
        %v623 = vld [vmem:[%s300 + $0x730] sm:$0xff]
        %v624 = vld [vmem:[%s300 + $0x738] sm:$0xff]
        %v625 = vld [vmem:[%s300 + $0x740] sm:$0xff]
        %v626 = vld [vmem:[%s300 + $0x748] sm:$0xff]
        %v627 = vld [vmem:[%s300 + $0x750] sm:$0xff]
        %v628 = vld [vmem:[%s300 + $0x758] sm:$0xff]
        %v629 = vld [vmem:[%s300 + $0x760] sm:$0xff]
        %v630 = vld [vmem:[%s300 + $0x768] sm:$0xff]
        %v631 = vld [vmem:[%s300 + $0x770] sm:$0xff]
        %v632 = vld [vmem:[%s300 + $0x778] sm:$0xff]
        %v633 = vld [vmem:[%s300 + $0x780] sm:$0xff]
        %v634 = vld [vmem:[%s300 + $0x788] sm:$0xff]
        %v635 = vld [vmem:[%s300 + $0x790] sm:$0xff]
        %v636 = vld [vmem:[%s300 + $0x798] sm:$0xff]
        %v637 = vld [vmem:[%s300 + $0x7a0] sm:$0xff]
        %v638 = vld [vmem:[%s300 + $0x7a8] sm:$0xff]
        %v639 = vld [vmem:[%s300 + $0x7b0] sm:$0xff]
        %v640 = vld [vmem:[%s300 + $0x7b8] sm:$0xff]
        %v641 = vld [vmem:[%s300 + $0x7c0] sm:$0xff]
        %v642 = vld [vmem:[%s300 + $0x7c8] sm:$0xff]
        %v643 = vld [vmem:[%s300 + $0x7d0] sm:$0xff]
        %v644 = vld [vmem:[%s300 + $0x7d8] sm:$0xff]
        %v645 = vld [vmem:[%s300 + $0x7e0] sm:$0xff]
        %v646 = vld [vmem:[%s300 + $0x7e8] sm:$0xff]
        %v647 = vld [vmem:[%s300 + $0x7f0] sm:$0xff]
        %v648 = vld [vmem:[%s300 + $0x7f8] sm:$0xff]
        %v649 = vld [vmem:[%s300 + $0x800] sm:$0xff]
        %v650 = vld [vmem:[%s300 + $0x808] sm:$0xff]
        %v651 = vld [vmem:[%s300 + $0x810] sm:$0xff]
        %v652 = vld [vmem:[%s300 + $0x818] sm:$0xff]
        %v653 = vld [vmem:[%s300 + $0x820] sm:$0xff]
        %v654 = vld [vmem:[%s300 + $0x828] sm:$0xff]
        %v655 = vld [vmem:[%s300 + $0x830] sm:$0xff]
        %v656 = vld [vmem:[%s300 + $0x838] sm:$0xff]
        %v657 = vld [vmem:[%s300 + $0x840] sm:$0xff]
        %v658 = vld [vmem:[%s300 + $0x848] sm:$0xff]
        %v659 = vld [vmem:[%s300 + $0x850] sm:$0xff]
        %v660 = vld [vmem:[%s300 + $0x858] sm:$0xff]
        %v661 = vld [vmem:[%s300 + $0x860] sm:$0xff]
        %v662 = vld [vmem:[%s300 + $0x868] sm:$0xff]
        %v663 = vld [vmem:[%s300 + $0x870] sm:$0xff]
        %v664 = vld [vmem:[%s300 + $0x878] sm:$0xff]
        %v665 = vld [vmem:[%s300 + $0x880] sm:$0xff]
        %v666 = vld [vmem:[%s300 + $0x888] sm:$0xff]
        %v667 = vld [vmem:[%s300 + $0x890] sm:$0xff]
        %v668 = vld [vmem:[%s300 + $0x898] sm:$0xff]
        %v669 = vld [vmem:[%s300 + $0x8a0] sm:$0xff]
        %v670 = vld [vmem:[%s300 + $0x8a8] sm:$0xff]
        %v671 = vld [vmem:[%s300 + $0x8b0] sm:$0xff]
        %v672 = vld [vmem:[%s300 + $0x8b8] sm:$0xff]
        %v673 = vld [vmem:[%s300 + $0x8c0] sm:$0xff]
        %v674 = vld [vmem:[%s300 + $0x8c8] sm:$0xff]
        %v675 = vld [vmem:[%s300 + $0x8d0] sm:$0xff]
        %v676 = vld [vmem:[%s300 + $0x8d8] sm:$0xff]
        %v677 = vld [vmem:[%s300 + $0x8e0] sm:$0xff]
        %v678 = vld [vmem:[%s300 + $0x8e8] sm:$0xff]
        %v679 = vld [vmem:[%s300 + $0x8f0] sm:$0xff]
        %v680 = vld [vmem:[%s300 + $0x8f8] sm:$0xff]
        %v681 = vld [vmem:[%s300 + $0x900] sm:$0xff]
        %v682 = vld [vmem:[%s300 + $0x908] sm:$0xff]
        %v683 = vld [vmem:[%s300 + $0x910] sm:$0xff]
        %v684 = vld [vmem:[%s300 + $0x918] sm:$0xff]
        %v685 = vld [vmem:[%s300 + $0x920] sm:$0xff]
        %v686 = vld [vmem:[%s300 + $0x928] sm:$0xff]
        %v687 = vld [vmem:[%s300 + $0x930] sm:$0xff]
        %v688 = vld [vmem:[%s300 + $0x938] sm:$0xff]
        %v689 = vld [vmem:[%s300 + $0x940] sm:$0xff]
        %v690 = vld [vmem:[%s300 + $0x948] sm:$0xff]
        %v691 = vld [vmem:[%s300 + $0x950] sm:$0xff]
        %v692 = vld [vmem:[%s300 + $0x958] sm:$0xff]
        %v693 = vld [vmem:[%s300 + $0x960] sm:$0xff]
        %v694 = vld [vmem:[%s300 + $0x968] sm:$0xff]
        %v695 = vld [vmem:[%s300 + $0x970] sm:$0xff]
        %v696 = vld [vmem:[%s300 + $0x978] sm:$0xff]
        %v697 = vld [vmem:[%s300 + $0x980] sm:$0xff]
        %v698 = vld [vmem:[%s300 + $0x988] sm:$0xff]
        %v699 = vld [vmem:[%s300 + $0x990] sm:$0xff]
        %v700 = vld [vmem:[%s300 + $0x998] sm:$0xff]
        %v701 = vld [vmem:[%s300 + $0x9a0] sm:$0xff]
        %v702 = vld [vmem:[%s300 + $0x9a8] sm:$0xff]
        %v703 = vld [vmem:[%s300 + $0x9b0] sm:$0xff]
        %v704 = vld [vmem:[%s300 + $0x9b8] sm:$0xff]
        %v705 = vld [vmem:[%s300 + $0x9c0] sm:$0xff]
        %v706 = vld [vmem:[%s300 + $0x9c8] sm:$0xff]
        %v707 = vld [vmem:[%s300 + $0x9d0] sm:$0xff]
        %v708 = vld [vmem:[%s300 + $0x9d8] sm:$0xff]
        %v709 = vld [vmem:[%s300 + $0x9e0] sm:$0xff]
        %v710 = vld [vmem:[%s300 + $0x9e8] sm:$0xff]
        %v711 = vld [vmem:[%s300 + $0x9f0] sm:$0xff]
        %v712 = vld [vmem:[%s300 + $0x9f8] sm:$0xff]
        %v713 = vld [vmem:[%s300 + $0xa00] sm:$0xff]
        %v714 = vld [vmem:[%s300 + $0xa08] sm:$0xff]
        %v715 = vld [vmem:[%s300 + $0xa10] sm:$0xff]
        %v716 = vld [vmem:[%s300 + $0xa18] sm:$0xff]
        %v717 = vld [vmem:[%s300 + $0xa20] sm:$0xff]
        %v718 = vld [vmem:[%s300 + $0xa28] sm:$0xff]
        %v719 = vld [vmem:[%s300 + $0xa30] sm:$0xff]
        %v720 = vld [vmem:[%s300 + $0xa38] sm:$0xff]
        %v721 = vld [vmem:[%s300 + $0xa40] sm:$0xff]
        %v722 = vld [vmem:[%s300 + $0xa48] sm:$0xff]
        %v723 = vld [vmem:[%s300 + $0xa50] sm:$0xff]
        %v724 = vld [vmem:[%s300 + $0xa58] sm:$0xff]
        %v725 = vld [vmem:[%s300 + $0xa60] sm:$0xff]
        %v726 = vld [vmem:[%s300 + $0xa68] sm:$0xff]
        %v727 = vld [vmem:[%s300 + $0xa70] sm:$0xff]
        %v728 = vld [vmem:[%s300 + $0xa78] sm:$0xff]
        %v729 = vld [vmem:[%s300 + $0xa80] sm:$0xff]
        %v730 = vld [vmem:[%s300 + $0xa88] sm:$0xff]
        %v731 = vld [vmem:[%s300 + $0xa90] sm:$0xff]
        %v732 = vld [vmem:[%s300 + $0xa98] sm:$0xff]
        %v733 = vld [vmem:[%s300 + $0xaa0] sm:$0xff]
        %v734 = vld [vmem:[%s300 + $0xaa8] sm:$0xff]
        %v735 = vld [vmem:[%s300 + $0xab0] sm:$0xff]
        %v736 = vld [vmem:[%s300 + $0xab8] sm:$0xff]
        %v737 = vld [vmem:[%s300 + $0xac0] sm:$0xff]
        %v738 = vld [vmem:[%s300 + $0xac8] sm:$0xff]
        %v739 = vld [vmem:[%s300 + $0xad0] sm:$0xff]
        %v740 = vld [vmem:[%s300 + $0xad8] sm:$0xff]
        %v741 = vld [vmem:[%s300 + $0xae0] sm:$0xff]
        %v742 = vld [vmem:[%s300 + $0xae8] sm:$0xff]
        %v743 = vld [vmem:[%s300 + $0xaf0] sm:$0xff]
        %v744 = vld [vmem:[%s300 + $0xaf8] sm:$0xff]
        %v745 = vld [vmem:[%s300 + $0xb00] sm:$0xff]
        %v746 = vld [vmem:[%s300 + $0xb08] sm:$0xff]
        %v747 = vld [vmem:[%s300 + $0xb10] sm:$0xff]
        %v748 = vld [vmem:[%s300 + $0xb18] sm:$0xff]
        %v749 = vld [vmem:[%s300 + $0xb20] sm:$0xff]
        %v750 = vld [vmem:[%s300 + $0xb28] sm:$0xff]
        %v751 = vld [vmem:[%s300 + $0xb30] sm:$0xff]
        %v752 = vld [vmem:[%s300 + $0xb38] sm:$0xff]
        %v753 = vld [vmem:[%s300 + $0xb40] sm:$0xff]
        %v754 = vld [vmem:[%s300 + $0xb48] sm:$0xff]
        %v755 = vld [vmem:[%s300 + $0xb50] sm:$0xff]
        %v756 = vld [vmem:[%s300 + $0xb58] sm:$0xff]
        %v757 = vld [vmem:[%s300 + $0xb60] sm:$0xff]
        %v758 = vld [vmem:[%s300 + $0xb68] sm:$0xff]
        %v759 = vld [vmem:[%s300 + $0xb70] sm:$0xff]
        %v760 = vld [vmem:[%s300 + $0xb78] sm:$0xff]
        %v761 = vld [vmem:[%s300 + $0xb80] sm:$0xff]
        %v762 = vld [vmem:[%s300 + $0xb88] sm:$0xff]
        %v763 = vld [vmem:[%s300 + $0xb90] sm:$0xff]
        %v764 = vld [vmem:[%s300 + $0xb98] sm:$0xff]
        %v765 = vld [vmem:[%s300 + $0xba0] sm:$0xff]
        %v766 = vld [vmem:[%s300 + $0xba8] sm:$0xff]
        %v767 = vld [vmem:[%s300 + $0xbb0] sm:$0xff]
        %v768 = vld [vmem:[%s300 + $0xbb8] sm:$0xff]
        %v769 = vld [vmem:[%s300 + $0xbc0] sm:$0xff]
        %v770 = vld [vmem:[%s300 + $0xbc8] sm:$0xff]
        %v771 = vld [vmem:[%s300 + $0xbd0] sm:$0xff]
        %v772 = vld [vmem:[%s300 + $0xbd8] sm:$0xff]
        %v773 = vld [vmem:[%s300 + $0xbe0] sm:$0xff]
        %v774 = vld [vmem:[%s300 + $0xbe8] sm:$0xff]
        %v775 = vld [vmem:[%s300 + $0xbf0] sm:$0xff]
        %v776 = vld [vmem:[%s300 + $0xbf8] sm:$0xff]
        %v777 = vld [vmem:[%s300 + $0xc00] sm:$0xff]
        %v778 = vld [vmem:[%s300 + $0xc08] sm:$0xff]
        %v779 = vld [vmem:[%s300 + $0xc10] sm:$0xff]
        %v780 = vld [vmem:[%s300 + $0xc18] sm:$0xff]
        %v781 = vld [vmem:[%s300 + $0xc20] sm:$0xff]
        %v782 = vld [vmem:[%s300 + $0xc28] sm:$0xff]
        %v783 = vld [vmem:[%s300 + $0xc30] sm:$0xff]
        %v784 = vld [vmem:[%s300 + $0xc38] sm:$0xff]
        %v785 = vld [vmem:[%s300 + $0xc40] sm:$0xff]
        %v786 = vld [vmem:[%s300 + $0xc48] sm:$0xff]
        %v787 = vld [vmem:[%s300 + $0xc50] sm:$0xff]
        %v788 = vld [vmem:[%s300 + $0xc58] sm:$0xff]
        %v789 = vld [vmem:[%s300 + $0xc60] sm:$0xff]
        %v790 = vld [vmem:[%s300 + $0xc68] sm:$0xff]
        %v791 = vld [vmem:[%s300 + $0xc70] sm:$0xff]
        %v792 = vld [vmem:[%s300 + $0xc78] sm:$0xff]
        %v793 = vld [vmem:[%s300 + $0xc80] sm:$0xff]
        %v794 = vld [vmem:[%s300 + $0xc88] sm:$0xff]
        %v795 = vld [vmem:[%s300 + $0xc90] sm:$0xff]
        %v796 = vld [vmem:[%s300 + $0xc98] sm:$0xff]
        %v797 = vld [vmem:[%s300 + $0xca0] sm:$0xff]
        %v798 = vld [vmem:[%s300 + $0xca8] sm:$0xff]
        %v799 = vld [vmem:[%s300 + $0xcb0] sm:$0xff]
        %v800 = vld [vmem:[%s300 + $0xcb8] sm:$0xff]
        %v801 = vld [vmem:[%s300 + $0xcc0] sm:$0xff]
        %v802 = vld [vmem:[%s300 + $0xcc8] sm:$0xff]
        %v803 = vld [vmem:[%s300 + $0xcd0] sm:$0xff]
        %v804 = vld [vmem:[%s300 + $0xcd8] sm:$0xff]
        %v805 = vld [vmem:[%s300 + $0xce0] sm:$0xff]
        %v806 = vld [vmem:[%s300 + $0xce8] sm:$0xff]
        %v807 = vld [vmem:[%s300 + $0xcf0] sm:$0xff]
        %v808 = vld [vmem:[%s300 + $0xcf8] sm:$0xff]
        %v809 = vld [vmem:[%s300 + $0xd00] sm:$0xff]
        %v810 = vld [vmem:[%s300 + $0xd08] sm:$0xff]
        %v811 = vld [vmem:[%s300 + $0xd10] sm:$0xff]
        %v812 = vld [vmem:[%s300 + $0xd18] sm:$0xff]
        %v813 = vld [vmem:[%s300 + $0xd20] sm:$0xff]
        %v814 = vld [vmem:[%s300 + $0xd28] sm:$0xff]
        %v815 = vld [vmem:[%s300 + $0xd30] sm:$0xff]
        %v816 = vld [vmem:[%s300 + $0xd38] sm:$0xff]
        %v817 = vld [vmem:[%s300 + $0xd40] sm:$0xff]
        %v818 = vld [vmem:[%s300 + $0xd48] sm:$0xff]
        %v819 = vld [vmem:[%s300 + $0xd50] sm:$0xff]
        %v820 = vld [vmem:[%s300 + $0xd58] sm:$0xff]
        %v821 = vld [vmem:[%s300 + $0xd60] sm:$0xff]
        %v822 = vld [vmem:[%s300 + $0xd68] sm:$0xff]
        %v823 = vld [vmem:[%s300 + $0xd70] sm:$0xff]
        %v824 = vld [vmem:[%s300 + $0xd78] sm:$0xff]
        %v825 = vld [vmem:[%s300 + $0xd80] sm:$0xff]
        %v826 = vld [vmem:[%s300 + $0xd88] sm:$0xff]
        %v827 = vld [vmem:[%s300 + $0xd90] sm:$0xff]
        %v828 = vld [vmem:[%s300 + $0xd98] sm:$0xff]
        %v829 = vld [vmem:[%s300 + $0xda0] sm:$0xff]
        %v830 = vld [vmem:[%s300 + $0xda8] sm:$0xff]
        %v831 = vld [vmem:[%s300 + $0xdb0] sm:$0xff]
        %v832 = vld [vmem:[%s300 + $0xdb8] sm:$0xff]
        %v833 = vld [vmem:[%s300 + $0xdc0] sm:$0xff]
        %v834 = vld [vmem:[%s300 + $0xdc8] sm:$0xff]
        %v835 = vld [vmem:[%s300 + $0xdd0] sm:$0xff]
        %v836 = vld [vmem:[%s300 + $0xdd8] sm:$0xff]
        %v837 = vld [vmem:[%s300 + $0xde0] sm:$0xff]
        %v838 = vld [vmem:[%s300 + $0xde8] sm:$0xff]
        %v839 = vld [vmem:[%s300 + $0xdf0] sm:$0xff]
        %v840 = vld [vmem:[%s300 + $0xdf8] sm:$0xff]
        %v841 = vld [vmem:[%s300 + $0xe00] sm:$0xff]
        %v842 = vld [vmem:[%s300 + $0xe08] sm:$0xff]
        %v843 = vld [vmem:[%s300 + $0xe10] sm:$0xff]
        %v844 = vld [vmem:[%s300 + $0xe18] sm:$0xff]
        %v845 = vld [vmem:[%s300 + $0xe20] sm:$0xff]
        %v846 = vld [vmem:[%s300 + $0xe28] sm:$0xff]
        %v847 = vld [vmem:[%s300 + $0xe30] sm:$0xff]
        %v848 = vld [vmem:[%s300 + $0xe38] sm:$0xff]
        %v849 = vld [vmem:[%s300 + $0xe40] sm:$0xff]
        %v850 = vld [vmem:[%s300 + $0xe48] sm:$0xff]
        %v851 = vld [vmem:[%s300 + $0xe50] sm:$0xff]
        %v852 = vld [vmem:[%s300 + $0xe58] sm:$0xff]
        %v853 = vld [vmem:[%s300 + $0xe60] sm:$0xff]
        %v854 = vld [vmem:[%s300 + $0xe68] sm:$0xff]
        %v855 = vld [vmem:[%s300 + $0xe70] sm:$0xff]
        %v856 = vld [vmem:[%s300 + $0xe78] sm:$0xff]
        %v857 = vld [vmem:[%s300 + $0xe80] sm:$0xff]
        %v858 = vld [vmem:[%s300 + $0xe88] sm:$0xff]
        %v859 = vld [vmem:[%s300 + $0xe90] sm:$0xff]
        %v860 = vld [vmem:[%s300 + $0xe98] sm:$0xff]
        %v861 = vld [vmem:[%s300 + $0xea0] sm:$0xff]
        %v862 = vld [vmem:[%s300 + $0xea8] sm:$0xff]
        %v863 = vld [vmem:[%s300 + $0xeb0] sm:$0xff]
        %v864 = vld [vmem:[%s300 + $0xeb8] sm:$0xff]
        %v865 = vld [vmem:[%s300 + $0xec0] sm:$0xff]
        %v866 = vld [vmem:[%s300 + $0xec8] sm:$0xff]
        %v867 = vld [vmem:[%s300 + $0xed0] sm:$0xff]
        %v868 = vld [vmem:[%s300 + $0xed8] sm:$0xff]
        %v869 = vld [vmem:[%s300 + $0xee0] sm:$0xff]
        %v870 = vld [vmem:[%s300 + $0xee8] sm:$0xff]
        %v871 = vld [vmem:[%s300 + $0xef0] sm:$0xff]
        %v872 = vld [vmem:[%s300 + $0xef8] sm:$0xff]
        %v873 = vld [vmem:[%s300 + $0xf00] sm:$0xff]
        %v874 = vld [vmem:[%s300 + $0xf08] sm:$0xff]
        %v875 = vld [vmem:[%s300 + $0xf10] sm:$0xff]
        %v876 = vld [vmem:[%s300 + $0xf18] sm:$0xff]
        %v877 = vld [vmem:[%s300 + $0xf20] sm:$0xff]
        %v878 = vld [vmem:[%s300 + $0xf28] sm:$0xff]
        %v879 = vld [vmem:[%s300 + $0xf30] sm:$0xff]
        %v880 = vld [vmem:[%s300 + $0xf38] sm:$0xff]
        %v881 = vld [vmem:[%s300 + $0xf40] sm:$0xff]
        %v882 = vld [vmem:[%s300 + $0xf48] sm:$0xff]
        %v883 = vld [vmem:[%s300 + $0xf50] sm:$0xff]
        %v884 = vld [vmem:[%s300 + $0xf58] sm:$0xff]
        %v885 = vld [vmem:[%s300 + $0xf60] sm:$0xff]
        %v886 = vld [vmem:[%s300 + $0xf68] sm:$0xff]
        %v887 = vld [vmem:[%s300 + $0xf70] sm:$0xff]
        %v888 = vld [vmem:[%s300 + $0xf78] sm:$0xff]
        %v889 = vld [vmem:[%s300 + $0xf80] sm:$0xff]
        %v890 = vld [vmem:[%s300 + $0xf88] sm:$0xff]
        %v891 = vld [vmem:[%s300 + $0xf90] sm:$0xff]
        %v892 = vld [vmem:[%s300 + $0xf98] sm:$0xff]
        %v893 = vld [vmem:[%s300 + $0xfa0] sm:$0xff]
        %v894 = vld [vmem:[%s300 + $0xfa8] sm:$0xff]
        %v895 = vld [vmem:[%s300 + $0xfb0] sm:$0xff]
        %v896 = vld [vmem:[%s300 + $0xfb8] sm:$0xff]
        %v897 = vld [vmem:[%s300 + $0xfc0] sm:$0xff]
        %v898 = vld [vmem:[%s300 + $0xfc8] sm:$0xff]
        %v899 = vld [vmem:[%s300 + $0xfd0] sm:$0xff]
        %v900 = vld [vmem:[%s300 + $0xfd8] sm:$0xff]
        %v901 = vld [vmem:[%s300 + $0xfe0] sm:$0xff]
        %v902 = vld [vmem:[%s300 + $0xfe8] sm:$0xff]
        %v903 = vld [vmem:[%s300 + $0xff0] sm:$0xff]
        %v904 = vld [vmem:[%s300 + $0xff8] sm:$0xff]
        %v905 = vld [vmem:[%s300 + $0x1000] sm:$0xff]
        %v906 = vld [vmem:[%s300 + $0x1008] sm:$0xff]
        %v907 = vld [vmem:[%s300 + $0x1010] sm:$0xff]
        %v908 = vld [vmem:[%s300 + $0x1018] sm:$0xff]
        %v909 = vld [vmem:[%s300 + $0x1020] sm:$0xff]
        %v910 = vld [vmem:[%s300 + $0x1028] sm:$0xff]
        %v911 = vld [vmem:[%s300 + $0x1030] sm:$0xff]
        %v912 = vld [vmem:[%s300 + $0x1038] sm:$0xff]
        %v913 = vld [vmem:[%s300 + $0x1040] sm:$0xff]
        %v914 = vld [vmem:[%s300 + $0x1048] sm:$0xff]
        %v915 = vld [vmem:[%s300 + $0x1050] sm:$0xff]
        %v916 = vld [vmem:[%s300 + $0x1058] sm:$0xff]
        %v917 = vld [vmem:[%s300 + $0x1060] sm:$0xff]
        %v918 = vld [vmem:[%s300 + $0x1068] sm:$0xff]
        %v919 = vld [vmem:[%s300 + $0x1070] sm:$0xff]
        %v920 = vld [vmem:[%s300 + $0x1078] sm:$0xff]
        %v921 = vld [vmem:[%s300 + $0x1080] sm:$0xff]
        %v922 = vld [vmem:[%s300 + $0x1088] sm:$0xff]
        %v923 = vld [vmem:[%s300 + $0x1090] sm:$0xff]
        %v924 = vld [vmem:[%s300 + $0x1098] sm:$0xff]
        %v925 = vld [vmem:[%s300 + $0x10a0] sm:$0xff]
        %v926 = vld [vmem:[%s300 + $0x10a8] sm:$0xff]
        %v927 = vld [vmem:[%s300 + $0x10b0] sm:$0xff]
        %v928 = vld [vmem:[%s300 + $0x10b8] sm:$0xff]
        %v929 = vld [vmem:[%s300 + $0x10c0] sm:$0xff]
        %v930 = vld [vmem:[%s300 + $0x10c8] sm:$0xff]
        %v931 = vld [vmem:[%s300 + $0x10d0] sm:$0xff]
        %v932 = vld [vmem:[%s300 + $0x10d8] sm:$0xff]
        %v933 = vld [vmem:[%s300 + $0x10e0] sm:$0xff]
        %v934 = vld [vmem:[%s300 + $0x10e8] sm:$0xff]
        %v935 = vld [vmem:[%s300 + $0x10f0] sm:$0xff]
        %v936 = vld [vmem:[%s300 + $0x10f8] sm:$0xff]
        %v937 = vld [vmem:[%s300 + $0x1100] sm:$0xff]
        %v938 = vld [vmem:[%s300 + $0x1108] sm:$0xff]
        %v939 = vld [vmem:[%s300 + $0x1110] sm:$0xff]
        %v940 = vld [vmem:[%s300 + $0x1118] sm:$0xff]
        %v941 = vld [vmem:[%s300 + $0x1120] sm:$0xff]
        %v942 = vld [vmem:[%s300 + $0x1128] sm:$0xff]
        %v943 = vld [vmem:[%s300 + $0x1130] sm:$0xff]
        %v944 = vld [vmem:[%s300 + $0x1138] sm:$0xff]
        %v945 = vld [vmem:[%s300 + $0x1140] sm:$0xff]
        %v946 = vld [vmem:[%s300 + $0x1148] sm:$0xff]
        %v947 = vld [vmem:[%s300 + $0x1150] sm:$0xff]
        %v948 = vld [vmem:[%s300 + $0x1158] sm:$0xff]
        %v949 = vld [vmem:[%s300 + $0x1160] sm:$0xff]
        %v950 = vld [vmem:[%s300 + $0x1168] sm:$0xff]
        %v951 = vld [vmem:[%s300 + $0x1170] sm:$0xff]
        %v952 = vld [vmem:[%s300 + $0x1178] sm:$0xff]
        %v953 = vld [vmem:[%s300 + $0x1180] sm:$0xff]
        %v954 = vld [vmem:[%s300 + $0x1188] sm:$0xff]
        %v955 = vld [vmem:[%s300 + $0x1190] sm:$0xff]
        %v956 = vld [vmem:[%s300 + $0x1198] sm:$0xff]
        %v957 = vld [vmem:[%s300 + $0x11a0] sm:$0xff]
        %v958 = vld [vmem:[%s300 + $0x11a8] sm:$0xff]
        %v959 = vld [vmem:[%s300 + $0x11b0] sm:$0xff]
        %v960 = vld [vmem:[%s300 + $0x11b8] sm:$0xff]
        %v961 = vld [vmem:[%s300 + $0x11c0] sm:$0xff]
        %v962 = vld [vmem:[%s300 + $0x11c8] sm:$0xff]
        %v963 = vld [vmem:[%s300 + $0x11d0] sm:$0xff]
        %v964 = vld [vmem:[%s300 + $0x11d8] sm:$0xff]
        %v965 = vld [vmem:[%s300 + $0x11e0] sm:$0xff]
        %v966 = vld [vmem:[%s300 + $0x11e8] sm:$0xff]
        %v967 = vld [vmem:[%s300 + $0x11f0] sm:$0xff]
        %v968 = vld [vmem:[%s300 + $0x11f8] sm:$0xff]
        %v969 = vld [vmem:[%s300 + $0x1200] sm:$0xff]
        %v970 = vld [vmem:[%s300 + $0x1208] sm:$0xff]
        %v971 = vld [vmem:[%s300 + $0x1210] sm:$0xff]
        %v972 = vld [vmem:[%s300 + $0x1218] sm:$0xff]
        %v973 = vld [vmem:[%s300 + $0x1220] sm:$0xff]
        %v974 = vld [vmem:[%s300 + $0x1228] sm:$0xff]
        %v975 = vld [vmem:[%s300 + $0x1230] sm:$0xff]
        %v976 = vld [vmem:[%s300 + $0x1238] sm:$0xff]
        %v977 = vld [vmem:[%s300 + $0x1240] sm:$0xff]
        %v978 = vld [vmem:[%s300 + $0x1248] sm:$0xff]
        %v979 = vld [vmem:[%s300 + $0x1250] sm:$0xff]
        %v980 = vld [vmem:[%s300 + $0x1258] sm:$0xff]
        %v981 = vld [vmem:[%s300 + $0x1260] sm:$0xff]
        %v982 = vld [vmem:[%s300 + $0x1268] sm:$0xff]
        %v983 = vld [vmem:[%s300 + $0x1270] sm:$0xff]
        %v984 = vld [vmem:[%s300 + $0x1278] sm:$0xff]
        %v985 = vld [vmem:[%s300 + $0x1280] sm:$0xff]
        %v986 = vld [vmem:[%s300 + $0x1288] sm:$0xff]
        %v987 = vld [vmem:[%s300 + $0x1290] sm:$0xff]
        %v988 = vld [vmem:[%s300 + $0x1298] sm:$0xff]
        %v989 = vld [vmem:[%s300 + $0x12a0] sm:$0xff]
        %v990 = vld [vmem:[%s300 + $0x12a8] sm:$0xff]
        %v991 = vld [vmem:[%s300 + $0x12b0] sm:$0xff]
        %v992 = vld [vmem:[%s300 + $0x12b8] sm:$0xff]
        %v993 = vld [vmem:[%s300 + $0x12c0] sm:$0xff]
        %v994 = vld [vmem:[%s300 + $0x12c8] sm:$0xff]
        %v995 = vld [vmem:[%s300 + $0x12d0] sm:$0xff]
        %v996 = vld [vmem:[%s300 + $0x12d8] sm:$0xff]
        %v997 = vld [vmem:[%s300 + $0x12e0] sm:$0xff]
        %v998 = vld [vmem:[%s300 + $0x12e8] sm:$0xff]
        %v999 = vld [vmem:[%s300 + $0x12f0] sm:$0xff]
        %v1000 = vld [vmem:[%s300 + $0x12f8] sm:$0xff]
        %v1001 = vld [vmem:[%s300 + $0x1300] sm:$0xff]
        %v1002 = vld [vmem:[%s300 + $0x1308] sm:$0xff]
        %v1003 = vld [vmem:[%s300 + $0x1310] sm:$0xff]
        %v1004 = vld [vmem:[%s300 + $0x1318] sm:$0xff]
        %v1005 = vld [vmem:[%s300 + $0x1320] sm:$0xff]
        %v1006 = vld [vmem:[%s300 + $0x1328] sm:$0xff]
        %v1007 = vld [vmem:[%s300 + $0x1330] sm:$0xff]
        %v1008 = vld [vmem:[%s300 + $0x1338] sm:$0xff]
        %v1009 = vld [vmem:[%s300 + $0x1340] sm:$0xff]
        %v1010 = vld [vmem:[%s300 + $0x1348] sm:$0xff]
        %v1011 = vld [vmem:[%s300 + $0x1350] sm:$0xff]
        %v1012 = vld [vmem:[%s300 + $0x1358] sm:$0xff]
        %v1013 = vld [vmem:[%s300 + $0x1360] sm:$0xff]
        %v1014 = vld [vmem:[%s300 + $0x1368] sm:$0xff]
        %v1015 = vld [vmem:[%s300 + $0x1370] sm:$0xff]
        %v1016 = vld [vmem:[%s300 + $0x1378] sm:$0xff]
        %v1017 = vld [vmem:[%s300 + $0x1380] sm:$0xff]
        %v1018 = vld [vmem:[%s300 + $0x1388] sm:$0xff]
        %v1019 = vld [vmem:[%s300 + $0x1390] sm:$0xff]
        %v1020 = vld [vmem:[%s300 + $0x1398] sm:$0xff]
        %v1021 = vld [vmem:[%s300 + $0x13a0] sm:$0xff]
        %v1022 = vld [vmem:[%s300 + $0x13a8] sm:$0xff]
        %v1023 = vld [vmem:[%s300 + $0x13b0] sm:$0xff]
        %v1024 = vld [vmem:[%s300 + $0x13b8] sm:$0xff]
        %v1025 = vld [vmem:[%s300 + $0x13c0] sm:$0xff]
        %v1026 = vld [vmem:[%s300 + $0x13c8] sm:$0xff]
        %v1027 = vld [vmem:[%s300 + $0x13d0] sm:$0xff]
        %v1028 = vld [vmem:[%s300 + $0x13d8] sm:$0xff]
        %v1029 = vld [vmem:[%s300 + $0x13e0] sm:$0xff]
        %v1030 = vld [vmem:[%s300 + $0x13e8] sm:$0xff]
        %v1031 = vld [vmem:[%s300 + $0x13f0] sm:$0xff]
        %v1032 = vld [vmem:[%s300 + $0x13f8] sm:$0xff]
        %v1033 = vld [vmem:[%s300 + $0x1400] sm:$0xff]
        %v1034 = vld [vmem:[%s300 + $0x1408] sm:$0xff]
        %v1035 = vld [vmem:[%s300 + $0x1410] sm:$0xff]
        %v1036 = vld [vmem:[%s300 + $0x1418] sm:$0xff]
        %v1037 = vld [vmem:[%s300 + $0x1420] sm:$0xff]
        %v1038 = vld [vmem:[%s300 + $0x1428] sm:$0xff]
        %v1039 = vld [vmem:[%s300 + $0x1430] sm:$0xff]
        %v1040 = vld [vmem:[%s300 + $0x1438] sm:$0xff]
        %v1041 = vld [vmem:[%s300 + $0x1440] sm:$0xff]
        %v1042 = vld [vmem:[%s300 + $0x1448] sm:$0xff]
        %v1043 = vld [vmem:[%s300 + $0x1450] sm:$0xff]
        %v1044 = vld [vmem:[%s300 + $0x1458] sm:$0xff]
        %v1045 = vld [vmem:[%s300 + $0x1460] sm:$0xff]
        %v1046 = vld [vmem:[%s300 + $0x1468] sm:$0xff]
        %v1047 = vld [vmem:[%s300 + $0x1470] sm:$0xff]
        %v1048 = vld [vmem:[%s300 + $0x1478] sm:$0xff]
        %v1049 = vld [vmem:[%s300 + $0x1480] sm:$0xff]
        %v1050 = vld [vmem:[%s300 + $0x1488] sm:$0xff]
        %v1051 = vld [vmem:[%s300 + $0x1490] sm:$0xff]
        %v1052 = vld [vmem:[%s300 + $0x1498] sm:$0xff]
        %v1053 = vld [vmem:[%s300 + $0x14a0] sm:$0xff]
        %v1054 = vld [vmem:[%s300 + $0x14a8] sm:$0xff]
        %v1055 = vld [vmem:[%s300 + $0x14b0] sm:$0xff]
        %v1056 = vld [vmem:[%s300 + $0x14b8] sm:$0xff]
        %v1057 = vld [vmem:[%s300 + $0x14c0] sm:$0xff]
        %v1058 = vld [vmem:[%s300 + $0x14c8] sm:$0xff]
        %v1059 = vld [vmem:[%s300 + $0x14d0] sm:$0xff]
        %v1060 = vld [vmem:[%s300 + $0x14d8] sm:$0xff]
        %v1061 = vld [vmem:[%s300 + $0x14e0] sm:$0xff]
        %v1062 = vld [vmem:[%s300 + $0x14e8] sm:$0xff]
        %v1063 = vld [vmem:[%s300 + $0x14f0] sm:$0xff]
        %v1064 = vld [vmem:[%s300 + $0x14f8] sm:$0xff]
        %v1065 = vld [vmem:[%s300 + $0x1500] sm:$0xff]
        %v1066 = vld [vmem:[%s300 + $0x1508] sm:$0xff]
        %v1067 = vld [vmem:[%s300 + $0x1510] sm:$0xff]
        %v1068 = vld [vmem:[%s300 + $0x1518] sm:$0xff]
        %v1069 = vld [vmem:[%s300 + $0x1520] sm:$0xff]
        %v1070 = vld [vmem:[%s300 + $0x1528] sm:$0xff]
        %v1071 = vld [vmem:[%s300 + $0x1530] sm:$0xff]
        %v1072 = vld [vmem:[%s300 + $0x1538] sm:$0xff]
        %v1073 = vld [vmem:[%s300 + $0x1540] sm:$0xff]
        %v1074 = vld [vmem:[%s300 + $0x1548] sm:$0xff]
        %v1075 = vld [vmem:[%s300 + $0x1550] sm:$0xff]
        %v1076 = vld [vmem:[%s300 + $0x1558] sm:$0xff]
        %v1077 = vld [vmem:[%s300 + $0x1560] sm:$0xff]
        %v1078 = vld [vmem:[%s300 + $0x1568] sm:$0xff]
        %v1079 = vld [vmem:[%s300 + $0x1570] sm:$0xff]
        %v1080 = vld [vmem:[%s300 + $0x1578] sm:$0xff]
        %v1081 = vld [vmem:[%s300 + $0x1580] sm:$0xff]
        %v1082 = vld [vmem:[%s300 + $0x1588] sm:$0xff]
        %v1083 = vld [vmem:[%s300 + $0x1590] sm:$0xff]
        %v1084 = vld [vmem:[%s300 + $0x1598] sm:$0xff]
        %v1085 = vld [vmem:[%s300 + $0x15a0] sm:$0xff]
        %v1086 = vld [vmem:[%s300 + $0x15a8] sm:$0xff]
        %v1087 = vld [vmem:[%s300 + $0x15b0] sm:$0xff]
        %v1088 = vld [vmem:[%s300 + $0x15b8] sm:$0xff]
        %v1089 = vld [vmem:[%s300 + $0x15c0] sm:$0xff]
        %v1090 = vld [vmem:[%s300 + $0x15c8] sm:$0xff]
        %v1091 = vld [vmem:[%s300 + $0x15d0] sm:$0xff]
        %v1092 = vld [vmem:[%s300 + $0x15d8] sm:$0xff]
        %v1093 = vld [vmem:[%s300 + $0x15e0] sm:$0xff]
        %v1094 = vld [vmem:[%s300 + $0x15e8] sm:$0xff]
        %v1095 = vld [vmem:[%s300 + $0x15f0] sm:$0xff]
        %v1096 = vld [vmem:[%s300 + $0x15f8] sm:$0xff]
        %v1097 = vld [vmem:[%s300 + $0x1600] sm:$0xff]
        %v1098 = vld [vmem:[%s300 + $0x1608] sm:$0xff]
        %v1099 = vld [vmem:[%s300 + $0x1610] sm:$0xff]
        %v1100 = vld [vmem:[%s300 + $0x1618] sm:$0xff]
        %v1101 = vld [vmem:[%s300 + $0x1620] sm:$0xff]
        %v1102 = vld [vmem:[%s300 + $0x1628] sm:$0xff]
        %v1103 = vld [vmem:[%s300 + $0x1630] sm:$0xff]
        %v1104 = vld [vmem:[%s300 + $0x1638] sm:$0xff]
        %v1105 = vld [vmem:[%s300 + $0x1640] sm:$0xff]
        %v1106 = vld [vmem:[%s300 + $0x1648] sm:$0xff]
        %v1107 = vld [vmem:[%s300 + $0x1650] sm:$0xff]
        %v1108 = vld [vmem:[%s300 + $0x1658] sm:$0xff]
        %v1109 = vld [vmem:[%s300 + $0x1660] sm:$0xff]
        %v1110 = vld [vmem:[%s300 + $0x1668] sm:$0xff]
        %v1111 = vld [vmem:[%s300 + $0x1670] sm:$0xff]
        %v1112 = vld [vmem:[%s300 + $0x1678] sm:$0xff]
        %v1113 = vld [vmem:[%s300 + $0x1680] sm:$0xff]
        %v1114 = vld [vmem:[%s300 + $0x1688] sm:$0xff]
        %v1115 = vld [vmem:[%s300 + $0x1690] sm:$0xff]
        %v1116 = vld [vmem:[%s300 + $0x1698] sm:$0xff]
        %v1117 = vld [vmem:[%s300 + $0x16a0] sm:$0xff]
        %v1118 = vld [vmem:[%s300 + $0x16a8] sm:$0xff]
        %v1119 = vld [vmem:[%s300 + $0x16b0] sm:$0xff]
        %v1120 = vld [vmem:[%s300 + $0x16b8] sm:$0xff]
        %v1121 = vld [vmem:[%s300 + $0x16c0] sm:$0xff]
        %v1122 = vld [vmem:[%s300 + $0x16c8] sm:$0xff]
        %v1123 = vld [vmem:[%s300 + $0x16d0] sm:$0xff]
        %v1124 = vld [vmem:[%s300 + $0x16d8] sm:$0xff]
        %v1125 = vld [vmem:[%s300 + $0x16e0] sm:$0xff]
        %v1126 = vld [vmem:[%s300 + $0x16e8] sm:$0xff]
        %v1127 = vld [vmem:[%s300 + $0x16f0] sm:$0xff]
        %v1128 = vld [vmem:[%s300 + $0x16f8] sm:$0xff]
        %v1129 = vld [vmem:[%s300 + $0x1700] sm:$0xff]
        %v1130 = vld [vmem:[%s300 + $0x1708] sm:$0xff]
        %v1131 = vld [vmem:[%s300 + $0x1710] sm:$0xff]
        %v1132 = vld [vmem:[%s300 + $0x1718] sm:$0xff]
        %v1133 = vld [vmem:[%s300 + $0x1720] sm:$0xff]
        %v1134 = vld [vmem:[%s300 + $0x1728] sm:$0xff]
        %v1135 = vld [vmem:[%s300 + $0x1730] sm:$0xff]
        %v1136 = vld [vmem:[%s300 + $0x1738] sm:$0xff]
        %v1137 = vld [vmem:[%s300 + $0x1740] sm:$0xff]
        %v1138 = vld [vmem:[%s300 + $0x1748] sm:$0xff]
        %v1139 = vld [vmem:[%s300 + $0x1750] sm:$0xff]
        %v1140 = vld [vmem:[%s300 + $0x1758] sm:$0xff]
        %v1141 = vld [vmem:[%s300 + $0x1760] sm:$0xff]
        %v1142 = vld [vmem:[%s300 + $0x1768] sm:$0xff]
        %v1143 = vld [vmem:[%s300 + $0x1770] sm:$0xff]
        %v1144 = vld [vmem:[%s300 + $0x1778] sm:$0xff]
        %v1145 = vld [vmem:[%s300 + $0x1780] sm:$0xff]
        %v1146 = vld [vmem:[%s300 + $0x1788] sm:$0xff]
        %v1147 = vld [vmem:[%s300 + $0x1790] sm:$0xff]
        %v1148 = vld [vmem:[%s300 + $0x1798] sm:$0xff]
        %v1149 = vld [vmem:[%s300 + $0x17a0] sm:$0xff]
        %v1150 = vld [vmem:[%s300 + $0x17a8] sm:$0xff]
        %v1151 = vld [vmem:[%s300 + $0x17b0] sm:$0xff]
        %v1152 = vld [vmem:[%s300 + $0x17b8] sm:$0xff]
        %v1153 = vld [vmem:[%s300 + $0x17c0] sm:$0xff]
        %v1154 = vld [vmem:[%s300 + $0x17c8] sm:$0xff]
        %v1155 = vld [vmem:[%s300 + $0x17d0] sm:$0xff]
        %v1156 = vld [vmem:[%s300 + $0x17d8] sm:$0xff]
        %v1157 = vld [vmem:[%s300 + $0x17e0] sm:$0xff]
        %v1158 = vld [vmem:[%s300 + $0x17e8] sm:$0xff]
        %v1159 = vld [vmem:[%s300 + $0x17f0] sm:$0xff]
        %v1160 = vld [vmem:[%s300 + $0x17f8] sm:$0xff]
        %v1161 = vld [vmem:[%s309] sm:$0xff]
        %v1162 = vld [vmem:[%s309 + $0x8] sm:$0xff]
        %v1165 = vlaneseq
        %v1166 = vshrl.u32 %v1165, 7
        %v1167 = vsub.s32 0, %v1166
        %v1168 = vrot.slane %v1161, %v1167
        %v1169 = vlaneseq
        %v1170 = vshrl.u32 %v1169, 7
        %v1171 = vsub.s32 1, %v1170
        %v1172 = vrot.slane %v1161, %v1171
        %v1173 = vlaneseq
        %v1174 = vshrl.u32 %v1173, 7
        %v1175 = vsub.s32 2, %v1174
        %v1176 = vrot.slane %v1161, %v1175
        %v1177 = vlaneseq
        %v1178 = vshrl.u32 %v1177, 7
        %v1179 = vsub.s32 3, %v1178
        %v1180 = vrot.slane %v1161, %v1179
        %v1181 = vlaneseq
        %v1182 = vshrl.u32 %v1181, 7
        %v1183 = vsub.s32 4, %v1182
        %v1184 = vrot.slane %v1161, %v1183
        %v1185 = vlaneseq
        %v1186 = vshrl.u32 %v1185, 7
        %v1187 = vsub.s32 5, %v1186
        %v1188 = vrot.slane %v1161, %v1187
        %v1189 = vlaneseq
        %v1190 = vshrl.u32 %v1189, 7
        %v1191 = vsub.s32 6, %v1190
        %v1192 = vrot.slane %v1161, %v1191
        %v1193 = vlaneseq
        %v1194 = vshrl.u32 %v1193, 7
        %v1195 = vsub.s32 7, %v1194
        %v1196 = vrot.slane %v1161, %v1195
        %v1197 = vlaneseq
        %v1198 = vshrl.u32 %v1197, 7
        %v1199 = vsub.s32 0, %v1198
        %v1200 = vrot.slane %v1162, %v1199
        %v1201 = vlaneseq
        %v1202 = vshrl.u32 %v1201, 7
        %v1203 = vsub.s32 1, %v1202
        %v1204 = vrot.slane %v1162, %v1203
        %v1205 = vlaneseq
        %v1206 = vshrl.u32 %v1205, 7
        %v1207 = vsub.s32 2, %v1206
        %v1208 = vrot.slane %v1162, %v1207
        %v1209 = vlaneseq
        %v1210 = vshrl.u32 %v1209, 7
        %v1211 = vsub.s32 3, %v1210
        %v1212 = vrot.slane %v1162, %v1211
        %v1213 = vlaneseq
        %v1214 = vshrl.u32 %v1213, 7
        %v1215 = vsub.s32 4, %v1214
        %v1216 = vrot.slane %v1162, %v1215
        %v1217 = vlaneseq
        %v1218 = vshrl.u32 %v1217, 7
        %v1219 = vsub.s32 5, %v1218
        %v1220 = vrot.slane %v1162, %v1219
        %v1221 = vlaneseq
        %v1222 = vshrl.u32 %v1221, 7
        %v1223 = vsub.s32 6, %v1222
        %v1224 = vrot.slane %v1162, %v1223
        %v1225 = vlaneseq
        %v1226 = vshrl.u32 %v1225, 7
        %v1227 = vsub.s32 7, %v1226
        %v1228 = vrot.slane %v1162, %v1227
        %v2013 = vunpack.c.l.b16 %v393
        %v2014 = vunpack.c.h.b16 %v393
        %v2015 = vunpack.c.l.b16 %v394
        %v2016 = vunpack.c.h.b16 %v394
        %v2017 = vunpack.c.l.b16 %v395
        %v2018 = vunpack.c.h.b16 %v395
        %v2019 = vunpack.c.l.b16 %v396
        %v2020 = vunpack.c.h.b16 %v396
        %v2021 = vunpack.c.l.b16 %v397
        %v2022 = vunpack.c.h.b16 %v397
        %v2023 = vunpack.c.l.b16 %v398
        %v2024 = vunpack.c.h.b16 %v398
        %v2025 = vunpack.c.l.b16 %v399
        %v2026 = vunpack.c.h.b16 %v399
        %v2027 = vunpack.c.l.b16 %v400
        %v2028 = vunpack.c.h.b16 %v400
        %v2029 = vunpack.c.l.b16 %v401
        %v2030 = vunpack.c.h.b16 %v401
        %v2031 = vunpack.c.l.b16 %v402
        %v2032 = vunpack.c.h.b16 %v402
        %v2033 = vunpack.c.l.b16 %v403
        %v2034 = vunpack.c.h.b16 %v403
        %v2035 = vunpack.c.l.b16 %v404
        %v2036 = vunpack.c.h.b16 %v404
        %v2037 = vunpack.c.l.b16 %v405
        %v2038 = vunpack.c.h.b16 %v405
        %v2039 = vunpack.c.l.b16 %v406
        %v2040 = vunpack.c.h.b16 %v406
        %v2041 = vunpack.c.l.b16 %v407
        %v2042 = vunpack.c.h.b16 %v407
        %v2043 = vunpack.c.l.b16 %v408
        %v2044 = vunpack.c.h.b16 %v408
        %v2045 = vunpack.c.l.b16 %v409
        %v2046 = vunpack.c.h.b16 %v409
        %v2047 = vunpack.c.l.b16 %v410
        %v2048 = vunpack.c.h.b16 %v410
        %v2049 = vunpack.c.l.b16 %v411
        %v2050 = vunpack.c.h.b16 %v411
        %v2051 = vunpack.c.l.b16 %v412
        %v2052 = vunpack.c.h.b16 %v412
        %v2053 = vunpack.c.l.b16 %v413
        %v2054 = vunpack.c.h.b16 %v413
        %v2055 = vunpack.c.l.b16 %v414
        %v2056 = vunpack.c.h.b16 %v414
        %v2057 = vunpack.c.l.b16 %v415
        %v2058 = vunpack.c.h.b16 %v415
        %v2059 = vunpack.c.l.b16 %v416
        %v2060 = vunpack.c.h.b16 %v416
        %v2061 = vunpack.c.l.b16 %v417
        %v2062 = vunpack.c.h.b16 %v417
        %v2063 = vunpack.c.l.b16 %v418
        %v2064 = vunpack.c.h.b16 %v418
        %v2065 = vunpack.c.l.b16 %v419
        %v2066 = vunpack.c.h.b16 %v419
        %v2067 = vunpack.c.l.b16 %v420
        %v2068 = vunpack.c.h.b16 %v420
        %v2069 = vunpack.c.l.b16 %v421
        %v2070 = vunpack.c.h.b16 %v421
        %v2071 = vunpack.c.l.b16 %v422
        %v2072 = vunpack.c.h.b16 %v422
        %v2073 = vunpack.c.l.b16 %v423
        %v2074 = vunpack.c.h.b16 %v423
        %v2075 = vunpack.c.l.b16 %v424
        %v2076 = vunpack.c.h.b16 %v424
        %v2077 = vunpack.c.l.b16 %v425
        %v2078 = vunpack.c.h.b16 %v425
        %v2079 = vunpack.c.l.b16 %v426
        %v2080 = vunpack.c.h.b16 %v426
        %v2081 = vunpack.c.l.b16 %v427
        %v2082 = vunpack.c.h.b16 %v427
        %v2083 = vunpack.c.l.b16 %v428
        %v2084 = vunpack.c.h.b16 %v428
        %v2085 = vunpack.c.l.b16 %v429
        %v2086 = vunpack.c.h.b16 %v429
        %v2087 = vunpack.c.l.b16 %v430
        %v2088 = vunpack.c.h.b16 %v430
        %v2089 = vunpack.c.l.b16 %v431
        %v2090 = vunpack.c.h.b16 %v431
        %v2091 = vunpack.c.l.b16 %v432
        %v2092 = vunpack.c.h.b16 %v432
        %v2093 = vunpack.c.l.b16 %v433
        %v2094 = vunpack.c.h.b16 %v433
        %v2095 = vunpack.c.l.b16 %v434
        %v2096 = vunpack.c.h.b16 %v434
        %v2097 = vunpack.c.l.b16 %v435
        %v2098 = vunpack.c.h.b16 %v435
        %v2099 = vunpack.c.l.b16 %v436
        %v2100 = vunpack.c.h.b16 %v436
        %v2101 = vunpack.c.l.b16 %v437
        %v2102 = vunpack.c.h.b16 %v437
        %v2103 = vunpack.c.l.b16 %v438
        %v2104 = vunpack.c.h.b16 %v438
        %v2105 = vunpack.c.l.b16 %v439
        %v2106 = vunpack.c.h.b16 %v439
        %v2107 = vunpack.c.l.b16 %v440
        %v2108 = vunpack.c.h.b16 %v440
        %v2109 = vunpack.c.l.b16 %v441
        %v2110 = vunpack.c.h.b16 %v441
        %v2111 = vunpack.c.l.b16 %v442
        %v2112 = vunpack.c.h.b16 %v442
        %v2113 = vunpack.c.l.b16 %v443
        %v2114 = vunpack.c.h.b16 %v443
        %v2115 = vunpack.c.l.b16 %v444
        %v2116 = vunpack.c.h.b16 %v444
        %v2117 = vunpack.c.l.b16 %v445
        %v2118 = vunpack.c.h.b16 %v445
        %v2119 = vunpack.c.l.b16 %v446
        %v2120 = vunpack.c.h.b16 %v446
        %v2121 = vunpack.c.l.b16 %v447
        %v2122 = vunpack.c.h.b16 %v447
        %v2123 = vunpack.c.l.b16 %v448
        %v2124 = vunpack.c.h.b16 %v448
        %v2125 = vunpack.c.l.b16 %v449
        %v2126 = vunpack.c.h.b16 %v449
        %v2127 = vunpack.c.l.b16 %v450
        %v2128 = vunpack.c.h.b16 %v450
        %v2129 = vunpack.c.l.b16 %v451
        %v2130 = vunpack.c.h.b16 %v451
        %v2131 = vunpack.c.l.b16 %v452
        %v2132 = vunpack.c.h.b16 %v452
        %v2133 = vunpack.c.l.b16 %v453
        %v2134 = vunpack.c.h.b16 %v453
        %v2135 = vunpack.c.l.b16 %v454
        %v2136 = vunpack.c.h.b16 %v454
        %v2137 = vunpack.c.l.b16 %v455
        %v2138 = vunpack.c.h.b16 %v455
        %v2139 = vunpack.c.l.b16 %v456
        %v2140 = vunpack.c.h.b16 %v456
        %v2141 = vunpack.c.l.b16 %v457
        %v2142 = vunpack.c.h.b16 %v457
        %v2143 = vunpack.c.l.b16 %v458
        %v2144 = vunpack.c.h.b16 %v458
        %v2145 = vunpack.c.l.b16 %v459
        %v2146 = vunpack.c.h.b16 %v459
        %v2147 = vunpack.c.l.b16 %v460
        %v2148 = vunpack.c.h.b16 %v460
        %v2149 = vunpack.c.l.b16 %v461
        %v2150 = vunpack.c.h.b16 %v461
        %v2151 = vunpack.c.l.b16 %v462
        %v2152 = vunpack.c.h.b16 %v462
        %v2153 = vunpack.c.l.b16 %v463
        %v2154 = vunpack.c.h.b16 %v463
        %v2155 = vunpack.c.l.b16 %v464
        %v2156 = vunpack.c.h.b16 %v464
        %v2157 = vunpack.c.l.b16 %v465
        %v2158 = vunpack.c.h.b16 %v465
        %v2159 = vunpack.c.l.b16 %v466
        %v2160 = vunpack.c.h.b16 %v466
        %v2161 = vunpack.c.l.b16 %v467
        %v2162 = vunpack.c.h.b16 %v467
        %v2163 = vunpack.c.l.b16 %v468
        %v2164 = vunpack.c.h.b16 %v468
        %v2165 = vunpack.c.l.b16 %v469
        %v2166 = vunpack.c.h.b16 %v469
        %v2167 = vunpack.c.l.b16 %v470
        %v2168 = vunpack.c.h.b16 %v470
        %v2169 = vunpack.c.l.b16 %v471
        %v2170 = vunpack.c.h.b16 %v471
        %v2171 = vunpack.c.l.b16 %v472
        %v2172 = vunpack.c.h.b16 %v472
        %v2173 = vunpack.c.l.b16 %v473
        %v2174 = vunpack.c.h.b16 %v473
        %v2175 = vunpack.c.l.b16 %v474
        %v2176 = vunpack.c.h.b16 %v474
        %v2177 = vunpack.c.l.b16 %v475
        %v2178 = vunpack.c.h.b16 %v475
        %v2179 = vunpack.c.l.b16 %v476
        %v2180 = vunpack.c.h.b16 %v476
        %v2181 = vunpack.c.l.b16 %v477
        %v2182 = vunpack.c.h.b16 %v477
        %v2183 = vunpack.c.l.b16 %v478
        %v2184 = vunpack.c.h.b16 %v478
        %v2185 = vunpack.c.l.b16 %v479
        %v2186 = vunpack.c.h.b16 %v479
        %v2187 = vunpack.c.l.b16 %v480
        %v2188 = vunpack.c.h.b16 %v480
        %v2189 = vunpack.c.l.b16 %v481
        %v2190 = vunpack.c.h.b16 %v481
        %v2191 = vunpack.c.l.b16 %v482
        %v2192 = vunpack.c.h.b16 %v482
        %v2193 = vunpack.c.l.b16 %v483
        %v2194 = vunpack.c.h.b16 %v483
        %v2195 = vunpack.c.l.b16 %v484
        %v2196 = vunpack.c.h.b16 %v484
        %v2197 = vunpack.c.l.b16 %v485
        %v2198 = vunpack.c.h.b16 %v485
        %v2199 = vunpack.c.l.b16 %v486
        %v2200 = vunpack.c.h.b16 %v486
        %v2201 = vunpack.c.l.b16 %v487
        %v2202 = vunpack.c.h.b16 %v487
        %v2203 = vunpack.c.l.b16 %v488
        %v2204 = vunpack.c.h.b16 %v488
        %v2205 = vunpack.c.l.b16 %v489
        %v2206 = vunpack.c.h.b16 %v489
        %v2207 = vunpack.c.l.b16 %v490
        %v2208 = vunpack.c.h.b16 %v490
        %v2209 = vunpack.c.l.b16 %v491
        %v2210 = vunpack.c.h.b16 %v491
        %v2211 = vunpack.c.l.b16 %v492
        %v2212 = vunpack.c.h.b16 %v492
        %v2213 = vunpack.c.l.b16 %v493
        %v2214 = vunpack.c.h.b16 %v493
        %v2215 = vunpack.c.l.b16 %v494
        %v2216 = vunpack.c.h.b16 %v494
        %v2217 = vunpack.c.l.b16 %v495
        %v2218 = vunpack.c.h.b16 %v495
        %v2219 = vunpack.c.l.b16 %v496
        %v2220 = vunpack.c.h.b16 %v496
        %v2221 = vunpack.c.l.b16 %v497
        %v2222 = vunpack.c.h.b16 %v497
        %v2223 = vunpack.c.l.b16 %v498
        %v2224 = vunpack.c.h.b16 %v498
        %v2225 = vunpack.c.l.b16 %v499
        %v2226 = vunpack.c.h.b16 %v499
        %v2227 = vunpack.c.l.b16 %v500
        %v2228 = vunpack.c.h.b16 %v500
        %v2229 = vunpack.c.l.b16 %v501
        %v2230 = vunpack.c.h.b16 %v501
        %v2231 = vunpack.c.l.b16 %v502
        %v2232 = vunpack.c.h.b16 %v502
        %v2233 = vunpack.c.l.b16 %v503
        %v2234 = vunpack.c.h.b16 %v503
        %v2235 = vunpack.c.l.b16 %v504
        %v2236 = vunpack.c.h.b16 %v504
        %v2237 = vunpack.c.l.b16 %v505
        %v2238 = vunpack.c.h.b16 %v505
        %v2239 = vunpack.c.l.b16 %v506
        %v2240 = vunpack.c.h.b16 %v506
        %v2241 = vunpack.c.l.b16 %v507
        %v2242 = vunpack.c.h.b16 %v507
        %v2243 = vunpack.c.l.b16 %v508
        %v2244 = vunpack.c.h.b16 %v508
        %v2245 = vunpack.c.l.b16 %v509
        %v2246 = vunpack.c.h.b16 %v509
        %v2247 = vunpack.c.l.b16 %v510
        %v2248 = vunpack.c.h.b16 %v510
        %v2249 = vunpack.c.l.b16 %v511
        %v2250 = vunpack.c.h.b16 %v511
        %v2251 = vunpack.c.l.b16 %v512
        %v2252 = vunpack.c.h.b16 %v512
        %v2253 = vunpack.c.l.b16 %v513
        %v2254 = vunpack.c.h.b16 %v513
        %v2255 = vunpack.c.l.b16 %v514
        %v2256 = vunpack.c.h.b16 %v514
        %v2257 = vunpack.c.l.b16 %v515
        %v2258 = vunpack.c.h.b16 %v515
        %v2259 = vunpack.c.l.b16 %v516
        %v2260 = vunpack.c.h.b16 %v516
        %v2261 = vunpack.c.l.b16 %v517
        %v2262 = vunpack.c.h.b16 %v517
        %v2263 = vunpack.c.l.b16 %v518
        %v2264 = vunpack.c.h.b16 %v518
        %v2265 = vunpack.c.l.b16 %v519
        %v2266 = vunpack.c.h.b16 %v519
        %v2267 = vunpack.c.l.b16 %v520
        %v2268 = vunpack.c.h.b16 %v520
        %v2269 = vunpack.c.l.b16 %v521
        %v2270 = vunpack.c.h.b16 %v521
        %v2271 = vunpack.c.l.b16 %v522
        %v2272 = vunpack.c.h.b16 %v522
        %v2273 = vunpack.c.l.b16 %v523
        %v2274 = vunpack.c.h.b16 %v523
        %v2275 = vunpack.c.l.b16 %v524
        %v2276 = vunpack.c.h.b16 %v524
        %v2277 = vunpack.c.l.b16 %v525
        %v2278 = vunpack.c.h.b16 %v525
        %v2279 = vunpack.c.l.b16 %v526
        %v2280 = vunpack.c.h.b16 %v526
        %v2281 = vunpack.c.l.b16 %v527
        %v2282 = vunpack.c.h.b16 %v527
        %v2283 = vunpack.c.l.b16 %v528
        %v2284 = vunpack.c.h.b16 %v528
        %v2285 = vunpack.c.l.b16 %v529
        %v2286 = vunpack.c.h.b16 %v529
        %v2287 = vunpack.c.l.b16 %v530
        %v2288 = vunpack.c.h.b16 %v530
        %v2289 = vunpack.c.l.b16 %v531
        %v2290 = vunpack.c.h.b16 %v531
        %v2291 = vunpack.c.l.b16 %v532
        %v2292 = vunpack.c.h.b16 %v532
        %v2293 = vunpack.c.l.b16 %v533
        %v2294 = vunpack.c.h.b16 %v533
        %v2295 = vunpack.c.l.b16 %v534
        %v2296 = vunpack.c.h.b16 %v534
        %v2297 = vunpack.c.l.b16 %v535
        %v2298 = vunpack.c.h.b16 %v535
        %v2299 = vunpack.c.l.b16 %v536
        %v2300 = vunpack.c.h.b16 %v536
        %v2301 = vunpack.c.l.b16 %v537
        %v2302 = vunpack.c.h.b16 %v537
        %v2303 = vunpack.c.l.b16 %v538
        %v2304 = vunpack.c.h.b16 %v538
        %v2305 = vunpack.c.l.b16 %v539
        %v2306 = vunpack.c.h.b16 %v539
        %v2307 = vunpack.c.l.b16 %v540
        %v2308 = vunpack.c.h.b16 %v540
        %v2309 = vunpack.c.l.b16 %v541
        %v2310 = vunpack.c.h.b16 %v541
        %v2311 = vunpack.c.l.b16 %v542
        %v2312 = vunpack.c.h.b16 %v542
        %v2313 = vunpack.c.l.b16 %v543
        %v2314 = vunpack.c.h.b16 %v543
        %v2315 = vunpack.c.l.b16 %v544
        %v2316 = vunpack.c.h.b16 %v544
        %v2317 = vunpack.c.l.b16 %v545
        %v2318 = vunpack.c.h.b16 %v545
        %v2319 = vunpack.c.l.b16 %v546
        %v2320 = vunpack.c.h.b16 %v546
        %v2321 = vunpack.c.l.b16 %v547
        %v2322 = vunpack.c.h.b16 %v547
        %v2323 = vunpack.c.l.b16 %v548
        %v2324 = vunpack.c.h.b16 %v548
        %v2325 = vunpack.c.l.b16 %v549
        %v2326 = vunpack.c.h.b16 %v549
        %v2327 = vunpack.c.l.b16 %v550
        %v2328 = vunpack.c.h.b16 %v550
        %v2329 = vunpack.c.l.b16 %v551
        %v2330 = vunpack.c.h.b16 %v551
        %v2331 = vunpack.c.l.b16 %v552
        %v2332 = vunpack.c.h.b16 %v552
        %v2333 = vunpack.c.l.b16 %v553
        %v2334 = vunpack.c.h.b16 %v553
        %v2335 = vunpack.c.l.b16 %v554
        %v2336 = vunpack.c.h.b16 %v554
        %v2337 = vunpack.c.l.b16 %v555
        %v2338 = vunpack.c.h.b16 %v555
        %v2339 = vunpack.c.l.b16 %v556
        %v2340 = vunpack.c.h.b16 %v556
        %v2341 = vunpack.c.l.b16 %v557
        %v2342 = vunpack.c.h.b16 %v557
        %v2343 = vunpack.c.l.b16 %v558
        %v2344 = vunpack.c.h.b16 %v558
        %v2345 = vunpack.c.l.b16 %v559
        %v2346 = vunpack.c.h.b16 %v559
        %v2347 = vunpack.c.l.b16 %v560
        %v2348 = vunpack.c.h.b16 %v560
        %v2349 = vunpack.c.l.b16 %v561
        %v2350 = vunpack.c.h.b16 %v561
        %v2351 = vunpack.c.l.b16 %v562
        %v2352 = vunpack.c.h.b16 %v562
        %v2353 = vunpack.c.l.b16 %v563
        %v2354 = vunpack.c.h.b16 %v563
        %v2355 = vunpack.c.l.b16 %v564
        %v2356 = vunpack.c.h.b16 %v564
        %v2357 = vunpack.c.l.b16 %v565
        %v2358 = vunpack.c.h.b16 %v565
        %v2359 = vunpack.c.l.b16 %v566
        %v2360 = vunpack.c.h.b16 %v566
        %v2361 = vunpack.c.l.b16 %v567
        %v2362 = vunpack.c.h.b16 %v567
        %v2363 = vunpack.c.l.b16 %v568
        %v2364 = vunpack.c.h.b16 %v568
        %v2365 = vunpack.c.l.b16 %v569
        %v2366 = vunpack.c.h.b16 %v569
        %v2367 = vunpack.c.l.b16 %v570
        %v2368 = vunpack.c.h.b16 %v570
        %v2369 = vunpack.c.l.b16 %v571
        %v2370 = vunpack.c.h.b16 %v571
        %v2371 = vunpack.c.l.b16 %v572
        %v2372 = vunpack.c.h.b16 %v572
        %v2373 = vunpack.c.l.b16 %v573
        %v2374 = vunpack.c.h.b16 %v573
        %v2375 = vunpack.c.l.b16 %v574
        %v2376 = vunpack.c.h.b16 %v574
        %v2377 = vunpack.c.l.b16 %v575
        %v2378 = vunpack.c.h.b16 %v575
        %v2379 = vunpack.c.l.b16 %v576
        %v2380 = vunpack.c.h.b16 %v576
        %v2381 = vunpack.c.l.b16 %v577
        %v2382 = vunpack.c.h.b16 %v577
        %v2383 = vunpack.c.l.b16 %v578
        %v2384 = vunpack.c.h.b16 %v578
        %v2385 = vunpack.c.l.b16 %v579
        %v2386 = vunpack.c.h.b16 %v579
        %v2387 = vunpack.c.l.b16 %v580
        %v2388 = vunpack.c.h.b16 %v580
        %v2389 = vunpack.c.l.b16 %v581
        %v2390 = vunpack.c.h.b16 %v581
        %v2391 = vunpack.c.l.b16 %v582
        %v2392 = vunpack.c.h.b16 %v582
        %v2393 = vunpack.c.l.b16 %v583
        %v2394 = vunpack.c.h.b16 %v583
        %v2395 = vunpack.c.l.b16 %v584
        %v2396 = vunpack.c.h.b16 %v584
        %v2397 = vunpack.c.l.b16 %v585
        %v2398 = vunpack.c.h.b16 %v585
        %v2399 = vunpack.c.l.b16 %v586
        %v2400 = vunpack.c.h.b16 %v586
        %v2401 = vunpack.c.l.b16 %v587
        %v2402 = vunpack.c.h.b16 %v587
        %v2403 = vunpack.c.l.b16 %v588
        %v2404 = vunpack.c.h.b16 %v588
        %v2405 = vunpack.c.l.b16 %v589
        %v2406 = vunpack.c.h.b16 %v589
        %v2407 = vunpack.c.l.b16 %v590
        %v2408 = vunpack.c.h.b16 %v590
        %v2409 = vunpack.c.l.b16 %v591
        %v2410 = vunpack.c.h.b16 %v591
        %v2411 = vunpack.c.l.b16 %v592
        %v2412 = vunpack.c.h.b16 %v592
        %v2413 = vunpack.c.l.b16 %v593
        %v2414 = vunpack.c.h.b16 %v593
        %v2415 = vunpack.c.l.b16 %v594
        %v2416 = vunpack.c.h.b16 %v594
        %v2417 = vunpack.c.l.b16 %v595
        %v2418 = vunpack.c.h.b16 %v595
        %v2419 = vunpack.c.l.b16 %v596
        %v2420 = vunpack.c.h.b16 %v596
        %v2421 = vunpack.c.l.b16 %v597
        %v2422 = vunpack.c.h.b16 %v597
        %v2423 = vunpack.c.l.b16 %v598
        %v2424 = vunpack.c.h.b16 %v598
        %v2425 = vunpack.c.l.b16 %v599
        %v2426 = vunpack.c.h.b16 %v599
        %v2427 = vunpack.c.l.b16 %v600
        %v2428 = vunpack.c.h.b16 %v600
        %v2429 = vunpack.c.l.b16 %v601
        %v2430 = vunpack.c.h.b16 %v601
        %v2431 = vunpack.c.l.b16 %v602
        %v2432 = vunpack.c.h.b16 %v602
        %v2433 = vunpack.c.l.b16 %v603
        %v2434 = vunpack.c.h.b16 %v603
        %v2435 = vunpack.c.l.b16 %v604
        %v2436 = vunpack.c.h.b16 %v604
        %v2437 = vunpack.c.l.b16 %v605
        %v2438 = vunpack.c.h.b16 %v605
        %v2439 = vunpack.c.l.b16 %v606
        %v2440 = vunpack.c.h.b16 %v606
        %v2441 = vunpack.c.l.b16 %v607
        %v2442 = vunpack.c.h.b16 %v607
        %v2443 = vunpack.c.l.b16 %v608
        %v2444 = vunpack.c.h.b16 %v608
        %v2445 = vunpack.c.l.b16 %v609
        %v2446 = vunpack.c.h.b16 %v609
        %v2447 = vunpack.c.l.b16 %v610
        %v2448 = vunpack.c.h.b16 %v610
        %v2449 = vunpack.c.l.b16 %v611
        %v2450 = vunpack.c.h.b16 %v611
        %v2451 = vunpack.c.l.b16 %v612
        %v2452 = vunpack.c.h.b16 %v612
        %v2453 = vunpack.c.l.b16 %v613
        %v2454 = vunpack.c.h.b16 %v613
        %v2455 = vunpack.c.l.b16 %v614
        %v2456 = vunpack.c.h.b16 %v614
        %v2457 = vunpack.c.l.b16 %v615
        %v2458 = vunpack.c.h.b16 %v615
        %v2459 = vunpack.c.l.b16 %v616
        %v2460 = vunpack.c.h.b16 %v616
        %v2461 = vunpack.c.l.b16 %v617
        %v2462 = vunpack.c.h.b16 %v617
        %v2463 = vunpack.c.l.b16 %v618
        %v2464 = vunpack.c.h.b16 %v618
        %v2465 = vunpack.c.l.b16 %v619
        %v2466 = vunpack.c.h.b16 %v619
        %v2467 = vunpack.c.l.b16 %v620
        %v2468 = vunpack.c.h.b16 %v620
        %v2469 = vunpack.c.l.b16 %v621
        %v2470 = vunpack.c.h.b16 %v621
        %v2471 = vunpack.c.l.b16 %v622
        %v2472 = vunpack.c.h.b16 %v622
        %v2473 = vunpack.c.l.b16 %v623
        %v2474 = vunpack.c.h.b16 %v623
        %v2475 = vunpack.c.l.b16 %v624
        %v2476 = vunpack.c.h.b16 %v624
        %v2477 = vunpack.c.l.b16 %v625
        %v2478 = vunpack.c.h.b16 %v625
        %v2479 = vunpack.c.l.b16 %v626
        %v2480 = vunpack.c.h.b16 %v626
        %v2481 = vunpack.c.l.b16 %v627
        %v2482 = vunpack.c.h.b16 %v627
        %v2483 = vunpack.c.l.b16 %v628
        %v2484 = vunpack.c.h.b16 %v628
        %v2485 = vunpack.c.l.b16 %v629
        %v2486 = vunpack.c.h.b16 %v629
        %v2487 = vunpack.c.l.b16 %v630
        %v2488 = vunpack.c.h.b16 %v630
        %v2489 = vunpack.c.l.b16 %v631
        %v2490 = vunpack.c.h.b16 %v631
        %v2491 = vunpack.c.l.b16 %v632
        %v2492 = vunpack.c.h.b16 %v632
        %v2493 = vunpack.c.l.b16 %v633
        %v2494 = vunpack.c.h.b16 %v633
        %v2495 = vunpack.c.l.b16 %v634
        %v2496 = vunpack.c.h.b16 %v634
        %v2497 = vunpack.c.l.b16 %v635
        %v2498 = vunpack.c.h.b16 %v635
        %v2499 = vunpack.c.l.b16 %v636
        %v2500 = vunpack.c.h.b16 %v636
        %v2501 = vunpack.c.l.b16 %v637
        %v2502 = vunpack.c.h.b16 %v637
        %v2503 = vunpack.c.l.b16 %v638
        %v2504 = vunpack.c.h.b16 %v638
        %v2505 = vunpack.c.l.b16 %v639
        %v2506 = vunpack.c.h.b16 %v639
        %v2507 = vunpack.c.l.b16 %v640
        %v2508 = vunpack.c.h.b16 %v640
        %v2509 = vunpack.c.l.b16 %v641
        %v2510 = vunpack.c.h.b16 %v641
        %v2511 = vunpack.c.l.b16 %v642
        %v2512 = vunpack.c.h.b16 %v642
        %v2513 = vunpack.c.l.b16 %v643
        %v2514 = vunpack.c.h.b16 %v643
        %v2515 = vunpack.c.l.b16 %v644
        %v2516 = vunpack.c.h.b16 %v644
        %v2517 = vunpack.c.l.b16 %v645
        %v2518 = vunpack.c.h.b16 %v645
        %v2519 = vunpack.c.l.b16 %v646
        %v2520 = vunpack.c.h.b16 %v646
        %v2521 = vunpack.c.l.b16 %v647
        %v2522 = vunpack.c.h.b16 %v647
        %v2523 = vunpack.c.l.b16 %v648
        %v2524 = vunpack.c.h.b16 %v648
        %v2525 = vunpack.c.l.b16 %v649
        %v2526 = vunpack.c.h.b16 %v649
        %v2527 = vunpack.c.l.b16 %v650
        %v2528 = vunpack.c.h.b16 %v650
        %v2529 = vunpack.c.l.b16 %v651
        %v2530 = vunpack.c.h.b16 %v651
        %v2531 = vunpack.c.l.b16 %v652
        %v2532 = vunpack.c.h.b16 %v652
        %v2533 = vunpack.c.l.b16 %v653
        %v2534 = vunpack.c.h.b16 %v653
        %v2535 = vunpack.c.l.b16 %v654
        %v2536 = vunpack.c.h.b16 %v654
        %v2537 = vunpack.c.l.b16 %v655
        %v2538 = vunpack.c.h.b16 %v655
        %v2539 = vunpack.c.l.b16 %v656
        %v2540 = vunpack.c.h.b16 %v656
        %v2541 = vunpack.c.l.b16 %v657
        %v2542 = vunpack.c.h.b16 %v657
        %v2543 = vunpack.c.l.b16 %v658
        %v2544 = vunpack.c.h.b16 %v658
        %v2545 = vunpack.c.l.b16 %v659
        %v2546 = vunpack.c.h.b16 %v659
        %v2547 = vunpack.c.l.b16 %v660
        %v2548 = vunpack.c.h.b16 %v660
        %v2549 = vunpack.c.l.b16 %v661
        %v2550 = vunpack.c.h.b16 %v661
        %v2551 = vunpack.c.l.b16 %v662
        %v2552 = vunpack.c.h.b16 %v662
        %v2553 = vunpack.c.l.b16 %v663
        %v2554 = vunpack.c.h.b16 %v663
        %v2555 = vunpack.c.l.b16 %v664
        %v2556 = vunpack.c.h.b16 %v664
        %v2557 = vunpack.c.l.b16 %v665
        %v2558 = vunpack.c.h.b16 %v665
        %v2559 = vunpack.c.l.b16 %v666
        %v2560 = vunpack.c.h.b16 %v666
        %v2561 = vunpack.c.l.b16 %v667
        %v2562 = vunpack.c.h.b16 %v667
        %v2563 = vunpack.c.l.b16 %v668
        %v2564 = vunpack.c.h.b16 %v668
        %v2565 = vunpack.c.l.b16 %v669
        %v2566 = vunpack.c.h.b16 %v669
        %v2567 = vunpack.c.l.b16 %v670
        %v2568 = vunpack.c.h.b16 %v670
        %v2569 = vunpack.c.l.b16 %v671
        %v2570 = vunpack.c.h.b16 %v671
        %v2571 = vunpack.c.l.b16 %v672
        %v2572 = vunpack.c.h.b16 %v672
        %v2573 = vunpack.c.l.b16 %v673
        %v2574 = vunpack.c.h.b16 %v673
        %v2575 = vunpack.c.l.b16 %v674
        %v2576 = vunpack.c.h.b16 %v674
        %v2577 = vunpack.c.l.b16 %v675
        %v2578 = vunpack.c.h.b16 %v675
        %v2579 = vunpack.c.l.b16 %v676
        %v2580 = vunpack.c.h.b16 %v676
        %v2581 = vunpack.c.l.b16 %v677
        %v2582 = vunpack.c.h.b16 %v677
        %v2583 = vunpack.c.l.b16 %v678
        %v2584 = vunpack.c.h.b16 %v678
        %v2585 = vunpack.c.l.b16 %v679
        %v2586 = vunpack.c.h.b16 %v679
        %v2587 = vunpack.c.l.b16 %v680
        %v2588 = vunpack.c.h.b16 %v680
        %v2589 = vunpack.c.l.b16 %v681
        %v2590 = vunpack.c.h.b16 %v681
        %v2591 = vunpack.c.l.b16 %v682
        %v2592 = vunpack.c.h.b16 %v682
        %v2593 = vunpack.c.l.b16 %v683
        %v2594 = vunpack.c.h.b16 %v683
        %v2595 = vunpack.c.l.b16 %v684
        %v2596 = vunpack.c.h.b16 %v684
        %v2597 = vunpack.c.l.b16 %v685
        %v2598 = vunpack.c.h.b16 %v685
        %v2599 = vunpack.c.l.b16 %v686
        %v2600 = vunpack.c.h.b16 %v686
        %v2601 = vunpack.c.l.b16 %v687
        %v2602 = vunpack.c.h.b16 %v687
        %v2603 = vunpack.c.l.b16 %v688
        %v2604 = vunpack.c.h.b16 %v688
        %v2605 = vunpack.c.l.b16 %v689
        %v2606 = vunpack.c.h.b16 %v689
        %v2607 = vunpack.c.l.b16 %v690
        %v2608 = vunpack.c.h.b16 %v690
        %v2609 = vunpack.c.l.b16 %v691
        %v2610 = vunpack.c.h.b16 %v691
        %v2611 = vunpack.c.l.b16 %v692
        %v2612 = vunpack.c.h.b16 %v692
        %v2613 = vunpack.c.l.b16 %v693
        %v2614 = vunpack.c.h.b16 %v693
        %v2615 = vunpack.c.l.b16 %v694
        %v2616 = vunpack.c.h.b16 %v694
        %v2617 = vunpack.c.l.b16 %v695
        %v2618 = vunpack.c.h.b16 %v695
        %v2619 = vunpack.c.l.b16 %v696
        %v2620 = vunpack.c.h.b16 %v696
        %v2621 = vunpack.c.l.b16 %v697
        %v2622 = vunpack.c.h.b16 %v697
        %v2623 = vunpack.c.l.b16 %v698
        %v2624 = vunpack.c.h.b16 %v698
        %v2625 = vunpack.c.l.b16 %v699
        %v2626 = vunpack.c.h.b16 %v699
        %v2627 = vunpack.c.l.b16 %v700
        %v2628 = vunpack.c.h.b16 %v700
        %v2629 = vunpack.c.l.b16 %v701
        %v2630 = vunpack.c.h.b16 %v701
        %v2631 = vunpack.c.l.b16 %v702
        %v2632 = vunpack.c.h.b16 %v702
        %v2633 = vunpack.c.l.b16 %v703
        %v2634 = vunpack.c.h.b16 %v703
        %v2635 = vunpack.c.l.b16 %v704
        %v2636 = vunpack.c.h.b16 %v704
        %v2637 = vunpack.c.l.b16 %v705
        %v2638 = vunpack.c.h.b16 %v705
        %v2639 = vunpack.c.l.b16 %v706
        %v2640 = vunpack.c.h.b16 %v706
        %v2641 = vunpack.c.l.b16 %v707
        %v2642 = vunpack.c.h.b16 %v707
        %v2643 = vunpack.c.l.b16 %v708
        %v2644 = vunpack.c.h.b16 %v708
        %v2645 = vunpack.c.l.b16 %v709
        %v2646 = vunpack.c.h.b16 %v709
        %v2647 = vunpack.c.l.b16 %v710
        %v2648 = vunpack.c.h.b16 %v710
        %v2649 = vunpack.c.l.b16 %v711
        %v2650 = vunpack.c.h.b16 %v711
        %v2651 = vunpack.c.l.b16 %v712
        %v2652 = vunpack.c.h.b16 %v712
        %v2653 = vunpack.c.l.b16 %v713
        %v2654 = vunpack.c.h.b16 %v713
        %v2655 = vunpack.c.l.b16 %v714
        %v2656 = vunpack.c.h.b16 %v714
        %v2657 = vunpack.c.l.b16 %v715
        %v2658 = vunpack.c.h.b16 %v715
        %v2659 = vunpack.c.l.b16 %v716
        %v2660 = vunpack.c.h.b16 %v716
        %v2661 = vunpack.c.l.b16 %v717
        %v2662 = vunpack.c.h.b16 %v717
        %v2663 = vunpack.c.l.b16 %v718
        %v2664 = vunpack.c.h.b16 %v718
        %v2665 = vunpack.c.l.b16 %v719
        %v2666 = vunpack.c.h.b16 %v719
        %v2667 = vunpack.c.l.b16 %v720
        %v2668 = vunpack.c.h.b16 %v720
        %v2669 = vunpack.c.l.b16 %v721
        %v2670 = vunpack.c.h.b16 %v721
        %v2671 = vunpack.c.l.b16 %v722
        %v2672 = vunpack.c.h.b16 %v722
        %v2673 = vunpack.c.l.b16 %v723
        %v2674 = vunpack.c.h.b16 %v723
        %v2675 = vunpack.c.l.b16 %v724
        %v2676 = vunpack.c.h.b16 %v724
        %v2677 = vunpack.c.l.b16 %v725
        %v2678 = vunpack.c.h.b16 %v725
        %v2679 = vunpack.c.l.b16 %v726
        %v2680 = vunpack.c.h.b16 %v726
        %v2681 = vunpack.c.l.b16 %v727
        %v2682 = vunpack.c.h.b16 %v727
        %v2683 = vunpack.c.l.b16 %v728
        %v2684 = vunpack.c.h.b16 %v728
        %v2685 = vunpack.c.l.b16 %v729
        %v2686 = vunpack.c.h.b16 %v729
        %v2687 = vunpack.c.l.b16 %v730
        %v2688 = vunpack.c.h.b16 %v730
        %v2689 = vunpack.c.l.b16 %v731
        %v2690 = vunpack.c.h.b16 %v731
        %v2691 = vunpack.c.l.b16 %v732
        %v2692 = vunpack.c.h.b16 %v732
        %v2693 = vunpack.c.l.b16 %v733
        %v2694 = vunpack.c.h.b16 %v733
        %v2695 = vunpack.c.l.b16 %v734
        %v2696 = vunpack.c.h.b16 %v734
        %v2697 = vunpack.c.l.b16 %v735
        %v2698 = vunpack.c.h.b16 %v735
        %v2699 = vunpack.c.l.b16 %v736
        %v2700 = vunpack.c.h.b16 %v736
        %v2701 = vunpack.c.l.b16 %v737
        %v2702 = vunpack.c.h.b16 %v737
        %v2703 = vunpack.c.l.b16 %v738
        %v2704 = vunpack.c.h.b16 %v738
        %v2705 = vunpack.c.l.b16 %v739
        %v2706 = vunpack.c.h.b16 %v739
        %v2707 = vunpack.c.l.b16 %v740
        %v2708 = vunpack.c.h.b16 %v740
        %v2709 = vunpack.c.l.b16 %v741
        %v2710 = vunpack.c.h.b16 %v741
        %v2711 = vunpack.c.l.b16 %v742
        %v2712 = vunpack.c.h.b16 %v742
        %v2713 = vunpack.c.l.b16 %v743
        %v2714 = vunpack.c.h.b16 %v743
        %v2715 = vunpack.c.l.b16 %v744
        %v2716 = vunpack.c.h.b16 %v744
        %v2717 = vunpack.c.l.b16 %v745
        %v2718 = vunpack.c.h.b16 %v745
        %v2719 = vunpack.c.l.b16 %v746
        %v2720 = vunpack.c.h.b16 %v746
        %v2721 = vunpack.c.l.b16 %v747
        %v2722 = vunpack.c.h.b16 %v747
        %v2723 = vunpack.c.l.b16 %v748
        %v2724 = vunpack.c.h.b16 %v748
        %v2725 = vunpack.c.l.b16 %v749
        %v2726 = vunpack.c.h.b16 %v749
        %v2727 = vunpack.c.l.b16 %v750
        %v2728 = vunpack.c.h.b16 %v750
        %v2729 = vunpack.c.l.b16 %v751
        %v2730 = vunpack.c.h.b16 %v751
        %v2731 = vunpack.c.l.b16 %v752
        %v2732 = vunpack.c.h.b16 %v752
        %v2733 = vunpack.c.l.b16 %v753
        %v2734 = vunpack.c.h.b16 %v753
        %v2735 = vunpack.c.l.b16 %v754
        %v2736 = vunpack.c.h.b16 %v754
        %v2737 = vunpack.c.l.b16 %v755
        %v2738 = vunpack.c.h.b16 %v755
        %v2739 = vunpack.c.l.b16 %v756
        %v2740 = vunpack.c.h.b16 %v756
        %v2741 = vunpack.c.l.b16 %v757
        %v2742 = vunpack.c.h.b16 %v757
        %v2743 = vunpack.c.l.b16 %v758
        %v2744 = vunpack.c.h.b16 %v758
        %v2745 = vunpack.c.l.b16 %v759
        %v2746 = vunpack.c.h.b16 %v759
        %v2747 = vunpack.c.l.b16 %v760
        %v2748 = vunpack.c.h.b16 %v760
        %v2749 = vunpack.c.l.b16 %v761
        %v2750 = vunpack.c.h.b16 %v761
        %v2751 = vunpack.c.l.b16 %v762
        %v2752 = vunpack.c.h.b16 %v762
        %v2753 = vunpack.c.l.b16 %v763
        %v2754 = vunpack.c.h.b16 %v763
        %v2755 = vunpack.c.l.b16 %v764
        %v2756 = vunpack.c.h.b16 %v764
        %v2757 = vunpack.c.l.b16 %v765
        %v2758 = vunpack.c.h.b16 %v765
        %v2759 = vunpack.c.l.b16 %v766
        %v2760 = vunpack.c.h.b16 %v766
        %v2761 = vunpack.c.l.b16 %v767
        %v2762 = vunpack.c.h.b16 %v767
        %v2763 = vunpack.c.l.b16 %v768
        %v2764 = vunpack.c.h.b16 %v768
        %v2765 = vunpack.c.l.b16 %v769
        %v2766 = vunpack.c.h.b16 %v769
        %v2767 = vunpack.c.l.b16 %v770
        %v2768 = vunpack.c.h.b16 %v770
        %v2769 = vunpack.c.l.b16 %v771
        %v2770 = vunpack.c.h.b16 %v771
        %v2771 = vunpack.c.l.b16 %v772
        %v2772 = vunpack.c.h.b16 %v772
        %v2773 = vunpack.c.l.b16 %v773
        %v2774 = vunpack.c.h.b16 %v773
        %v2775 = vunpack.c.l.b16 %v774
        %v2776 = vunpack.c.h.b16 %v774
        %v2777 = vunpack.c.l.b16 %v775
        %v2778 = vunpack.c.h.b16 %v775
        %v2779 = vunpack.c.l.b16 %v776
        %v2780 = vunpack.c.h.b16 %v776
        %v2781 = vunpack.c.l.b16 %v777
        %v2782 = vunpack.c.h.b16 %v777
        %v2783 = vunpack.c.l.b16 %v778
        %v2784 = vunpack.c.h.b16 %v778
        %v2785 = vunpack.c.l.b16 %v779
        %v2786 = vunpack.c.h.b16 %v779
        %v2787 = vunpack.c.l.b16 %v780
        %v2788 = vunpack.c.h.b16 %v780
        %v2789 = vunpack.c.l.b16 %v781
        %v2790 = vunpack.c.h.b16 %v781
        %v2791 = vunpack.c.l.b16 %v782
        %v2792 = vunpack.c.h.b16 %v782
        %v2793 = vunpack.c.l.b16 %v783
        %v2794 = vunpack.c.h.b16 %v783
        %v2795 = vunpack.c.l.b16 %v784
        %v2796 = vunpack.c.h.b16 %v784
        %v2797 = vunpack.c.l.b16 %v785
        %v2798 = vunpack.c.h.b16 %v785
        %v2799 = vunpack.c.l.b16 %v786
        %v2800 = vunpack.c.h.b16 %v786
        %v2801 = vunpack.c.l.b16 %v787
        %v2802 = vunpack.c.h.b16 %v787
        %v2803 = vunpack.c.l.b16 %v788
        %v2804 = vunpack.c.h.b16 %v788
        %v2805 = vunpack.c.l.b16 %v789
        %v2806 = vunpack.c.h.b16 %v789
        %v2807 = vunpack.c.l.b16 %v790
        %v2808 = vunpack.c.h.b16 %v790
        %v2809 = vunpack.c.l.b16 %v791
        %v2810 = vunpack.c.h.b16 %v791
        %v2811 = vunpack.c.l.b16 %v792
        %v2812 = vunpack.c.h.b16 %v792
        %v2813 = vunpack.c.l.b16 %v793
        %v2814 = vunpack.c.h.b16 %v793
        %v2815 = vunpack.c.l.b16 %v794
        %v2816 = vunpack.c.h.b16 %v794
        %v2817 = vunpack.c.l.b16 %v795
        %v2818 = vunpack.c.h.b16 %v795
        %v2819 = vunpack.c.l.b16 %v796
        %v2820 = vunpack.c.h.b16 %v796
        %v2821 = vunpack.c.l.b16 %v797
        %v2822 = vunpack.c.h.b16 %v797
        %v2823 = vunpack.c.l.b16 %v798
        %v2824 = vunpack.c.h.b16 %v798
        %v2825 = vunpack.c.l.b16 %v799
        %v2826 = vunpack.c.h.b16 %v799
        %v2827 = vunpack.c.l.b16 %v800
        %v2828 = vunpack.c.h.b16 %v800
        %v2829 = vunpack.c.l.b16 %v801
        %v2830 = vunpack.c.h.b16 %v801
        %v2831 = vunpack.c.l.b16 %v802
        %v2832 = vunpack.c.h.b16 %v802
        %v2833 = vunpack.c.l.b16 %v803
        %v2834 = vunpack.c.h.b16 %v803
        %v2835 = vunpack.c.l.b16 %v804
        %v2836 = vunpack.c.h.b16 %v804
        %v2837 = vunpack.c.l.b16 %v805
        %v2838 = vunpack.c.h.b16 %v805
        %v2839 = vunpack.c.l.b16 %v806
        %v2840 = vunpack.c.h.b16 %v806
        %v2841 = vunpack.c.l.b16 %v807
        %v2842 = vunpack.c.h.b16 %v807
        %v2843 = vunpack.c.l.b16 %v808
        %v2844 = vunpack.c.h.b16 %v808
        %v2845 = vunpack.c.l.b16 %v809
        %v2846 = vunpack.c.h.b16 %v809
        %v2847 = vunpack.c.l.b16 %v810
        %v2848 = vunpack.c.h.b16 %v810
        %v2849 = vunpack.c.l.b16 %v811
        %v2850 = vunpack.c.h.b16 %v811
        %v2851 = vunpack.c.l.b16 %v812
        %v2852 = vunpack.c.h.b16 %v812
        %v2853 = vunpack.c.l.b16 %v813
        %v2854 = vunpack.c.h.b16 %v813
        %v2855 = vunpack.c.l.b16 %v814
        %v2856 = vunpack.c.h.b16 %v814
        %v2857 = vunpack.c.l.b16 %v815
        %v2858 = vunpack.c.h.b16 %v815
        %v2859 = vunpack.c.l.b16 %v816
        %v2860 = vunpack.c.h.b16 %v816
        %v2861 = vunpack.c.l.b16 %v817
        %v2862 = vunpack.c.h.b16 %v817
        %v2863 = vunpack.c.l.b16 %v818
        %v2864 = vunpack.c.h.b16 %v818
        %v2865 = vunpack.c.l.b16 %v819
        %v2866 = vunpack.c.h.b16 %v819
        %v2867 = vunpack.c.l.b16 %v820
        %v2868 = vunpack.c.h.b16 %v820
        %v2869 = vunpack.c.l.b16 %v821
        %v2870 = vunpack.c.h.b16 %v821
        %v2871 = vunpack.c.l.b16 %v822
        %v2872 = vunpack.c.h.b16 %v822
        %v2873 = vunpack.c.l.b16 %v823
        %v2874 = vunpack.c.h.b16 %v823
        %v2875 = vunpack.c.l.b16 %v824
        %v2876 = vunpack.c.h.b16 %v824
        %v2877 = vunpack.c.l.b16 %v825
        %v2878 = vunpack.c.h.b16 %v825
        %v2879 = vunpack.c.l.b16 %v826
        %v2880 = vunpack.c.h.b16 %v826
        %v2881 = vunpack.c.l.b16 %v827
        %v2882 = vunpack.c.h.b16 %v827
        %v2883 = vunpack.c.l.b16 %v828
        %v2884 = vunpack.c.h.b16 %v828
        %v2885 = vunpack.c.l.b16 %v829
        %v2886 = vunpack.c.h.b16 %v829
        %v2887 = vunpack.c.l.b16 %v830
        %v2888 = vunpack.c.h.b16 %v830
        %v2889 = vunpack.c.l.b16 %v831
        %v2890 = vunpack.c.h.b16 %v831
        %v2891 = vunpack.c.l.b16 %v832
        %v2892 = vunpack.c.h.b16 %v832
        %v2893 = vunpack.c.l.b16 %v833
        %v2894 = vunpack.c.h.b16 %v833
        %v2895 = vunpack.c.l.b16 %v834
        %v2896 = vunpack.c.h.b16 %v834
        %v2897 = vunpack.c.l.b16 %v835
        %v2898 = vunpack.c.h.b16 %v835
        %v2899 = vunpack.c.l.b16 %v836
        %v2900 = vunpack.c.h.b16 %v836
        %v2901 = vunpack.c.l.b16 %v837
        %v2902 = vunpack.c.h.b16 %v837
        %v2903 = vunpack.c.l.b16 %v838
        %v2904 = vunpack.c.h.b16 %v838
        %v2905 = vunpack.c.l.b16 %v839
        %v2906 = vunpack.c.h.b16 %v839
        %v2907 = vunpack.c.l.b16 %v840
        %v2908 = vunpack.c.h.b16 %v840
        %v2909 = vunpack.c.l.b16 %v841
        %v2910 = vunpack.c.h.b16 %v841
        %v2911 = vunpack.c.l.b16 %v842
        %v2912 = vunpack.c.h.b16 %v842
        %v2913 = vunpack.c.l.b16 %v843
        %v2914 = vunpack.c.h.b16 %v843
        %v2915 = vunpack.c.l.b16 %v844
        %v2916 = vunpack.c.h.b16 %v844
        %v2917 = vunpack.c.l.b16 %v845
        %v2918 = vunpack.c.h.b16 %v845
        %v2919 = vunpack.c.l.b16 %v846
        %v2920 = vunpack.c.h.b16 %v846
        %v2921 = vunpack.c.l.b16 %v847
        %v2922 = vunpack.c.h.b16 %v847
        %v2923 = vunpack.c.l.b16 %v848
        %v2924 = vunpack.c.h.b16 %v848
        %v2925 = vunpack.c.l.b16 %v849
        %v2926 = vunpack.c.h.b16 %v849
        %v2927 = vunpack.c.l.b16 %v850
        %v2928 = vunpack.c.h.b16 %v850
        %v2929 = vunpack.c.l.b16 %v851
        %v2930 = vunpack.c.h.b16 %v851
        %v2931 = vunpack.c.l.b16 %v852
        %v2932 = vunpack.c.h.b16 %v852
        %v2933 = vunpack.c.l.b16 %v853
        %v2934 = vunpack.c.h.b16 %v853
        %v2935 = vunpack.c.l.b16 %v854
        %v2936 = vunpack.c.h.b16 %v854
        %v2937 = vunpack.c.l.b16 %v855
        %v2938 = vunpack.c.h.b16 %v855
        %v2939 = vunpack.c.l.b16 %v856
        %v2940 = vunpack.c.h.b16 %v856
        %v2941 = vunpack.c.l.b16 %v857
        %v2942 = vunpack.c.h.b16 %v857
        %v2943 = vunpack.c.l.b16 %v858
        %v2944 = vunpack.c.h.b16 %v858
        %v2945 = vunpack.c.l.b16 %v859
        %v2946 = vunpack.c.h.b16 %v859
        %v2947 = vunpack.c.l.b16 %v860
        %v2948 = vunpack.c.h.b16 %v860
        %v2949 = vunpack.c.l.b16 %v861
        %v2950 = vunpack.c.h.b16 %v861
        %v2951 = vunpack.c.l.b16 %v862
        %v2952 = vunpack.c.h.b16 %v862
        %v2953 = vunpack.c.l.b16 %v863
        %v2954 = vunpack.c.h.b16 %v863
        %v2955 = vunpack.c.l.b16 %v864
        %v2956 = vunpack.c.h.b16 %v864
        %v2957 = vunpack.c.l.b16 %v865
        %v2958 = vunpack.c.h.b16 %v865
        %v2959 = vunpack.c.l.b16 %v866
        %v2960 = vunpack.c.h.b16 %v866
        %v2961 = vunpack.c.l.b16 %v867
        %v2962 = vunpack.c.h.b16 %v867
        %v2963 = vunpack.c.l.b16 %v868
        %v2964 = vunpack.c.h.b16 %v868
        %v2965 = vunpack.c.l.b16 %v869
        %v2966 = vunpack.c.h.b16 %v869
        %v2967 = vunpack.c.l.b16 %v870
        %v2968 = vunpack.c.h.b16 %v870
        %v2969 = vunpack.c.l.b16 %v871
        %v2970 = vunpack.c.h.b16 %v871
        %v2971 = vunpack.c.l.b16 %v872
        %v2972 = vunpack.c.h.b16 %v872
        %v2973 = vunpack.c.l.b16 %v873
        %v2974 = vunpack.c.h.b16 %v873
        %v2975 = vunpack.c.l.b16 %v874
        %v2976 = vunpack.c.h.b16 %v874
        %v2977 = vunpack.c.l.b16 %v875
        %v2978 = vunpack.c.h.b16 %v875
        %v2979 = vunpack.c.l.b16 %v876
        %v2980 = vunpack.c.h.b16 %v876
        %v2981 = vunpack.c.l.b16 %v877
        %v2982 = vunpack.c.h.b16 %v877
        %v2983 = vunpack.c.l.b16 %v878
        %v2984 = vunpack.c.h.b16 %v878
        %v2985 = vunpack.c.l.b16 %v879
        %v2986 = vunpack.c.h.b16 %v879
        %v2987 = vunpack.c.l.b16 %v880
        %v2988 = vunpack.c.h.b16 %v880
        %v2989 = vunpack.c.l.b16 %v881
        %v2990 = vunpack.c.h.b16 %v881
        %v2991 = vunpack.c.l.b16 %v882
        %v2992 = vunpack.c.h.b16 %v882
        %v2993 = vunpack.c.l.b16 %v883
        %v2994 = vunpack.c.h.b16 %v883
        %v2995 = vunpack.c.l.b16 %v884
        %v2996 = vunpack.c.h.b16 %v884
        %v2997 = vunpack.c.l.b16 %v885
        %v2998 = vunpack.c.h.b16 %v885
        %v2999 = vunpack.c.l.b16 %v886
        %v3000 = vunpack.c.h.b16 %v886
        %v3001 = vunpack.c.l.b16 %v887
        %v3002 = vunpack.c.h.b16 %v887
        %v3003 = vunpack.c.l.b16 %v888
        %v3004 = vunpack.c.h.b16 %v888
        %v3005 = vunpack.c.l.b16 %v889
        %v3006 = vunpack.c.h.b16 %v889
        %v3007 = vunpack.c.l.b16 %v890
        %v3008 = vunpack.c.h.b16 %v890
        %v3009 = vunpack.c.l.b16 %v891
        %v3010 = vunpack.c.h.b16 %v891
        %v3011 = vunpack.c.l.b16 %v892
        %v3012 = vunpack.c.h.b16 %v892
        %v3013 = vunpack.c.l.b16 %v893
        %v3014 = vunpack.c.h.b16 %v893
        %v3015 = vunpack.c.l.b16 %v894
        %v3016 = vunpack.c.h.b16 %v894
        %v3017 = vunpack.c.l.b16 %v895
        %v3018 = vunpack.c.h.b16 %v895
        %v3019 = vunpack.c.l.b16 %v896
        %v3020 = vunpack.c.h.b16 %v896
        %v3021 = vunpack.c.l.b16 %v897
        %v3022 = vunpack.c.h.b16 %v897
        %v3023 = vunpack.c.l.b16 %v898
        %v3024 = vunpack.c.h.b16 %v898
        %v3025 = vunpack.c.l.b16 %v899
        %v3026 = vunpack.c.h.b16 %v899
        %v3027 = vunpack.c.l.b16 %v900
        %v3028 = vunpack.c.h.b16 %v900
        %v3029 = vunpack.c.l.b16 %v901
        %v3030 = vunpack.c.h.b16 %v901
        %v3031 = vunpack.c.l.b16 %v902
        %v3032 = vunpack.c.h.b16 %v902
        %v3033 = vunpack.c.l.b16 %v903
        %v3034 = vunpack.c.h.b16 %v903
        %v3035 = vunpack.c.l.b16 %v904
        %v3036 = vunpack.c.h.b16 %v904
        %v3037 = vunpack.c.l.b16 %v905
        %v3038 = vunpack.c.h.b16 %v905
        %v3039 = vunpack.c.l.b16 %v906
        %v3040 = vunpack.c.h.b16 %v906
        %v3041 = vunpack.c.l.b16 %v907
        %v3042 = vunpack.c.h.b16 %v907
        %v3043 = vunpack.c.l.b16 %v908
        %v3044 = vunpack.c.h.b16 %v908
        %v3045 = vunpack.c.l.b16 %v909
        %v3046 = vunpack.c.h.b16 %v909
        %v3047 = vunpack.c.l.b16 %v910
        %v3048 = vunpack.c.h.b16 %v910
        %v3049 = vunpack.c.l.b16 %v911
        %v3050 = vunpack.c.h.b16 %v911
        %v3051 = vunpack.c.l.b16 %v912
        %v3052 = vunpack.c.h.b16 %v912
        %v3053 = vunpack.c.l.b16 %v913
        %v3054 = vunpack.c.h.b16 %v913
        %v3055 = vunpack.c.l.b16 %v914
        %v3056 = vunpack.c.h.b16 %v914
        %v3057 = vunpack.c.l.b16 %v915
        %v3058 = vunpack.c.h.b16 %v915
        %v3059 = vunpack.c.l.b16 %v916
        %v3060 = vunpack.c.h.b16 %v916
        %v3061 = vunpack.c.l.b16 %v917
        %v3062 = vunpack.c.h.b16 %v917
        %v3063 = vunpack.c.l.b16 %v918
        %v3064 = vunpack.c.h.b16 %v918
        %v3065 = vunpack.c.l.b16 %v919
        %v3066 = vunpack.c.h.b16 %v919
        %v3067 = vunpack.c.l.b16 %v920
        %v3068 = vunpack.c.h.b16 %v920
        %v3069 = vunpack.c.l.b16 %v921
        %v3070 = vunpack.c.h.b16 %v921
        %v3071 = vunpack.c.l.b16 %v922
        %v3072 = vunpack.c.h.b16 %v922
        %v3073 = vunpack.c.l.b16 %v923
        %v3074 = vunpack.c.h.b16 %v923
        %v3075 = vunpack.c.l.b16 %v924
        %v3076 = vunpack.c.h.b16 %v924
        %v3077 = vunpack.c.l.b16 %v925
        %v3078 = vunpack.c.h.b16 %v925
        %v3079 = vunpack.c.l.b16 %v926
        %v3080 = vunpack.c.h.b16 %v926
        %v3081 = vunpack.c.l.b16 %v927
        %v3082 = vunpack.c.h.b16 %v927
        %v3083 = vunpack.c.l.b16 %v928
        %v3084 = vunpack.c.h.b16 %v928
        %v3085 = vunpack.c.l.b16 %v929
        %v3086 = vunpack.c.h.b16 %v929
        %v3087 = vunpack.c.l.b16 %v930
        %v3088 = vunpack.c.h.b16 %v930
        %v3089 = vunpack.c.l.b16 %v931
        %v3090 = vunpack.c.h.b16 %v931
        %v3091 = vunpack.c.l.b16 %v932
        %v3092 = vunpack.c.h.b16 %v932
        %v3093 = vunpack.c.l.b16 %v933
        %v3094 = vunpack.c.h.b16 %v933
        %v3095 = vunpack.c.l.b16 %v934
        %v3096 = vunpack.c.h.b16 %v934
        %v3097 = vunpack.c.l.b16 %v935
        %v3098 = vunpack.c.h.b16 %v935
        %v3099 = vunpack.c.l.b16 %v936
        %v3100 = vunpack.c.h.b16 %v936
        %v3101 = vunpack.c.l.b16 %v937
        %v3102 = vunpack.c.h.b16 %v937
        %v3103 = vunpack.c.l.b16 %v938
        %v3104 = vunpack.c.h.b16 %v938
        %v3105 = vunpack.c.l.b16 %v939
        %v3106 = vunpack.c.h.b16 %v939
        %v3107 = vunpack.c.l.b16 %v940
        %v3108 = vunpack.c.h.b16 %v940
        %v3109 = vunpack.c.l.b16 %v941
        %v3110 = vunpack.c.h.b16 %v941
        %v3111 = vunpack.c.l.b16 %v942
        %v3112 = vunpack.c.h.b16 %v942
        %v3113 = vunpack.c.l.b16 %v943
        %v3114 = vunpack.c.h.b16 %v943
        %v3115 = vunpack.c.l.b16 %v944
        %v3116 = vunpack.c.h.b16 %v944
        %v3117 = vunpack.c.l.b16 %v945
        %v3118 = vunpack.c.h.b16 %v945
        %v3119 = vunpack.c.l.b16 %v946
        %v3120 = vunpack.c.h.b16 %v946
        %v3121 = vunpack.c.l.b16 %v947
        %v3122 = vunpack.c.h.b16 %v947
        %v3123 = vunpack.c.l.b16 %v948
        %v3124 = vunpack.c.h.b16 %v948
        %v3125 = vunpack.c.l.b16 %v949
        %v3126 = vunpack.c.h.b16 %v949
        %v3127 = vunpack.c.l.b16 %v950
        %v3128 = vunpack.c.h.b16 %v950
        %v3129 = vunpack.c.l.b16 %v951
        %v3130 = vunpack.c.h.b16 %v951
        %v3131 = vunpack.c.l.b16 %v952
        %v3132 = vunpack.c.h.b16 %v952
        %v3133 = vunpack.c.l.b16 %v953
        %v3134 = vunpack.c.h.b16 %v953
        %v3135 = vunpack.c.l.b16 %v954
        %v3136 = vunpack.c.h.b16 %v954
        %v3137 = vunpack.c.l.b16 %v955
        %v3138 = vunpack.c.h.b16 %v955
        %v3139 = vunpack.c.l.b16 %v956
        %v3140 = vunpack.c.h.b16 %v956
        %v3141 = vunpack.c.l.b16 %v957
        %v3142 = vunpack.c.h.b16 %v957
        %v3143 = vunpack.c.l.b16 %v958
        %v3144 = vunpack.c.h.b16 %v958
        %v3145 = vunpack.c.l.b16 %v959
        %v3146 = vunpack.c.h.b16 %v959
        %v3147 = vunpack.c.l.b16 %v960
        %v3148 = vunpack.c.h.b16 %v960
        %v3149 = vunpack.c.l.b16 %v961
        %v3150 = vunpack.c.h.b16 %v961
        %v3151 = vunpack.c.l.b16 %v962
        %v3152 = vunpack.c.h.b16 %v962
        %v3153 = vunpack.c.l.b16 %v963
        %v3154 = vunpack.c.h.b16 %v963
        %v3155 = vunpack.c.l.b16 %v964
        %v3156 = vunpack.c.h.b16 %v964
        %v3157 = vunpack.c.l.b16 %v965
        %v3158 = vunpack.c.h.b16 %v965
        %v3159 = vunpack.c.l.b16 %v966
        %v3160 = vunpack.c.h.b16 %v966
        %v3161 = vunpack.c.l.b16 %v967
        %v3162 = vunpack.c.h.b16 %v967
        %v3163 = vunpack.c.l.b16 %v968
        %v3164 = vunpack.c.h.b16 %v968
        %v3165 = vunpack.c.l.b16 %v969
        %v3166 = vunpack.c.h.b16 %v969
        %v3167 = vunpack.c.l.b16 %v970
        %v3168 = vunpack.c.h.b16 %v970
        %v3169 = vunpack.c.l.b16 %v971
        %v3170 = vunpack.c.h.b16 %v971
        %v3171 = vunpack.c.l.b16 %v972
        %v3172 = vunpack.c.h.b16 %v972
        %v3173 = vunpack.c.l.b16 %v973
        %v3174 = vunpack.c.h.b16 %v973
        %v3175 = vunpack.c.l.b16 %v974
        %v3176 = vunpack.c.h.b16 %v974
        %v3177 = vunpack.c.l.b16 %v975
        %v3178 = vunpack.c.h.b16 %v975
        %v3179 = vunpack.c.l.b16 %v976
        %v3180 = vunpack.c.h.b16 %v976
        %v3181 = vunpack.c.l.b16 %v977
        %v3182 = vunpack.c.h.b16 %v977
        %v3183 = vunpack.c.l.b16 %v978
        %v3184 = vunpack.c.h.b16 %v978
        %v3185 = vunpack.c.l.b16 %v979
        %v3186 = vunpack.c.h.b16 %v979
        %v3187 = vunpack.c.l.b16 %v980
        %v3188 = vunpack.c.h.b16 %v980
        %v3189 = vunpack.c.l.b16 %v981
        %v3190 = vunpack.c.h.b16 %v981
        %v3191 = vunpack.c.l.b16 %v982
        %v3192 = vunpack.c.h.b16 %v982
        %v3193 = vunpack.c.l.b16 %v983
        %v3194 = vunpack.c.h.b16 %v983
        %v3195 = vunpack.c.l.b16 %v984
        %v3196 = vunpack.c.h.b16 %v984
        %v3197 = vunpack.c.l.b16 %v985
        %v3198 = vunpack.c.h.b16 %v985
        %v3199 = vunpack.c.l.b16 %v986
        %v3200 = vunpack.c.h.b16 %v986
        %v3201 = vunpack.c.l.b16 %v987
        %v3202 = vunpack.c.h.b16 %v987
        %v3203 = vunpack.c.l.b16 %v988
        %v3204 = vunpack.c.h.b16 %v988
        %v3205 = vunpack.c.l.b16 %v989
        %v3206 = vunpack.c.h.b16 %v989
        %v3207 = vunpack.c.l.b16 %v990
        %v3208 = vunpack.c.h.b16 %v990
        %v3209 = vunpack.c.l.b16 %v991
        %v3210 = vunpack.c.h.b16 %v991
        %v3211 = vunpack.c.l.b16 %v992
        %v3212 = vunpack.c.h.b16 %v992
        %v3213 = vunpack.c.l.b16 %v993
        %v3214 = vunpack.c.h.b16 %v993
        %v3215 = vunpack.c.l.b16 %v994
        %v3216 = vunpack.c.h.b16 %v994
        %v3217 = vunpack.c.l.b16 %v995
        %v3218 = vunpack.c.h.b16 %v995
        %v3219 = vunpack.c.l.b16 %v996
        %v3220 = vunpack.c.h.b16 %v996
        %v3221 = vunpack.c.l.b16 %v997
        %v3222 = vunpack.c.h.b16 %v997
        %v3223 = vunpack.c.l.b16 %v998
        %v3224 = vunpack.c.h.b16 %v998
        %v3225 = vunpack.c.l.b16 %v999
        %v3226 = vunpack.c.h.b16 %v999
        %v3227 = vunpack.c.l.b16 %v1000
        %v3228 = vunpack.c.h.b16 %v1000
        %v3229 = vunpack.c.l.b16 %v1001
        %v3230 = vunpack.c.h.b16 %v1001
        %v3231 = vunpack.c.l.b16 %v1002
        %v3232 = vunpack.c.h.b16 %v1002
        %v3233 = vunpack.c.l.b16 %v1003
        %v3234 = vunpack.c.h.b16 %v1003
        %v3235 = vunpack.c.l.b16 %v1004
        %v3236 = vunpack.c.h.b16 %v1004
        %v3237 = vunpack.c.l.b16 %v1005
        %v3238 = vunpack.c.h.b16 %v1005
        %v3239 = vunpack.c.l.b16 %v1006
        %v3240 = vunpack.c.h.b16 %v1006
        %v3241 = vunpack.c.l.b16 %v1007
        %v3242 = vunpack.c.h.b16 %v1007
        %v3243 = vunpack.c.l.b16 %v1008
        %v3244 = vunpack.c.h.b16 %v1008
        %v3245 = vunpack.c.l.b16 %v1009
        %v3246 = vunpack.c.h.b16 %v1009
        %v3247 = vunpack.c.l.b16 %v1010
        %v3248 = vunpack.c.h.b16 %v1010
        %v3249 = vunpack.c.l.b16 %v1011
        %v3250 = vunpack.c.h.b16 %v1011
        %v3251 = vunpack.c.l.b16 %v1012
        %v3252 = vunpack.c.h.b16 %v1012
        %v3253 = vunpack.c.l.b16 %v1013
        %v3254 = vunpack.c.h.b16 %v1013
        %v3255 = vunpack.c.l.b16 %v1014
        %v3256 = vunpack.c.h.b16 %v1014
        %v3257 = vunpack.c.l.b16 %v1015
        %v3258 = vunpack.c.h.b16 %v1015
        %v3259 = vunpack.c.l.b16 %v1016
        %v3260 = vunpack.c.h.b16 %v1016
        %v3261 = vunpack.c.l.b16 %v1017
        %v3262 = vunpack.c.h.b16 %v1017
        %v3263 = vunpack.c.l.b16 %v1018
        %v3264 = vunpack.c.h.b16 %v1018
        %v3265 = vunpack.c.l.b16 %v1019
        %v3266 = vunpack.c.h.b16 %v1019
        %v3267 = vunpack.c.l.b16 %v1020
        %v3268 = vunpack.c.h.b16 %v1020
        %v3269 = vunpack.c.l.b16 %v1021
        %v3270 = vunpack.c.h.b16 %v1021
        %v3271 = vunpack.c.l.b16 %v1022
        %v3272 = vunpack.c.h.b16 %v1022
        %v3273 = vunpack.c.l.b16 %v1023
        %v3274 = vunpack.c.h.b16 %v1023
        %v3275 = vunpack.c.l.b16 %v1024
        %v3276 = vunpack.c.h.b16 %v1024
        %v3277 = vunpack.c.l.b16 %v1025
        %v3278 = vunpack.c.h.b16 %v1025
        %v3279 = vunpack.c.l.b16 %v1026
        %v3280 = vunpack.c.h.b16 %v1026
        %v3281 = vunpack.c.l.b16 %v1027
        %v3282 = vunpack.c.h.b16 %v1027
        %v3283 = vunpack.c.l.b16 %v1028
        %v3284 = vunpack.c.h.b16 %v1028
        %v3285 = vunpack.c.l.b16 %v1029
        %v3286 = vunpack.c.h.b16 %v1029
        %v3287 = vunpack.c.l.b16 %v1030
        %v3288 = vunpack.c.h.b16 %v1030
        %v3289 = vunpack.c.l.b16 %v1031
        %v3290 = vunpack.c.h.b16 %v1031
        %v3291 = vunpack.c.l.b16 %v1032
        %v3292 = vunpack.c.h.b16 %v1032
        %v3293 = vunpack.c.l.b16 %v1033
        %v3294 = vunpack.c.h.b16 %v1033
        %v3295 = vunpack.c.l.b16 %v1034
        %v3296 = vunpack.c.h.b16 %v1034
        %v3297 = vunpack.c.l.b16 %v1035
        %v3298 = vunpack.c.h.b16 %v1035
        %v3299 = vunpack.c.l.b16 %v1036
        %v3300 = vunpack.c.h.b16 %v1036
        %v3301 = vunpack.c.l.b16 %v1037
        %v3302 = vunpack.c.h.b16 %v1037
        %v3303 = vunpack.c.l.b16 %v1038
        %v3304 = vunpack.c.h.b16 %v1038
        %v3305 = vunpack.c.l.b16 %v1039
        %v3306 = vunpack.c.h.b16 %v1039
        %v3307 = vunpack.c.l.b16 %v1040
        %v3308 = vunpack.c.h.b16 %v1040
        %v3309 = vunpack.c.l.b16 %v1041
        %v3310 = vunpack.c.h.b16 %v1041
        %v3311 = vunpack.c.l.b16 %v1042
        %v3312 = vunpack.c.h.b16 %v1042
        %v3313 = vunpack.c.l.b16 %v1043
        %v3314 = vunpack.c.h.b16 %v1043
        %v3315 = vunpack.c.l.b16 %v1044
        %v3316 = vunpack.c.h.b16 %v1044
        %v3317 = vunpack.c.l.b16 %v1045
        %v3318 = vunpack.c.h.b16 %v1045
        %v3319 = vunpack.c.l.b16 %v1046
        %v3320 = vunpack.c.h.b16 %v1046
        %v3321 = vunpack.c.l.b16 %v1047
        %v3322 = vunpack.c.h.b16 %v1047
        %v3323 = vunpack.c.l.b16 %v1048
        %v3324 = vunpack.c.h.b16 %v1048
        %v3325 = vunpack.c.l.b16 %v1049
        %v3326 = vunpack.c.h.b16 %v1049
        %v3327 = vunpack.c.l.b16 %v1050
        %v3328 = vunpack.c.h.b16 %v1050
        %v3329 = vunpack.c.l.b16 %v1051
        %v3330 = vunpack.c.h.b16 %v1051
        %v3331 = vunpack.c.l.b16 %v1052
        %v3332 = vunpack.c.h.b16 %v1052
        %v3333 = vunpack.c.l.b16 %v1053
        %v3334 = vunpack.c.h.b16 %v1053
        %v3335 = vunpack.c.l.b16 %v1054
        %v3336 = vunpack.c.h.b16 %v1054
        %v3337 = vunpack.c.l.b16 %v1055
        %v3338 = vunpack.c.h.b16 %v1055
        %v3339 = vunpack.c.l.b16 %v1056
        %v3340 = vunpack.c.h.b16 %v1056
        %v3341 = vunpack.c.l.b16 %v1057
        %v3342 = vunpack.c.h.b16 %v1057
        %v3343 = vunpack.c.l.b16 %v1058
        %v3344 = vunpack.c.h.b16 %v1058
        %v3345 = vunpack.c.l.b16 %v1059
        %v3346 = vunpack.c.h.b16 %v1059
        %v3347 = vunpack.c.l.b16 %v1060
        %v3348 = vunpack.c.h.b16 %v1060
        %v3349 = vunpack.c.l.b16 %v1061
        %v3350 = vunpack.c.h.b16 %v1061
        %v3351 = vunpack.c.l.b16 %v1062
        %v3352 = vunpack.c.h.b16 %v1062
        %v3353 = vunpack.c.l.b16 %v1063
        %v3354 = vunpack.c.h.b16 %v1063
        %v3355 = vunpack.c.l.b16 %v1064
        %v3356 = vunpack.c.h.b16 %v1064
        %v3357 = vunpack.c.l.b16 %v1065
        %v3358 = vunpack.c.h.b16 %v1065
        %v3359 = vunpack.c.l.b16 %v1066
        %v3360 = vunpack.c.h.b16 %v1066
        %v3361 = vunpack.c.l.b16 %v1067
        %v3362 = vunpack.c.h.b16 %v1067
        %v3363 = vunpack.c.l.b16 %v1068
        %v3364 = vunpack.c.h.b16 %v1068
        %v3365 = vunpack.c.l.b16 %v1069
        %v3366 = vunpack.c.h.b16 %v1069
        %v3367 = vunpack.c.l.b16 %v1070
        %v3368 = vunpack.c.h.b16 %v1070
        %v3369 = vunpack.c.l.b16 %v1071
        %v3370 = vunpack.c.h.b16 %v1071
        %v3371 = vunpack.c.l.b16 %v1072
        %v3372 = vunpack.c.h.b16 %v1072
        %v3373 = vunpack.c.l.b16 %v1073
        %v3374 = vunpack.c.h.b16 %v1073
        %v3375 = vunpack.c.l.b16 %v1074
        %v3376 = vunpack.c.h.b16 %v1074
        %v3377 = vunpack.c.l.b16 %v1075
        %v3378 = vunpack.c.h.b16 %v1075
        %v3379 = vunpack.c.l.b16 %v1076
        %v3380 = vunpack.c.h.b16 %v1076
        %v3381 = vunpack.c.l.b16 %v1077
        %v3382 = vunpack.c.h.b16 %v1077
        %v3383 = vunpack.c.l.b16 %v1078
        %v3384 = vunpack.c.h.b16 %v1078
        %v3385 = vunpack.c.l.b16 %v1079
        %v3386 = vunpack.c.h.b16 %v1079
        %v3387 = vunpack.c.l.b16 %v1080
        %v3388 = vunpack.c.h.b16 %v1080
        %v3389 = vunpack.c.l.b16 %v1081
        %v3390 = vunpack.c.h.b16 %v1081
        %v3391 = vunpack.c.l.b16 %v1082
        %v3392 = vunpack.c.h.b16 %v1082
        %v3393 = vunpack.c.l.b16 %v1083
        %v3394 = vunpack.c.h.b16 %v1083
        %v3395 = vunpack.c.l.b16 %v1084
        %v3396 = vunpack.c.h.b16 %v1084
        %v3397 = vunpack.c.l.b16 %v1085
        %v3398 = vunpack.c.h.b16 %v1085
        %v3399 = vunpack.c.l.b16 %v1086
        %v3400 = vunpack.c.h.b16 %v1086
        %v3401 = vunpack.c.l.b16 %v1087
        %v3402 = vunpack.c.h.b16 %v1087
        %v3403 = vunpack.c.l.b16 %v1088
        %v3404 = vunpack.c.h.b16 %v1088
        %v3405 = vunpack.c.l.b16 %v1089
        %v3406 = vunpack.c.h.b16 %v1089
        %v3407 = vunpack.c.l.b16 %v1090
        %v3408 = vunpack.c.h.b16 %v1090
        %v3409 = vunpack.c.l.b16 %v1091
        %v3410 = vunpack.c.h.b16 %v1091
        %v3411 = vunpack.c.l.b16 %v1092
        %v3412 = vunpack.c.h.b16 %v1092
        %v3413 = vunpack.c.l.b16 %v1093
        %v3414 = vunpack.c.h.b16 %v1093
        %v3415 = vunpack.c.l.b16 %v1094
        %v3416 = vunpack.c.h.b16 %v1094
        %v3417 = vunpack.c.l.b16 %v1095
        %v3418 = vunpack.c.h.b16 %v1095
        %v3419 = vunpack.c.l.b16 %v1096
        %v3420 = vunpack.c.h.b16 %v1096
        %v3421 = vunpack.c.l.b16 %v1097
        %v3422 = vunpack.c.h.b16 %v1097
        %v3423 = vunpack.c.l.b16 %v1098
        %v3424 = vunpack.c.h.b16 %v1098
        %v3425 = vunpack.c.l.b16 %v1099
        %v3426 = vunpack.c.h.b16 %v1099
        %v3427 = vunpack.c.l.b16 %v1100
        %v3428 = vunpack.c.h.b16 %v1100
        %v3429 = vunpack.c.l.b16 %v1101
        %v3430 = vunpack.c.h.b16 %v1101
        %v3431 = vunpack.c.l.b16 %v1102
        %v3432 = vunpack.c.h.b16 %v1102
        %v3433 = vunpack.c.l.b16 %v1103
        %v3434 = vunpack.c.h.b16 %v1103
        %v3435 = vunpack.c.l.b16 %v1104
        %v3436 = vunpack.c.h.b16 %v1104
        %v3437 = vunpack.c.l.b16 %v1105
        %v3438 = vunpack.c.h.b16 %v1105
        %v3439 = vunpack.c.l.b16 %v1106
        %v3440 = vunpack.c.h.b16 %v1106
        %v3441 = vunpack.c.l.b16 %v1107
        %v3442 = vunpack.c.h.b16 %v1107
        %v3443 = vunpack.c.l.b16 %v1108
        %v3444 = vunpack.c.h.b16 %v1108
        %v3445 = vunpack.c.l.b16 %v1109
        %v3446 = vunpack.c.h.b16 %v1109
        %v3447 = vunpack.c.l.b16 %v1110
        %v3448 = vunpack.c.h.b16 %v1110
        %v3449 = vunpack.c.l.b16 %v1111
        %v3450 = vunpack.c.h.b16 %v1111
        %v3451 = vunpack.c.l.b16 %v1112
        %v3452 = vunpack.c.h.b16 %v1112
        %v3453 = vunpack.c.l.b16 %v1113
        %v3454 = vunpack.c.h.b16 %v1113
        %v3455 = vunpack.c.l.b16 %v1114
        %v3456 = vunpack.c.h.b16 %v1114
        %v3457 = vunpack.c.l.b16 %v1115
        %v3458 = vunpack.c.h.b16 %v1115
        %v3459 = vunpack.c.l.b16 %v1116
        %v3460 = vunpack.c.h.b16 %v1116
        %v3461 = vunpack.c.l.b16 %v1117
        %v3462 = vunpack.c.h.b16 %v1117
        %v3463 = vunpack.c.l.b16 %v1118
        %v3464 = vunpack.c.h.b16 %v1118
        %v3465 = vunpack.c.l.b16 %v1119
        %v3466 = vunpack.c.h.b16 %v1119
        %v3467 = vunpack.c.l.b16 %v1120
        %v3468 = vunpack.c.h.b16 %v1120
        %v3469 = vunpack.c.l.b16 %v1121
        %v3470 = vunpack.c.h.b16 %v1121
        %v3471 = vunpack.c.l.b16 %v1122
        %v3472 = vunpack.c.h.b16 %v1122
        %v3473 = vunpack.c.l.b16 %v1123
        %v3474 = vunpack.c.h.b16 %v1123
        %v3475 = vunpack.c.l.b16 %v1124
        %v3476 = vunpack.c.h.b16 %v1124
        %v3477 = vunpack.c.l.b16 %v1125
        %v3478 = vunpack.c.h.b16 %v1125
        %v3479 = vunpack.c.l.b16 %v1126
        %v3480 = vunpack.c.h.b16 %v1126
        %v3481 = vunpack.c.l.b16 %v1127
        %v3482 = vunpack.c.h.b16 %v1127
        %v3483 = vunpack.c.l.b16 %v1128
        %v3484 = vunpack.c.h.b16 %v1128
        %v3485 = vunpack.c.l.b16 %v1129
        %v3486 = vunpack.c.h.b16 %v1129
        %v3487 = vunpack.c.l.b16 %v1130
        %v3488 = vunpack.c.h.b16 %v1130
        %v3489 = vunpack.c.l.b16 %v1131
        %v3490 = vunpack.c.h.b16 %v1131
        %v3491 = vunpack.c.l.b16 %v1132
        %v3492 = vunpack.c.h.b16 %v1132
        %v3493 = vunpack.c.l.b16 %v1133
        %v3494 = vunpack.c.h.b16 %v1133
        %v3495 = vunpack.c.l.b16 %v1134
        %v3496 = vunpack.c.h.b16 %v1134
        %v3497 = vunpack.c.l.b16 %v1135
        %v3498 = vunpack.c.h.b16 %v1135
        %v3499 = vunpack.c.l.b16 %v1136
        %v3500 = vunpack.c.h.b16 %v1136
        %v3501 = vunpack.c.l.b16 %v1137
        %v3502 = vunpack.c.h.b16 %v1137
        %v3503 = vunpack.c.l.b16 %v1138
        %v3504 = vunpack.c.h.b16 %v1138
        %v3505 = vunpack.c.l.b16 %v1139
        %v3506 = vunpack.c.h.b16 %v1139
        %v3507 = vunpack.c.l.b16 %v1140
        %v3508 = vunpack.c.h.b16 %v1140
        %v3509 = vunpack.c.l.b16 %v1141
        %v3510 = vunpack.c.h.b16 %v1141
        %v3511 = vunpack.c.l.b16 %v1142
        %v3512 = vunpack.c.h.b16 %v1142
        %v3513 = vunpack.c.l.b16 %v1143
        %v3514 = vunpack.c.h.b16 %v1143
        %v3515 = vunpack.c.l.b16 %v1144
        %v3516 = vunpack.c.h.b16 %v1144
        %v3517 = vunpack.c.l.b16 %v1145
        %v3518 = vunpack.c.h.b16 %v1145
        %v3519 = vunpack.c.l.b16 %v1146
        %v3520 = vunpack.c.h.b16 %v1146
        %v3521 = vunpack.c.l.b16 %v1147
        %v3522 = vunpack.c.h.b16 %v1147
        %v3523 = vunpack.c.l.b16 %v1148
        %v3524 = vunpack.c.h.b16 %v1148
        %v3525 = vunpack.c.l.b16 %v1149
        %v3526 = vunpack.c.h.b16 %v1149
        %v3527 = vunpack.c.l.b16 %v1150
        %v3528 = vunpack.c.h.b16 %v1150
        %v3529 = vunpack.c.l.b16 %v1151
        %v3530 = vunpack.c.h.b16 %v1151
        %v3531 = vunpack.c.l.b16 %v1152
        %v3532 = vunpack.c.h.b16 %v1152
        %v3533 = vunpack.c.l.b16 %v1153
        %v3534 = vunpack.c.h.b16 %v1153
        %v3535 = vunpack.c.l.b16 %v1154
        %v3536 = vunpack.c.h.b16 %v1154
        %v3537 = vunpack.c.l.b16 %v1155
        %v3538 = vunpack.c.h.b16 %v1155
        %v3539 = vunpack.c.l.b16 %v1156
        %v3540 = vunpack.c.h.b16 %v1156
        %v3541 = vunpack.c.l.b16 %v1157
        %v3542 = vunpack.c.h.b16 %v1157
        %v3543 = vunpack.c.l.b16 %v1158
        %v3544 = vunpack.c.h.b16 %v1158
        %v3545 = vunpack.c.l.b16 %v1159
        %v3546 = vunpack.c.h.b16 %v1159
        %v3547 = vunpack.c.l.b16 %v1160
        %v3548 = vunpack.c.h.b16 %v1160
        %v3549 = vpack.c.b16 %v2019, %v2013
        %v3550 = vpack.c.b16 %v2020, %v2014
        %v3551 = vpack.c.b16 %v2021, %v2015
        %v3552 = vpack.c.b16 %v2022, %v2016
        %v3553 = vpack.c.b16 %v2023, %v2017
        %v3554 = vpack.c.b16 %v2024, %v2018
        %v3555 = vpack.c.b16 %v2031, %v2025
        %v3556 = vpack.c.b16 %v2032, %v2026
        %v3557 = vpack.c.b16 %v2033, %v2027
        %v3558 = vpack.c.b16 %v2034, %v2028
        %v3559 = vpack.c.b16 %v2035, %v2029
        %v3560 = vpack.c.b16 %v2036, %v2030
        %v3561 = vpack.c.b16 %v2043, %v2037
        %v3562 = vpack.c.b16 %v2044, %v2038
        %v3563 = vpack.c.b16 %v2045, %v2039
        %v3564 = vpack.c.b16 %v2046, %v2040
        %v3565 = vpack.c.b16 %v2047, %v2041
        %v3566 = vpack.c.b16 %v2048, %v2042
        %v3567 = vpack.c.b16 %v2055, %v2049
        %v3568 = vpack.c.b16 %v2056, %v2050
        %v3569 = vpack.c.b16 %v2057, %v2051
        %v3570 = vpack.c.b16 %v2058, %v2052
        %v3571 = vpack.c.b16 %v2059, %v2053
        %v3572 = vpack.c.b16 %v2060, %v2054
        %v3573 = vpack.c.b16 %v2067, %v2061
        %v3574 = vpack.c.b16 %v2068, %v2062
        %v3575 = vpack.c.b16 %v2069, %v2063
        %v3576 = vpack.c.b16 %v2070, %v2064
        %v3577 = vpack.c.b16 %v2071, %v2065
        %v3578 = vpack.c.b16 %v2072, %v2066
        %v3579 = vpack.c.b16 %v2079, %v2073
        %v3580 = vpack.c.b16 %v2080, %v2074
        %v3581 = vpack.c.b16 %v2081, %v2075
        %v3582 = vpack.c.b16 %v2082, %v2076
        %v3583 = vpack.c.b16 %v2083, %v2077
        %v3584 = vpack.c.b16 %v2084, %v2078
        %v3585 = vpack.c.b16 %v2091, %v2085
        %v3586 = vpack.c.b16 %v2092, %v2086
        %v3587 = vpack.c.b16 %v2093, %v2087
        %v3588 = vpack.c.b16 %v2094, %v2088
        %v3589 = vpack.c.b16 %v2095, %v2089
        %v3590 = vpack.c.b16 %v2096, %v2090
        %v3591 = vpack.c.b16 %v2103, %v2097
        %v3592 = vpack.c.b16 %v2104, %v2098
        %v3593 = vpack.c.b16 %v2105, %v2099
        %v3594 = vpack.c.b16 %v2106, %v2100
        %v3595 = vpack.c.b16 %v2107, %v2101
        %v3596 = vpack.c.b16 %v2108, %v2102
        %v3597 = vpack.c.b16 %v2115, %v2109
        %v3598 = vpack.c.b16 %v2116, %v2110
        %v3599 = vpack.c.b16 %v2117, %v2111
        %v3600 = vpack.c.b16 %v2118, %v2112
        %v3601 = vpack.c.b16 %v2119, %v2113
        %v3602 = vpack.c.b16 %v2120, %v2114
        %v3603 = vpack.c.b16 %v2127, %v2121
        %v3604 = vpack.c.b16 %v2128, %v2122
        %v3605 = vpack.c.b16 %v2129, %v2123
        %v3606 = vpack.c.b16 %v2130, %v2124
        %v3607 = vpack.c.b16 %v2131, %v2125
        %v3608 = vpack.c.b16 %v2132, %v2126
        %v3609 = vpack.c.b16 %v2139, %v2133
        %v3610 = vpack.c.b16 %v2140, %v2134
        %v3611 = vpack.c.b16 %v2141, %v2135
        %v3612 = vpack.c.b16 %v2142, %v2136
        %v3613 = vpack.c.b16 %v2143, %v2137
        %v3614 = vpack.c.b16 %v2144, %v2138
        %v3615 = vpack.c.b16 %v2151, %v2145
        %v3616 = vpack.c.b16 %v2152, %v2146
        %v3617 = vpack.c.b16 %v2153, %v2147
        %v3618 = vpack.c.b16 %v2154, %v2148
        %v3619 = vpack.c.b16 %v2155, %v2149
        %v3620 = vpack.c.b16 %v2156, %v2150
        %v3621 = vpack.c.b16 %v2163, %v2157
        %v3622 = vpack.c.b16 %v2164, %v2158
        %v3623 = vpack.c.b16 %v2165, %v2159
        %v3624 = vpack.c.b16 %v2166, %v2160
        %v3625 = vpack.c.b16 %v2167, %v2161
        %v3626 = vpack.c.b16 %v2168, %v2162
        %v3627 = vpack.c.b16 %v2175, %v2169
        %v3628 = vpack.c.b16 %v2176, %v2170
        %v3629 = vpack.c.b16 %v2177, %v2171
        %v3630 = vpack.c.b16 %v2178, %v2172
        %v3631 = vpack.c.b16 %v2179, %v2173
        %v3632 = vpack.c.b16 %v2180, %v2174
        %v3633 = vpack.c.b16 %v2187, %v2181
        %v3634 = vpack.c.b16 %v2188, %v2182
        %v3635 = vpack.c.b16 %v2189, %v2183
        %v3636 = vpack.c.b16 %v2190, %v2184
        %v3637 = vpack.c.b16 %v2191, %v2185
        %v3638 = vpack.c.b16 %v2192, %v2186
        %v3639 = vpack.c.b16 %v2199, %v2193
        %v3640 = vpack.c.b16 %v2200, %v2194
        %v3641 = vpack.c.b16 %v2201, %v2195
        %v3642 = vpack.c.b16 %v2202, %v2196
        %v3643 = vpack.c.b16 %v2203, %v2197
        %v3644 = vpack.c.b16 %v2204, %v2198
        %v3645 = vpack.c.b16 %v2211, %v2205
        %v3646 = vpack.c.b16 %v2212, %v2206
        %v3647 = vpack.c.b16 %v2213, %v2207
        %v3648 = vpack.c.b16 %v2214, %v2208
        %v3649 = vpack.c.b16 %v2215, %v2209
        %v3650 = vpack.c.b16 %v2216, %v2210
        %v3651 = vpack.c.b16 %v2223, %v2217
        %v3652 = vpack.c.b16 %v2224, %v2218
        %v3653 = vpack.c.b16 %v2225, %v2219
        %v3654 = vpack.c.b16 %v2226, %v2220
        %v3655 = vpack.c.b16 %v2227, %v2221
        %v3656 = vpack.c.b16 %v2228, %v2222
        %v3657 = vpack.c.b16 %v2235, %v2229
        %v3658 = vpack.c.b16 %v2236, %v2230
        %v3659 = vpack.c.b16 %v2237, %v2231
        %v3660 = vpack.c.b16 %v2238, %v2232
        %v3661 = vpack.c.b16 %v2239, %v2233
        %v3662 = vpack.c.b16 %v2240, %v2234
        %v3663 = vpack.c.b16 %v2247, %v2241
        %v3664 = vpack.c.b16 %v2248, %v2242
        %v3665 = vpack.c.b16 %v2249, %v2243
        %v3666 = vpack.c.b16 %v2250, %v2244
        %v3667 = vpack.c.b16 %v2251, %v2245
        %v3668 = vpack.c.b16 %v2252, %v2246
        %v3669 = vpack.c.b16 %v2259, %v2253
        %v3670 = vpack.c.b16 %v2260, %v2254
        %v3671 = vpack.c.b16 %v2261, %v2255
        %v3672 = vpack.c.b16 %v2262, %v2256
        %v3673 = vpack.c.b16 %v2263, %v2257
        %v3674 = vpack.c.b16 %v2264, %v2258
        %v3675 = vpack.c.b16 %v2271, %v2265
        %v3676 = vpack.c.b16 %v2272, %v2266
        %v3677 = vpack.c.b16 %v2273, %v2267
        %v3678 = vpack.c.b16 %v2274, %v2268
        %v3679 = vpack.c.b16 %v2275, %v2269
        %v3680 = vpack.c.b16 %v2276, %v2270
        %v3681 = vpack.c.b16 %v2283, %v2277
        %v3682 = vpack.c.b16 %v2284, %v2278
        %v3683 = vpack.c.b16 %v2285, %v2279
        %v3684 = vpack.c.b16 %v2286, %v2280
        %v3685 = vpack.c.b16 %v2287, %v2281
        %v3686 = vpack.c.b16 %v2288, %v2282
        %v3687 = vpack.c.b16 %v2295, %v2289
        %v3688 = vpack.c.b16 %v2296, %v2290
        %v3689 = vpack.c.b16 %v2297, %v2291
        %v3690 = vpack.c.b16 %v2298, %v2292
        %v3691 = vpack.c.b16 %v2299, %v2293
        %v3692 = vpack.c.b16 %v2300, %v2294
        %v3693 = vpack.c.b16 %v2307, %v2301
        %v3694 = vpack.c.b16 %v2308, %v2302
        %v3695 = vpack.c.b16 %v2309, %v2303
        %v3696 = vpack.c.b16 %v2310, %v2304
        %v3697 = vpack.c.b16 %v2311, %v2305
        %v3698 = vpack.c.b16 %v2312, %v2306
        %v3699 = vpack.c.b16 %v2319, %v2313
        %v3700 = vpack.c.b16 %v2320, %v2314
        %v3701 = vpack.c.b16 %v2321, %v2315
        %v3702 = vpack.c.b16 %v2322, %v2316
        %v3703 = vpack.c.b16 %v2323, %v2317
        %v3704 = vpack.c.b16 %v2324, %v2318
        %v3705 = vpack.c.b16 %v2331, %v2325
        %v3706 = vpack.c.b16 %v2332, %v2326
        %v3707 = vpack.c.b16 %v2333, %v2327
        %v3708 = vpack.c.b16 %v2334, %v2328
        %v3709 = vpack.c.b16 %v2335, %v2329
        %v3710 = vpack.c.b16 %v2336, %v2330
        %v3711 = vpack.c.b16 %v2343, %v2337
        %v3712 = vpack.c.b16 %v2344, %v2338
        %v3713 = vpack.c.b16 %v2345, %v2339
        %v3714 = vpack.c.b16 %v2346, %v2340
        %v3715 = vpack.c.b16 %v2347, %v2341
        %v3716 = vpack.c.b16 %v2348, %v2342
        %v3717 = vpack.c.b16 %v2355, %v2349
        %v3718 = vpack.c.b16 %v2356, %v2350
        %v3719 = vpack.c.b16 %v2357, %v2351
        %v3720 = vpack.c.b16 %v2358, %v2352
        %v3721 = vpack.c.b16 %v2359, %v2353
        %v3722 = vpack.c.b16 %v2360, %v2354
        %v3723 = vpack.c.b16 %v2367, %v2361
        %v3724 = vpack.c.b16 %v2368, %v2362
        %v3725 = vpack.c.b16 %v2369, %v2363
        %v3726 = vpack.c.b16 %v2370, %v2364
        %v3727 = vpack.c.b16 %v2371, %v2365
        %v3728 = vpack.c.b16 %v2372, %v2366
        %v3729 = vpack.c.b16 %v2379, %v2373
        %v3730 = vpack.c.b16 %v2380, %v2374
        %v3731 = vpack.c.b16 %v2381, %v2375
        %v3732 = vpack.c.b16 %v2382, %v2376
        %v3733 = vpack.c.b16 %v2383, %v2377
        %v3734 = vpack.c.b16 %v2384, %v2378
        %v3735 = vpack.c.b16 %v2391, %v2385
        %v3736 = vpack.c.b16 %v2392, %v2386
        %v3737 = vpack.c.b16 %v2393, %v2387
        %v3738 = vpack.c.b16 %v2394, %v2388
        %v3739 = vpack.c.b16 %v2395, %v2389
        %v3740 = vpack.c.b16 %v2396, %v2390
        %v3741 = vpack.c.b16 %v2403, %v2397
        %v3742 = vpack.c.b16 %v2404, %v2398
        %v3743 = vpack.c.b16 %v2405, %v2399
        %v3744 = vpack.c.b16 %v2406, %v2400
        %v3745 = vpack.c.b16 %v2407, %v2401
        %v3746 = vpack.c.b16 %v2408, %v2402
        %v3747 = vpack.c.b16 %v2415, %v2409
        %v3748 = vpack.c.b16 %v2416, %v2410
        %v3749 = vpack.c.b16 %v2417, %v2411
        %v3750 = vpack.c.b16 %v2418, %v2412
        %v3751 = vpack.c.b16 %v2419, %v2413
        %v3752 = vpack.c.b16 %v2420, %v2414
        %v3753 = vpack.c.b16 %v2427, %v2421
        %v3754 = vpack.c.b16 %v2428, %v2422
        %v3755 = vpack.c.b16 %v2429, %v2423
        %v3756 = vpack.c.b16 %v2430, %v2424
        %v3757 = vpack.c.b16 %v2431, %v2425
        %v3758 = vpack.c.b16 %v2432, %v2426
        %v3759 = vpack.c.b16 %v2439, %v2433
        %v3760 = vpack.c.b16 %v2440, %v2434
        %v3761 = vpack.c.b16 %v2441, %v2435
        %v3762 = vpack.c.b16 %v2442, %v2436
        %v3763 = vpack.c.b16 %v2443, %v2437
        %v3764 = vpack.c.b16 %v2444, %v2438
        %v3765 = vpack.c.b16 %v2451, %v2445
        %v3766 = vpack.c.b16 %v2452, %v2446
        %v3767 = vpack.c.b16 %v2453, %v2447
        %v3768 = vpack.c.b16 %v2454, %v2448
        %v3769 = vpack.c.b16 %v2455, %v2449
        %v3770 = vpack.c.b16 %v2456, %v2450
        %v3771 = vpack.c.b16 %v2463, %v2457
        %v3772 = vpack.c.b16 %v2464, %v2458
        %v3773 = vpack.c.b16 %v2465, %v2459
        %v3774 = vpack.c.b16 %v2466, %v2460
        %v3775 = vpack.c.b16 %v2467, %v2461
        %v3776 = vpack.c.b16 %v2468, %v2462
        %v3777 = vpack.c.b16 %v2475, %v2469
        %v3778 = vpack.c.b16 %v2476, %v2470
        %v3779 = vpack.c.b16 %v2477, %v2471
        %v3780 = vpack.c.b16 %v2478, %v2472
        %v3781 = vpack.c.b16 %v2479, %v2473
        %v3782 = vpack.c.b16 %v2480, %v2474
        %v3783 = vpack.c.b16 %v2487, %v2481
        %v3784 = vpack.c.b16 %v2488, %v2482
        %v3785 = vpack.c.b16 %v2489, %v2483
        %v3786 = vpack.c.b16 %v2490, %v2484
        %v3787 = vpack.c.b16 %v2491, %v2485
        %v3788 = vpack.c.b16 %v2492, %v2486
        %v3789 = vpack.c.b16 %v2499, %v2493
        %v3790 = vpack.c.b16 %v2500, %v2494
        %v3791 = vpack.c.b16 %v2501, %v2495
        %v3792 = vpack.c.b16 %v2502, %v2496
        %v3793 = vpack.c.b16 %v2503, %v2497
        %v3794 = vpack.c.b16 %v2504, %v2498
        %v3795 = vpack.c.b16 %v2511, %v2505
        %v3796 = vpack.c.b16 %v2512, %v2506
        %v3797 = vpack.c.b16 %v2513, %v2507
        %v3798 = vpack.c.b16 %v2514, %v2508
        %v3799 = vpack.c.b16 %v2515, %v2509
        %v3800 = vpack.c.b16 %v2516, %v2510
        %v3801 = vpack.c.b16 %v2523, %v2517
        %v3802 = vpack.c.b16 %v2524, %v2518
        %v3803 = vpack.c.b16 %v2525, %v2519
        %v3804 = vpack.c.b16 %v2526, %v2520
        %v3805 = vpack.c.b16 %v2527, %v2521
        %v3806 = vpack.c.b16 %v2528, %v2522
        %v3807 = vpack.c.b16 %v2535, %v2529
        %v3808 = vpack.c.b16 %v2536, %v2530
        %v3809 = vpack.c.b16 %v2537, %v2531
        %v3810 = vpack.c.b16 %v2538, %v2532
        %v3811 = vpack.c.b16 %v2539, %v2533
        %v3812 = vpack.c.b16 %v2540, %v2534
        %v3813 = vpack.c.b16 %v2547, %v2541
        %v3814 = vpack.c.b16 %v2548, %v2542
        %v3815 = vpack.c.b16 %v2549, %v2543
        %v3816 = vpack.c.b16 %v2550, %v2544
        %v3817 = vpack.c.b16 %v2551, %v2545
        %v3818 = vpack.c.b16 %v2552, %v2546
        %v3819 = vpack.c.b16 %v2559, %v2553
        %v3820 = vpack.c.b16 %v2560, %v2554
        %v3821 = vpack.c.b16 %v2561, %v2555
        %v3822 = vpack.c.b16 %v2562, %v2556
        %v3823 = vpack.c.b16 %v2563, %v2557
        %v3824 = vpack.c.b16 %v2564, %v2558
        %v3825 = vpack.c.b16 %v2571, %v2565
        %v3826 = vpack.c.b16 %v2572, %v2566
        %v3827 = vpack.c.b16 %v2573, %v2567
        %v3828 = vpack.c.b16 %v2574, %v2568
        %v3829 = vpack.c.b16 %v2575, %v2569
        %v3830 = vpack.c.b16 %v2576, %v2570
        %v3831 = vpack.c.b16 %v2583, %v2577
        %v3832 = vpack.c.b16 %v2584, %v2578
        %v3833 = vpack.c.b16 %v2585, %v2579
        %v3834 = vpack.c.b16 %v2586, %v2580
        %v3835 = vpack.c.b16 %v2587, %v2581
        %v3836 = vpack.c.b16 %v2588, %v2582
        %v3837 = vpack.c.b16 %v2595, %v2589
        %v3838 = vpack.c.b16 %v2596, %v2590
        %v3839 = vpack.c.b16 %v2597, %v2591
        %v3840 = vpack.c.b16 %v2598, %v2592
        %v3841 = vpack.c.b16 %v2599, %v2593
        %v3842 = vpack.c.b16 %v2600, %v2594
        %v3843 = vpack.c.b16 %v2607, %v2601
        %v3844 = vpack.c.b16 %v2608, %v2602
        %v3845 = vpack.c.b16 %v2609, %v2603
        %v3846 = vpack.c.b16 %v2610, %v2604
        %v3847 = vpack.c.b16 %v2611, %v2605
        %v3848 = vpack.c.b16 %v2612, %v2606
        %v3849 = vpack.c.b16 %v2619, %v2613
        %v3850 = vpack.c.b16 %v2620, %v2614
        %v3851 = vpack.c.b16 %v2621, %v2615
        %v3852 = vpack.c.b16 %v2622, %v2616
        %v3853 = vpack.c.b16 %v2623, %v2617
        %v3854 = vpack.c.b16 %v2624, %v2618
        %v3855 = vpack.c.b16 %v2631, %v2625
        %v3856 = vpack.c.b16 %v2632, %v2626
        %v3857 = vpack.c.b16 %v2633, %v2627
        %v3858 = vpack.c.b16 %v2634, %v2628
        %v3859 = vpack.c.b16 %v2635, %v2629
        %v3860 = vpack.c.b16 %v2636, %v2630
        %v3861 = vpack.c.b16 %v2643, %v2637
        %v3862 = vpack.c.b16 %v2644, %v2638
        %v3863 = vpack.c.b16 %v2645, %v2639
        %v3864 = vpack.c.b16 %v2646, %v2640
        %v3865 = vpack.c.b16 %v2647, %v2641
        %v3866 = vpack.c.b16 %v2648, %v2642
        %v3867 = vpack.c.b16 %v2655, %v2649
        %v3868 = vpack.c.b16 %v2656, %v2650
        %v3869 = vpack.c.b16 %v2657, %v2651
        %v3870 = vpack.c.b16 %v2658, %v2652
        %v3871 = vpack.c.b16 %v2659, %v2653
        %v3872 = vpack.c.b16 %v2660, %v2654
        %v3873 = vpack.c.b16 %v2667, %v2661
        %v3874 = vpack.c.b16 %v2668, %v2662
        %v3875 = vpack.c.b16 %v2669, %v2663
        %v3876 = vpack.c.b16 %v2670, %v2664
        %v3877 = vpack.c.b16 %v2671, %v2665
        %v3878 = vpack.c.b16 %v2672, %v2666
        %v3879 = vpack.c.b16 %v2679, %v2673
        %v3880 = vpack.c.b16 %v2680, %v2674
        %v3881 = vpack.c.b16 %v2681, %v2675
        %v3882 = vpack.c.b16 %v2682, %v2676
        %v3883 = vpack.c.b16 %v2683, %v2677
        %v3884 = vpack.c.b16 %v2684, %v2678
        %v3885 = vpack.c.b16 %v2691, %v2685
        %v3886 = vpack.c.b16 %v2692, %v2686
        %v3887 = vpack.c.b16 %v2693, %v2687
        %v3888 = vpack.c.b16 %v2694, %v2688
        %v3889 = vpack.c.b16 %v2695, %v2689
        %v3890 = vpack.c.b16 %v2696, %v2690
        %v3891 = vpack.c.b16 %v2703, %v2697
        %v3892 = vpack.c.b16 %v2704, %v2698
        %v3893 = vpack.c.b16 %v2705, %v2699
        %v3894 = vpack.c.b16 %v2706, %v2700
        %v3895 = vpack.c.b16 %v2707, %v2701
        %v3896 = vpack.c.b16 %v2708, %v2702
        %v3897 = vpack.c.b16 %v2715, %v2709
        %v3898 = vpack.c.b16 %v2716, %v2710
        %v3899 = vpack.c.b16 %v2717, %v2711
        %v3900 = vpack.c.b16 %v2718, %v2712
        %v3901 = vpack.c.b16 %v2719, %v2713
        %v3902 = vpack.c.b16 %v2720, %v2714
        %v3903 = vpack.c.b16 %v2727, %v2721
        %v3904 = vpack.c.b16 %v2728, %v2722
        %v3905 = vpack.c.b16 %v2729, %v2723
        %v3906 = vpack.c.b16 %v2730, %v2724
        %v3907 = vpack.c.b16 %v2731, %v2725
        %v3908 = vpack.c.b16 %v2732, %v2726
        %v3909 = vpack.c.b16 %v2739, %v2733
        %v3910 = vpack.c.b16 %v2740, %v2734
        %v3911 = vpack.c.b16 %v2741, %v2735
        %v3912 = vpack.c.b16 %v2742, %v2736
        %v3913 = vpack.c.b16 %v2743, %v2737
        %v3914 = vpack.c.b16 %v2744, %v2738
        %v3915 = vpack.c.b16 %v2751, %v2745
        %v3916 = vpack.c.b16 %v2752, %v2746
        %v3917 = vpack.c.b16 %v2753, %v2747
        %v3918 = vpack.c.b16 %v2754, %v2748
        %v3919 = vpack.c.b16 %v2755, %v2749
        %v3920 = vpack.c.b16 %v2756, %v2750
        %v3921 = vpack.c.b16 %v2763, %v2757
        %v3922 = vpack.c.b16 %v2764, %v2758
        %v3923 = vpack.c.b16 %v2765, %v2759
        %v3924 = vpack.c.b16 %v2766, %v2760
        %v3925 = vpack.c.b16 %v2767, %v2761
        %v3926 = vpack.c.b16 %v2768, %v2762
        %v3927 = vpack.c.b16 %v2775, %v2769
        %v3928 = vpack.c.b16 %v2776, %v2770
        %v3929 = vpack.c.b16 %v2777, %v2771
        %v3930 = vpack.c.b16 %v2778, %v2772
        %v3931 = vpack.c.b16 %v2779, %v2773
        %v3932 = vpack.c.b16 %v2780, %v2774
        %v3933 = vpack.c.b16 %v2787, %v2781
        %v3934 = vpack.c.b16 %v2788, %v2782
        %v3935 = vpack.c.b16 %v2789, %v2783
        %v3936 = vpack.c.b16 %v2790, %v2784
        %v3937 = vpack.c.b16 %v2791, %v2785
        %v3938 = vpack.c.b16 %v2792, %v2786
        %v3939 = vpack.c.b16 %v2799, %v2793
        %v3940 = vpack.c.b16 %v2800, %v2794
        %v3941 = vpack.c.b16 %v2801, %v2795
        %v3942 = vpack.c.b16 %v2802, %v2796
        %v3943 = vpack.c.b16 %v2803, %v2797
        %v3944 = vpack.c.b16 %v2804, %v2798
        %v3945 = vpack.c.b16 %v2811, %v2805
        %v3946 = vpack.c.b16 %v2812, %v2806
        %v3947 = vpack.c.b16 %v2813, %v2807
        %v3948 = vpack.c.b16 %v2814, %v2808
        %v3949 = vpack.c.b16 %v2815, %v2809
        %v3950 = vpack.c.b16 %v2816, %v2810
        %v3951 = vpack.c.b16 %v2823, %v2817
        %v3952 = vpack.c.b16 %v2824, %v2818
        %v3953 = vpack.c.b16 %v2825, %v2819
        %v3954 = vpack.c.b16 %v2826, %v2820
        %v3955 = vpack.c.b16 %v2827, %v2821
        %v3956 = vpack.c.b16 %v2828, %v2822
        %v3957 = vpack.c.b16 %v2835, %v2829
        %v3958 = vpack.c.b16 %v2836, %v2830
        %v3959 = vpack.c.b16 %v2837, %v2831
        %v3960 = vpack.c.b16 %v2838, %v2832
        %v3961 = vpack.c.b16 %v2839, %v2833
        %v3962 = vpack.c.b16 %v2840, %v2834
        %v3963 = vpack.c.b16 %v2847, %v2841
        %v3964 = vpack.c.b16 %v2848, %v2842
        %v3965 = vpack.c.b16 %v2849, %v2843
        %v3966 = vpack.c.b16 %v2850, %v2844
        %v3967 = vpack.c.b16 %v2851, %v2845
        %v3968 = vpack.c.b16 %v2852, %v2846
        %v3969 = vpack.c.b16 %v2859, %v2853
        %v3970 = vpack.c.b16 %v2860, %v2854
        %v3971 = vpack.c.b16 %v2861, %v2855
        %v3972 = vpack.c.b16 %v2862, %v2856
        %v3973 = vpack.c.b16 %v2863, %v2857
        %v3974 = vpack.c.b16 %v2864, %v2858
        %v3975 = vpack.c.b16 %v2871, %v2865
        %v3976 = vpack.c.b16 %v2872, %v2866
        %v3977 = vpack.c.b16 %v2873, %v2867
        %v3978 = vpack.c.b16 %v2874, %v2868
        %v3979 = vpack.c.b16 %v2875, %v2869
        %v3980 = vpack.c.b16 %v2876, %v2870
        %v3981 = vpack.c.b16 %v2883, %v2877
        %v3982 = vpack.c.b16 %v2884, %v2878
        %v3983 = vpack.c.b16 %v2885, %v2879
        %v3984 = vpack.c.b16 %v2886, %v2880
        %v3985 = vpack.c.b16 %v2887, %v2881
        %v3986 = vpack.c.b16 %v2888, %v2882
        %v3987 = vpack.c.b16 %v2895, %v2889
        %v3988 = vpack.c.b16 %v2896, %v2890
        %v3989 = vpack.c.b16 %v2897, %v2891
        %v3990 = vpack.c.b16 %v2898, %v2892
        %v3991 = vpack.c.b16 %v2899, %v2893
        %v3992 = vpack.c.b16 %v2900, %v2894
        %v3993 = vpack.c.b16 %v2907, %v2901
        %v3994 = vpack.c.b16 %v2908, %v2902
        %v3995 = vpack.c.b16 %v2909, %v2903
        %v3996 = vpack.c.b16 %v2910, %v2904
        %v3997 = vpack.c.b16 %v2911, %v2905
        %v3998 = vpack.c.b16 %v2912, %v2906
        %v3999 = vpack.c.b16 %v2919, %v2913
        %v4000 = vpack.c.b16 %v2920, %v2914
        %v4001 = vpack.c.b16 %v2921, %v2915
        %v4002 = vpack.c.b16 %v2922, %v2916
        %v4003 = vpack.c.b16 %v2923, %v2917
        %v4004 = vpack.c.b16 %v2924, %v2918
        %v4005 = vpack.c.b16 %v2931, %v2925
        %v4006 = vpack.c.b16 %v2932, %v2926
        %v4007 = vpack.c.b16 %v2933, %v2927
        %v4008 = vpack.c.b16 %v2934, %v2928
        %v4009 = vpack.c.b16 %v2935, %v2929
        %v4010 = vpack.c.b16 %v2936, %v2930
        %v4011 = vpack.c.b16 %v2943, %v2937
        %v4012 = vpack.c.b16 %v2944, %v2938
        %v4013 = vpack.c.b16 %v2945, %v2939
        %v4014 = vpack.c.b16 %v2946, %v2940
        %v4015 = vpack.c.b16 %v2947, %v2941
        %v4016 = vpack.c.b16 %v2948, %v2942
        %v4017 = vpack.c.b16 %v2955, %v2949
        %v4018 = vpack.c.b16 %v2956, %v2950
        %v4019 = vpack.c.b16 %v2957, %v2951
        %v4020 = vpack.c.b16 %v2958, %v2952
        %v4021 = vpack.c.b16 %v2959, %v2953
        %v4022 = vpack.c.b16 %v2960, %v2954
        %v4023 = vpack.c.b16 %v2967, %v2961
        %v4024 = vpack.c.b16 %v2968, %v2962
        %v4025 = vpack.c.b16 %v2969, %v2963
        %v4026 = vpack.c.b16 %v2970, %v2964
        %v4027 = vpack.c.b16 %v2971, %v2965
        %v4028 = vpack.c.b16 %v2972, %v2966
        %v4029 = vpack.c.b16 %v2979, %v2973
        %v4030 = vpack.c.b16 %v2980, %v2974
        %v4031 = vpack.c.b16 %v2981, %v2975
        %v4032 = vpack.c.b16 %v2982, %v2976
        %v4033 = vpack.c.b16 %v2983, %v2977
        %v4034 = vpack.c.b16 %v2984, %v2978
        %v4035 = vpack.c.b16 %v2991, %v2985
        %v4036 = vpack.c.b16 %v2992, %v2986
        %v4037 = vpack.c.b16 %v2993, %v2987
        %v4038 = vpack.c.b16 %v2994, %v2988
        %v4039 = vpack.c.b16 %v2995, %v2989
        %v4040 = vpack.c.b16 %v2996, %v2990
        %v4041 = vpack.c.b16 %v3003, %v2997
        %v4042 = vpack.c.b16 %v3004, %v2998
        %v4043 = vpack.c.b16 %v3005, %v2999
        %v4044 = vpack.c.b16 %v3006, %v3000
        %v4045 = vpack.c.b16 %v3007, %v3001
        %v4046 = vpack.c.b16 %v3008, %v3002
        %v4047 = vpack.c.b16 %v3015, %v3009
        %v4048 = vpack.c.b16 %v3016, %v3010
        %v4049 = vpack.c.b16 %v3017, %v3011
        %v4050 = vpack.c.b16 %v3018, %v3012
        %v4051 = vpack.c.b16 %v3019, %v3013
        %v4052 = vpack.c.b16 %v3020, %v3014
        %v4053 = vpack.c.b16 %v3027, %v3021
        %v4054 = vpack.c.b16 %v3028, %v3022
        %v4055 = vpack.c.b16 %v3029, %v3023
        %v4056 = vpack.c.b16 %v3030, %v3024
        %v4057 = vpack.c.b16 %v3031, %v3025
        %v4058 = vpack.c.b16 %v3032, %v3026
        %v4059 = vpack.c.b16 %v3039, %v3033
        %v4060 = vpack.c.b16 %v3040, %v3034
        %v4061 = vpack.c.b16 %v3041, %v3035
        %v4062 = vpack.c.b16 %v3042, %v3036
        %v4063 = vpack.c.b16 %v3043, %v3037
        %v4064 = vpack.c.b16 %v3044, %v3038
        %v4065 = vpack.c.b16 %v3051, %v3045
        %v4066 = vpack.c.b16 %v3052, %v3046
        %v4067 = vpack.c.b16 %v3053, %v3047
        %v4068 = vpack.c.b16 %v3054, %v3048
        %v4069 = vpack.c.b16 %v3055, %v3049
        %v4070 = vpack.c.b16 %v3056, %v3050
        %v4071 = vpack.c.b16 %v3063, %v3057
        %v4072 = vpack.c.b16 %v3064, %v3058
        %v4073 = vpack.c.b16 %v3065, %v3059
        %v4074 = vpack.c.b16 %v3066, %v3060
        %v4075 = vpack.c.b16 %v3067, %v3061
        %v4076 = vpack.c.b16 %v3068, %v3062
        %v4077 = vpack.c.b16 %v3075, %v3069
        %v4078 = vpack.c.b16 %v3076, %v3070
        %v4079 = vpack.c.b16 %v3077, %v3071
        %v4080 = vpack.c.b16 %v3078, %v3072
        %v4081 = vpack.c.b16 %v3079, %v3073
        %v4082 = vpack.c.b16 %v3080, %v3074
        %v4083 = vpack.c.b16 %v3087, %v3081
        %v4084 = vpack.c.b16 %v3088, %v3082
        %v4085 = vpack.c.b16 %v3089, %v3083
        %v4086 = vpack.c.b16 %v3090, %v3084
        %v4087 = vpack.c.b16 %v3091, %v3085
        %v4088 = vpack.c.b16 %v3092, %v3086
        %v4089 = vpack.c.b16 %v3099, %v3093
        %v4090 = vpack.c.b16 %v3100, %v3094
        %v4091 = vpack.c.b16 %v3101, %v3095
        %v4092 = vpack.c.b16 %v3102, %v3096
        %v4093 = vpack.c.b16 %v3103, %v3097
        %v4094 = vpack.c.b16 %v3104, %v3098
        %v4095 = vpack.c.b16 %v3111, %v3105
        %v4096 = vpack.c.b16 %v3112, %v3106
        %v4097 = vpack.c.b16 %v3113, %v3107
        %v4098 = vpack.c.b16 %v3114, %v3108
        %v4099 = vpack.c.b16 %v3115, %v3109
        %v4100 = vpack.c.b16 %v3116, %v3110
        %v4101 = vpack.c.b16 %v3123, %v3117
        %v4102 = vpack.c.b16 %v3124, %v3118
        %v4103 = vpack.c.b16 %v3125, %v3119
        %v4104 = vpack.c.b16 %v3126, %v3120
        %v4105 = vpack.c.b16 %v3127, %v3121
        %v4106 = vpack.c.b16 %v3128, %v3122
        %v4107 = vpack.c.b16 %v3135, %v3129
        %v4108 = vpack.c.b16 %v3136, %v3130
        %v4109 = vpack.c.b16 %v3137, %v3131
        %v4110 = vpack.c.b16 %v3138, %v3132
        %v4111 = vpack.c.b16 %v3139, %v3133
        %v4112 = vpack.c.b16 %v3140, %v3134
        %v4113 = vpack.c.b16 %v3147, %v3141
        %v4114 = vpack.c.b16 %v3148, %v3142
        %v4115 = vpack.c.b16 %v3149, %v3143
        %v4116 = vpack.c.b16 %v3150, %v3144
        %v4117 = vpack.c.b16 %v3151, %v3145
        %v4118 = vpack.c.b16 %v3152, %v3146
        %v4119 = vpack.c.b16 %v3159, %v3153
        %v4120 = vpack.c.b16 %v3160, %v3154
        %v4121 = vpack.c.b16 %v3161, %v3155
        %v4122 = vpack.c.b16 %v3162, %v3156
        %v4123 = vpack.c.b16 %v3163, %v3157
        %v4124 = vpack.c.b16 %v3164, %v3158
        %v4125 = vpack.c.b16 %v3171, %v3165
        %v4126 = vpack.c.b16 %v3172, %v3166
        %v4127 = vpack.c.b16 %v3173, %v3167
        %v4128 = vpack.c.b16 %v3174, %v3168
        %v4129 = vpack.c.b16 %v3175, %v3169
        %v4130 = vpack.c.b16 %v3176, %v3170
        %v4131 = vpack.c.b16 %v3183, %v3177
        %v4132 = vpack.c.b16 %v3184, %v3178
        %v4133 = vpack.c.b16 %v3185, %v3179
        %v4134 = vpack.c.b16 %v3186, %v3180
        %v4135 = vpack.c.b16 %v3187, %v3181
        %v4136 = vpack.c.b16 %v3188, %v3182
        %v4137 = vpack.c.b16 %v3195, %v3189
        %v4138 = vpack.c.b16 %v3196, %v3190
        %v4139 = vpack.c.b16 %v3197, %v3191
        %v4140 = vpack.c.b16 %v3198, %v3192
        %v4141 = vpack.c.b16 %v3199, %v3193
        %v4142 = vpack.c.b16 %v3200, %v3194
        %v4143 = vpack.c.b16 %v3207, %v3201
        %v4144 = vpack.c.b16 %v3208, %v3202
        %v4145 = vpack.c.b16 %v3209, %v3203
        %v4146 = vpack.c.b16 %v3210, %v3204
        %v4147 = vpack.c.b16 %v3211, %v3205
        %v4148 = vpack.c.b16 %v3212, %v3206
        %v4149 = vpack.c.b16 %v3219, %v3213
        %v4150 = vpack.c.b16 %v3220, %v3214
        %v4151 = vpack.c.b16 %v3221, %v3215
        %v4152 = vpack.c.b16 %v3222, %v3216
        %v4153 = vpack.c.b16 %v3223, %v3217
        %v4154 = vpack.c.b16 %v3224, %v3218
        %v4155 = vpack.c.b16 %v3231, %v3225
        %v4156 = vpack.c.b16 %v3232, %v3226
        %v4157 = vpack.c.b16 %v3233, %v3227
        %v4158 = vpack.c.b16 %v3234, %v3228
        %v4159 = vpack.c.b16 %v3235, %v3229
        %v4160 = vpack.c.b16 %v3236, %v3230
        %v4161 = vpack.c.b16 %v3243, %v3237
        %v4162 = vpack.c.b16 %v3244, %v3238
        %v4163 = vpack.c.b16 %v3245, %v3239
        %v4164 = vpack.c.b16 %v3246, %v3240
        %v4165 = vpack.c.b16 %v3247, %v3241
        %v4166 = vpack.c.b16 %v3248, %v3242
        %v4167 = vpack.c.b16 %v3255, %v3249
        %v4168 = vpack.c.b16 %v3256, %v3250
        %v4169 = vpack.c.b16 %v3257, %v3251
        %v4170 = vpack.c.b16 %v3258, %v3252
        %v4171 = vpack.c.b16 %v3259, %v3253
        %v4172 = vpack.c.b16 %v3260, %v3254
        %v4173 = vpack.c.b16 %v3267, %v3261
        %v4174 = vpack.c.b16 %v3268, %v3262
        %v4175 = vpack.c.b16 %v3269, %v3263
        %v4176 = vpack.c.b16 %v3270, %v3264
        %v4177 = vpack.c.b16 %v3271, %v3265
        %v4178 = vpack.c.b16 %v3272, %v3266
        %v4179 = vpack.c.b16 %v3279, %v3273
        %v4180 = vpack.c.b16 %v3280, %v3274
        %v4181 = vpack.c.b16 %v3281, %v3275
        %v4182 = vpack.c.b16 %v3282, %v3276
        %v4183 = vpack.c.b16 %v3283, %v3277
        %v4184 = vpack.c.b16 %v3284, %v3278
        %v4185 = vpack.c.b16 %v3291, %v3285
        %v4186 = vpack.c.b16 %v3292, %v3286
        %v4187 = vpack.c.b16 %v3293, %v3287
        %v4188 = vpack.c.b16 %v3294, %v3288
        %v4189 = vpack.c.b16 %v3295, %v3289
        %v4190 = vpack.c.b16 %v3296, %v3290
        %v4191 = vpack.c.b16 %v3303, %v3297
        %v4192 = vpack.c.b16 %v3304, %v3298
        %v4193 = vpack.c.b16 %v3305, %v3299
        %v4194 = vpack.c.b16 %v3306, %v3300
        %v4195 = vpack.c.b16 %v3307, %v3301
        %v4196 = vpack.c.b16 %v3308, %v3302
        %v4197 = vpack.c.b16 %v3315, %v3309
        %v4198 = vpack.c.b16 %v3316, %v3310
        %v4199 = vpack.c.b16 %v3317, %v3311
        %v4200 = vpack.c.b16 %v3318, %v3312
        %v4201 = vpack.c.b16 %v3319, %v3313
        %v4202 = vpack.c.b16 %v3320, %v3314
        %v4203 = vpack.c.b16 %v3327, %v3321
        %v4204 = vpack.c.b16 %v3328, %v3322
        %v4205 = vpack.c.b16 %v3329, %v3323
        %v4206 = vpack.c.b16 %v3330, %v3324
        %v4207 = vpack.c.b16 %v3331, %v3325
        %v4208 = vpack.c.b16 %v3332, %v3326
        %v4209 = vpack.c.b16 %v3339, %v3333
        %v4210 = vpack.c.b16 %v3340, %v3334
        %v4211 = vpack.c.b16 %v3341, %v3335
        %v4212 = vpack.c.b16 %v3342, %v3336
        %v4213 = vpack.c.b16 %v3343, %v3337
        %v4214 = vpack.c.b16 %v3344, %v3338
        %v4215 = vpack.c.b16 %v3351, %v3345
        %v4216 = vpack.c.b16 %v3352, %v3346
        %v4217 = vpack.c.b16 %v3353, %v3347
        %v4218 = vpack.c.b16 %v3354, %v3348
        %v4219 = vpack.c.b16 %v3355, %v3349
        %v4220 = vpack.c.b16 %v3356, %v3350
        %v4221 = vpack.c.b16 %v3363, %v3357
        %v4222 = vpack.c.b16 %v3364, %v3358
        %v4223 = vpack.c.b16 %v3365, %v3359
        %v4224 = vpack.c.b16 %v3366, %v3360
        %v4225 = vpack.c.b16 %v3367, %v3361
        %v4226 = vpack.c.b16 %v3368, %v3362
        %v4227 = vpack.c.b16 %v3375, %v3369
        %v4228 = vpack.c.b16 %v3376, %v3370
        %v4229 = vpack.c.b16 %v3377, %v3371
        %v4230 = vpack.c.b16 %v3378, %v3372
        %v4231 = vpack.c.b16 %v3379, %v3373
        %v4232 = vpack.c.b16 %v3380, %v3374
        %v4233 = vpack.c.b16 %v3387, %v3381
        %v4234 = vpack.c.b16 %v3388, %v3382
        %v4235 = vpack.c.b16 %v3389, %v3383
        %v4236 = vpack.c.b16 %v3390, %v3384
        %v4237 = vpack.c.b16 %v3391, %v3385
        %v4238 = vpack.c.b16 %v3392, %v3386
        %v4239 = vpack.c.b16 %v3399, %v3393
        %v4240 = vpack.c.b16 %v3400, %v3394
        %v4241 = vpack.c.b16 %v3401, %v3395
        %v4242 = vpack.c.b16 %v3402, %v3396
        %v4243 = vpack.c.b16 %v3403, %v3397
        %v4244 = vpack.c.b16 %v3404, %v3398
        %v4245 = vpack.c.b16 %v3411, %v3405
        %v4246 = vpack.c.b16 %v3412, %v3406
        %v4247 = vpack.c.b16 %v3413, %v3407
        %v4248 = vpack.c.b16 %v3414, %v3408
        %v4249 = vpack.c.b16 %v3415, %v3409
        %v4250 = vpack.c.b16 %v3416, %v3410
        %v4251 = vpack.c.b16 %v3423, %v3417
        %v4252 = vpack.c.b16 %v3424, %v3418
        %v4253 = vpack.c.b16 %v3425, %v3419
        %v4254 = vpack.c.b16 %v3426, %v3420
        %v4255 = vpack.c.b16 %v3427, %v3421
        %v4256 = vpack.c.b16 %v3428, %v3422
        %v4257 = vpack.c.b16 %v3435, %v3429
        %v4258 = vpack.c.b16 %v3436, %v3430
        %v4259 = vpack.c.b16 %v3437, %v3431
        %v4260 = vpack.c.b16 %v3438, %v3432
        %v4261 = vpack.c.b16 %v3439, %v3433
        %v4262 = vpack.c.b16 %v3440, %v3434
        %v4263 = vpack.c.b16 %v3447, %v3441
        %v4264 = vpack.c.b16 %v3448, %v3442
        %v4265 = vpack.c.b16 %v3449, %v3443
        %v4266 = vpack.c.b16 %v3450, %v3444
        %v4267 = vpack.c.b16 %v3451, %v3445
        %v4268 = vpack.c.b16 %v3452, %v3446
        %v4269 = vpack.c.b16 %v3459, %v3453
        %v4270 = vpack.c.b16 %v3460, %v3454
        %v4271 = vpack.c.b16 %v3461, %v3455
        %v4272 = vpack.c.b16 %v3462, %v3456
        %v4273 = vpack.c.b16 %v3463, %v3457
        %v4274 = vpack.c.b16 %v3464, %v3458
        %v4275 = vpack.c.b16 %v3471, %v3465
        %v4276 = vpack.c.b16 %v3472, %v3466
        %v4277 = vpack.c.b16 %v3473, %v3467
        %v4278 = vpack.c.b16 %v3474, %v3468
        %v4279 = vpack.c.b16 %v3475, %v3469
        %v4280 = vpack.c.b16 %v3476, %v3470
        %v4281 = vpack.c.b16 %v3483, %v3477
        %v4282 = vpack.c.b16 %v3484, %v3478
        %v4283 = vpack.c.b16 %v3485, %v3479
        %v4284 = vpack.c.b16 %v3486, %v3480
        %v4285 = vpack.c.b16 %v3487, %v3481
        %v4286 = vpack.c.b16 %v3488, %v3482
        %v4287 = vpack.c.b16 %v3495, %v3489
        %v4288 = vpack.c.b16 %v3496, %v3490
        %v4289 = vpack.c.b16 %v3497, %v3491
        %v4290 = vpack.c.b16 %v3498, %v3492
        %v4291 = vpack.c.b16 %v3499, %v3493
        %v4292 = vpack.c.b16 %v3500, %v3494
        %v4293 = vpack.c.b16 %v3507, %v3501
        %v4294 = vpack.c.b16 %v3508, %v3502
        %v4295 = vpack.c.b16 %v3509, %v3503
        %v4296 = vpack.c.b16 %v3510, %v3504
        %v4297 = vpack.c.b16 %v3511, %v3505
        %v4298 = vpack.c.b16 %v3512, %v3506
        %v4299 = vpack.c.b16 %v3519, %v3513
        %v4300 = vpack.c.b16 %v3520, %v3514
        %v4301 = vpack.c.b16 %v3521, %v3515
        %v4302 = vpack.c.b16 %v3522, %v3516
        %v4303 = vpack.c.b16 %v3523, %v3517
        %v4304 = vpack.c.b16 %v3524, %v3518
        %v4305 = vpack.c.b16 %v3531, %v3525
        %v4306 = vpack.c.b16 %v3532, %v3526
        %v4307 = vpack.c.b16 %v3533, %v3527
        %v4308 = vpack.c.b16 %v3534, %v3528
        %v4309 = vpack.c.b16 %v3535, %v3529
        %v4310 = vpack.c.b16 %v3536, %v3530
        %v4311 = vpack.c.b16 %v3543, %v3537
        %v4312 = vpack.c.b16 %v3544, %v3538
        %v4313 = vpack.c.b16 %v3545, %v3539
        %v4314 = vpack.c.b16 %v3546, %v3540
        %v4315 = vpack.c.b16 %v3547, %v3541
        %v4316 = vpack.c.b16 %v3548, %v3542
        %5085 = vmatprep.subr.bf16.mxu0 %v3550
        %5086 = vmatpush1.bf16.xpose.msra.mxu0 %v3549
        %5087 = vmatprep.subr.bf16.mxu0 %v3556
        %5088 = vmatpush1.bf16.xpose.msra.mxu0 %v3555
        %5089 = vmatprep.subr.bf16.mxu0 %v3562
        %5090 = vmatpush1.bf16.xpose.msra.mxu0 %v3561
        %5091 = vmatprep.subr.bf16.mxu0 %v3568
        %5092 = vmatpush1.bf16.xpose.msra.mxu0 %v3567
        %5093 = vmatprep.subr.bf16.mxu0 %v3574
        %5094 = vmatpush1.bf16.xpose.msra.mxu0 %v3573
        %5095 = vmatprep.subr.bf16.mxu0 %v3580
        %5096 = vmatpush1.bf16.xpose.msra.mxu0 %v3579
        %5097 = vmatprep.subr.bf16.mxu0 %v3586
        %5098 = vmatpush1.bf16.xpose.msra.mxu0 %v3585
        %5099 = vmatprep.subr.bf16.mxu0 %v3592
        %5100 = vmatpush1.bf16.xpose.msra.mxu0 %v3591
        %5101 = vmatprep.subr.bf16.mxu0 %v3598
        %5102 = vmatpush1.bf16.xpose.msra.mxu0 %v3597
        %5103 = vmatprep.subr.bf16.mxu0 %v3604
        %5104 = vmatpush1.bf16.xpose.msra.mxu0 %v3603
        %5105 = vmatprep.subr.bf16.mxu0 %v3610
        %5106 = vmatpush1.bf16.xpose.msra.mxu0 %v3609
        %5107 = vmatprep.subr.bf16.mxu0 %v3616
        %5108 = vmatpush1.bf16.xpose.msra.mxu0 %v3615
        %5109 = vmatprep.subr.bf16.mxu0 %v3622
        %5110 = vmatpush1.bf16.xpose.msra.mxu0 %v3621
        %5111 = vmatprep.subr.bf16.mxu0 %v3628
        %5112 = vmatpush1.bf16.xpose.msra.mxu0 %v3627
        %5113 = vmatprep.subr.bf16.mxu0 %v3634
        %5114 = vmatpush1.bf16.xpose.msra.mxu0 %v3633
        %5115 = vmatprep.subr.bf16.mxu0 %v3640
        %5116 = vmatpush1.bf16.xpose.msra.mxu0 %v3639
        %5117 = vmatprep.mubr.bf16.mxu0 %v388
        %5118 = vmatmul.mubr.bf16.gmra.mrb[0].mxu0 %v387
        %v5119 = vpop.f32.mrb[0].mxu0
        %v5120 = vadd.f32 %v1168, %v5119
        %v5121 = vpop.f32.mrb[0].mxu0
        %v5122 = vadd.f32 %v1172, %v5121
        %v5123 = vpop.f32.mrb[0].mxu0
        %v5124 = vpop.f32.mrb[0].mxu0
        %5125 = vdwg.mxu0
        %5126 = vmatprep.subr.bf16.mxu0 %v3552
        %5127 = vmatpush1.bf16.xpose.msra.mxu0 %v3551
        %5128 = vmatprep.subr.bf16.mxu0 %v3558
        %5129 = vmatpush1.bf16.xpose.msra.mxu0 %v3557
        %5130 = vmatprep.subr.bf16.mxu0 %v3564
        %5131 = vmatpush1.bf16.xpose.msra.mxu0 %v3563
        %5132 = vmatprep.subr.bf16.mxu0 %v3570
        %5133 = vmatpush1.bf16.xpose.msra.mxu0 %v3569
        %5134 = vmatprep.subr.bf16.mxu0 %v3576
        %5135 = vmatpush1.bf16.xpose.msra.mxu0 %v3575
        %5136 = vmatprep.subr.bf16.mxu0 %v3582
        %5137 = vmatpush1.bf16.xpose.msra.mxu0 %v3581
        %5138 = vmatprep.subr.bf16.mxu0 %v3588
        %5139 = vmatpush1.bf16.xpose.msra.mxu0 %v3587
        %5140 = vmatprep.subr.bf16.mxu0 %v3594
        %5141 = vmatpush1.bf16.xpose.msra.mxu0 %v3593
        %5142 = vmatprep.subr.bf16.mxu0 %v3600
        %5143 = vmatpush1.bf16.xpose.msra.mxu0 %v3599
        %5144 = vmatprep.subr.bf16.mxu0 %v3606
        %5145 = vmatpush1.bf16.xpose.msra.mxu0 %v3605
        %5146 = vmatprep.subr.bf16.mxu0 %v3612
        %5147 = vmatpush1.bf16.xpose.msra.mxu0 %v3611
        %5148 = vmatprep.subr.bf16.mxu0 %v3618
        %5149 = vmatpush1.bf16.xpose.msra.mxu0 %v3617
        %5150 = vmatprep.subr.bf16.mxu0 %v3624
        %5151 = vmatpush1.bf16.xpose.msra.mxu0 %v3623
        %5152 = vmatprep.subr.bf16.mxu0 %v3630
        %5153 = vmatpush1.bf16.xpose.msra.mxu0 %v3629
        %5154 = vmatprep.subr.bf16.mxu0 %v3636
        %5155 = vmatpush1.bf16.xpose.msra.mxu0 %v3635
        %5156 = vmatprep.subr.bf16.mxu0 %v3642
        %5157 = vmatpush1.bf16.xpose.msra.mxu0 %v3641
        %5158 = vmatprep.mubr.bf16.mxu0 %v390
        %5159 = vmatmul.mubr.bf16.gmra.mrb[0].mxu0 %v389
        %v5160 = vpop.f32.mrb[0].mxu0
        %v5161 = vadd.f32 %v5120, %v5160
        %v5162 = vpop.f32.mrb[0].mxu0
        %v5163 = vadd.f32 %v5122, %v5162
        %v5164 = vpop.f32.mrb[0].mxu0
        %v5165 = vpop.f32.mrb[0].mxu0
        %5166 = vdwg.mxu0
        %5167 = vmatprep.subr.bf16.mxu0 %v3554
        %5168 = vmatpush1.bf16.xpose.msra.mxu0 %v3553
        %5169 = vmatprep.subr.bf16.mxu0 %v3560
        %5170 = vmatpush1.bf16.xpose.msra.mxu0 %v3559
        %5171 = vmatprep.subr.bf16.mxu0 %v3566
        %5172 = vmatpush1.bf16.xpose.msra.mxu0 %v3565
        %5173 = vmatprep.subr.bf16.mxu0 %v3572
        %5174 = vmatpush1.bf16.xpose.msra.mxu0 %v3571
        %5175 = vmatprep.subr.bf16.mxu0 %v3578
        %5176 = vmatpush1.bf16.xpose.msra.mxu0 %v3577
        %5177 = vmatprep.subr.bf16.mxu0 %v3584
        %5178 = vmatpush1.bf16.xpose.msra.mxu0 %v3583
        %5179 = vmatprep.subr.bf16.mxu0 %v3590
        %5180 = vmatpush1.bf16.xpose.msra.mxu0 %v3589
        %5181 = vmatprep.subr.bf16.mxu0 %v3596
        %5182 = vmatpush1.bf16.xpose.msra.mxu0 %v3595
        %5183 = vmatprep.subr.bf16.mxu0 %v3602
        %5184 = vmatpush1.bf16.xpose.msra.mxu0 %v3601
        %5185 = vmatprep.subr.bf16.mxu0 %v3608
        %5186 = vmatpush1.bf16.xpose.msra.mxu0 %v3607
        %5187 = vmatprep.subr.bf16.mxu0 %v3614
        %5188 = vmatpush1.bf16.xpose.msra.mxu0 %v3613
        %5189 = vmatprep.subr.bf16.mxu0 %v3620
        %5190 = vmatpush1.bf16.xpose.msra.mxu0 %v3619
        %5191 = vmatprep.subr.bf16.mxu0 %v3626
        %5192 = vmatpush1.bf16.xpose.msra.mxu0 %v3625
        %5193 = vmatprep.subr.bf16.mxu0 %v3632
        %5194 = vmatpush1.bf16.xpose.msra.mxu0 %v3631
        %5195 = vmatprep.subr.bf16.mxu0 %v3638
        %5196 = vmatpush1.bf16.xpose.msra.mxu0 %v3637
        %5197 = vmatprep.subr.bf16.mxu0 %v3644
        %5198 = vmatpush1.bf16.xpose.msra.mxu0 %v3643
        %5199 = vmatprep.mubr.bf16.mxu0 %v392
        %5200 = vmatmul.mubr.bf16.gmra.mrb[0].mxu0 %v391
        %v5201 = vpop.f32.mrb[0].mxu0
        %v5202 = vadd.f32 %v5161, %v5201
        %v5203 = vpop.f32.mrb[0].mxu0
        %v5204 = vadd.f32 %v5163, %v5203
        %v5205 = vpop.f32.mrb[0].mxu0
        %v5206 = vpop.f32.mrb[0].mxu0
        %5207 = vdwg.mxu0
        %5208 = vmatprep.subr.bf16.mxu0 %v3646
        %5209 = vmatpush1.bf16.xpose.msra.mxu0 %v3645
        %5210 = vmatprep.subr.bf16.mxu0 %v3652
        %5211 = vmatpush1.bf16.xpose.msra.mxu0 %v3651
        %5212 = vmatprep.subr.bf16.mxu0 %v3658
        %5213 = vmatpush1.bf16.xpose.msra.mxu0 %v3657
        %5214 = vmatprep.subr.bf16.mxu0 %v3664
        %5215 = vmatpush1.bf16.xpose.msra.mxu0 %v3663
        %5216 = vmatprep.subr.bf16.mxu0 %v3670
        %5217 = vmatpush1.bf16.xpose.msra.mxu0 %v3669
        %5218 = vmatprep.subr.bf16.mxu0 %v3676
        %5219 = vmatpush1.bf16.xpose.msra.mxu0 %v3675
        %5220 = vmatprep.subr.bf16.mxu0 %v3682
        %5221 = vmatpush1.bf16.xpose.msra.mxu0 %v3681
        %5222 = vmatprep.subr.bf16.mxu0 %v3688
        %5223 = vmatpush1.bf16.xpose.msra.mxu0 %v3687
        %5224 = vmatprep.subr.bf16.mxu0 %v3694
        %5225 = vmatpush1.bf16.xpose.msra.mxu0 %v3693
        %5226 = vmatprep.subr.bf16.mxu0 %v3700
        %5227 = vmatpush1.bf16.xpose.msra.mxu0 %v3699
        %5228 = vmatprep.subr.bf16.mxu0 %v3706
        %5229 = vmatpush1.bf16.xpose.msra.mxu0 %v3705
        %5230 = vmatprep.subr.bf16.mxu0 %v3712
        %5231 = vmatpush1.bf16.xpose.msra.mxu0 %v3711
        %5232 = vmatprep.subr.bf16.mxu0 %v3718
        %5233 = vmatpush1.bf16.xpose.msra.mxu0 %v3717
        %5234 = vmatprep.subr.bf16.mxu0 %v3724
        %5235 = vmatpush1.bf16.xpose.msra.mxu0 %v3723
        %5236 = vmatprep.subr.bf16.mxu0 %v3730
        %5237 = vmatpush1.bf16.xpose.msra.mxu0 %v3729
        %5238 = vmatprep.subr.bf16.mxu0 %v3736
        %5239 = vmatpush1.bf16.xpose.msra.mxu0 %v3735
        %5240 = vmatprep.mubr.bf16.mxu0 %v388
        %5241 = vmatmul.mubr.bf16.gmra.mrb[0].mxu0 %v387
        %v5242 = vpop.f32.mrb[0].mxu0
        %v5243 = vadd.f32 %v1176, %v5242
        %v5244 = vpop.f32.mrb[0].mxu0
        %v5245 = vadd.f32 %v1180, %v5244
        %v5246 = vpop.f32.mrb[0].mxu0
        %v5247 = vpop.f32.mrb[0].mxu0
        %5248 = vdwg.mxu0
        %5249 = vmatprep.subr.bf16.mxu0 %v3648
        %5250 = vmatpush1.bf16.xpose.msra.mxu0 %v3647
        %5251 = vmatprep.subr.bf16.mxu0 %v3654
        %5252 = vmatpush1.bf16.xpose.msra.mxu0 %v3653
        %5253 = vmatprep.subr.bf16.mxu0 %v3660
        %5254 = vmatpush1.bf16.xpose.msra.mxu0 %v3659
        %5255 = vmatprep.subr.bf16.mxu0 %v3666
        %5256 = vmatpush1.bf16.xpose.msra.mxu0 %v3665
        %5257 = vmatprep.subr.bf16.mxu0 %v3672
        %5258 = vmatpush1.bf16.xpose.msra.mxu0 %v3671
        %5259 = vmatprep.subr.bf16.mxu0 %v3678
        %5260 = vmatpush1.bf16.xpose.msra.mxu0 %v3677
        %5261 = vmatprep.subr.bf16.mxu0 %v3684
        %5262 = vmatpush1.bf16.xpose.msra.mxu0 %v3683
        %5263 = vmatprep.subr.bf16.mxu0 %v3690
        %5264 = vmatpush1.bf16.xpose.msra.mxu0 %v3689
        %5265 = vmatprep.subr.bf16.mxu0 %v3696
        %5266 = vmatpush1.bf16.xpose.msra.mxu0 %v3695
        %5267 = vmatprep.subr.bf16.mxu0 %v3702
        %5268 = vmatpush1.bf16.xpose.msra.mxu0 %v3701
        %5269 = vmatprep.subr.bf16.mxu0 %v3708
        %5270 = vmatpush1.bf16.xpose.msra.mxu0 %v3707
        %5271 = vmatprep.subr.bf16.mxu0 %v3714
        %5272 = vmatpush1.bf16.xpose.msra.mxu0 %v3713
        %5273 = vmatprep.subr.bf16.mxu0 %v3720
        %5274 = vmatpush1.bf16.xpose.msra.mxu0 %v3719
        %5275 = vmatprep.subr.bf16.mxu0 %v3726
        %5276 = vmatpush1.bf16.xpose.msra.mxu0 %v3725
        %5277 = vmatprep.subr.bf16.mxu0 %v3732
        %5278 = vmatpush1.bf16.xpose.msra.mxu0 %v3731
        %5279 = vmatprep.subr.bf16.mxu0 %v3738
        %5280 = vmatpush1.bf16.xpose.msra.mxu0 %v3737
        %5281 = vmatprep.mubr.bf16.mxu0 %v390
        %5282 = vmatmul.mubr.bf16.gmra.mrb[0].mxu0 %v389
        %v5283 = vpop.f32.mrb[0].mxu0
        %v5284 = vadd.f32 %v5243, %v5283
        %v5285 = vpop.f32.mrb[0].mxu0
        %v5286 = vadd.f32 %v5245, %v5285
        %v5287 = vpop.f32.mrb[0].mxu0
        %v5288 = vpop.f32.mrb[0].mxu0
        %5289 = vdwg.mxu0
        %5290 = vmatprep.subr.bf16.mxu0 %v3650
        %5291 = vmatpush1.bf16.xpose.msra.mxu0 %v3649
        %5292 = vmatprep.subr.bf16.mxu0 %v3656
        %5293 = vmatpush1.bf16.xpose.msra.mxu0 %v3655
        %5294 = vmatprep.subr.bf16.mxu0 %v3662
        %5295 = vmatpush1.bf16.xpose.msra.mxu0 %v3661
        %5296 = vmatprep.subr.bf16.mxu0 %v3668
        %5297 = vmatpush1.bf16.xpose.msra.mxu0 %v3667
        %5298 = vmatprep.subr.bf16.mxu0 %v3674
        %5299 = vmatpush1.bf16.xpose.msra.mxu0 %v3673
        %5300 = vmatprep.subr.bf16.mxu0 %v3680
        %5301 = vmatpush1.bf16.xpose.msra.mxu0 %v3679
        %5302 = vmatprep.subr.bf16.mxu0 %v3686
        %5303 = vmatpush1.bf16.xpose.msra.mxu0 %v3685
        %5304 = vmatprep.subr.bf16.mxu0 %v3692
        %5305 = vmatpush1.bf16.xpose.msra.mxu0 %v3691
        %5306 = vmatprep.subr.bf16.mxu0 %v3698
        %5307 = vmatpush1.bf16.xpose.msra.mxu0 %v3697
        %5308 = vmatprep.subr.bf16.mxu0 %v3704
        %5309 = vmatpush1.bf16.xpose.msra.mxu0 %v3703
        %5310 = vmatprep.subr.bf16.mxu0 %v3710
        %5311 = vmatpush1.bf16.xpose.msra.mxu0 %v3709
        %5312 = vmatprep.subr.bf16.mxu0 %v3716
        %5313 = vmatpush1.bf16.xpose.msra.mxu0 %v3715
        %5314 = vmatprep.subr.bf16.mxu0 %v3722
        %5315 = vmatpush1.bf16.xpose.msra.mxu0 %v3721
        %5316 = vmatprep.subr.bf16.mxu0 %v3728
        %5317 = vmatpush1.bf16.xpose.msra.mxu0 %v3727
        %5318 = vmatprep.subr.bf16.mxu0 %v3734
        %5319 = vmatpush1.bf16.xpose.msra.mxu0 %v3733
        %5320 = vmatprep.subr.bf16.mxu0 %v3740
        %5321 = vmatpush1.bf16.xpose.msra.mxu0 %v3739
        %5322 = vmatprep.mubr.bf16.mxu0 %v392
        %5323 = vmatmul.mubr.bf16.gmra.mrb[0].mxu0 %v391
        %v5324 = vpop.f32.mrb[0].mxu0
        %v5325 = vadd.f32 %v5284, %v5324
        %v5326 = vpop.f32.mrb[0].mxu0
        %v5327 = vadd.f32 %v5286, %v5326
        %v5328 = vpop.f32.mrb[0].mxu0
        %v5329 = vpop.f32.mrb[0].mxu0
        %5330 = vdwg.mxu0
        %5331 = vmatprep.subr.bf16.mxu0 %v3742
        %5332 = vmatpush1.bf16.xpose.msra.mxu0 %v3741
        %5333 = vmatprep.subr.bf16.mxu0 %v3748
        %5334 = vmatpush1.bf16.xpose.msra.mxu0 %v3747
        %5335 = vmatprep.subr.bf16.mxu0 %v3754
        %5336 = vmatpush1.bf16.xpose.msra.mxu0 %v3753
        %5337 = vmatprep.subr.bf16.mxu0 %v3760
        %5338 = vmatpush1.bf16.xpose.msra.mxu0 %v3759
        %5339 = vmatprep.subr.bf16.mxu0 %v3766
        %5340 = vmatpush1.bf16.xpose.msra.mxu0 %v3765
        %5341 = vmatprep.subr.bf16.mxu0 %v3772
        %5342 = vmatpush1.bf16.xpose.msra.mxu0 %v3771
        %5343 = vmatprep.subr.bf16.mxu0 %v3778
        %5344 = vmatpush1.bf16.xpose.msra.mxu0 %v3777
        %5345 = vmatprep.subr.bf16.mxu0 %v3784
        %5346 = vmatpush1.bf16.xpose.msra.mxu0 %v3783
        %5347 = vmatprep.subr.bf16.mxu0 %v3790
        %5348 = vmatpush1.bf16.xpose.msra.mxu0 %v3789
        %5349 = vmatprep.subr.bf16.mxu0 %v3796
        %5350 = vmatpush1.bf16.xpose.msra.mxu0 %v3795
        %5351 = vmatprep.subr.bf16.mxu0 %v3802
        %5352 = vmatpush1.bf16.xpose.msra.mxu0 %v3801
        %5353 = vmatprep.subr.bf16.mxu0 %v3808
        %5354 = vmatpush1.bf16.xpose.msra.mxu0 %v3807
        %5355 = vmatprep.subr.bf16.mxu0 %v3814
        %5356 = vmatpush1.bf16.xpose.msra.mxu0 %v3813
        %5357 = vmatprep.subr.bf16.mxu0 %v3820
        %5358 = vmatpush1.bf16.xpose.msra.mxu0 %v3819
        %5359 = vmatprep.subr.bf16.mxu0 %v3826
        %5360 = vmatpush1.bf16.xpose.msra.mxu0 %v3825
        %5361 = vmatprep.subr.bf16.mxu0 %v3832
        %5362 = vmatpush1.bf16.xpose.msra.mxu0 %v3831
        %5363 = vmatprep.mubr.bf16.mxu0 %v388
        %5364 = vmatmul.mubr.bf16.gmra.mrb[0].mxu0 %v387
        %v5365 = vpop.f32.mrb[0].mxu0
        %v5366 = vadd.f32 %v1184, %v5365
        %v5367 = vpop.f32.mrb[0].mxu0
        %v5368 = vadd.f32 %v1188, %v5367
        %v5369 = vpop.f32.mrb[0].mxu0
        %v5370 = vpop.f32.mrb[0].mxu0
        %5371 = vdwg.mxu0
        %5372 = vmatprep.subr.bf16.mxu0 %v3744
        %5373 = vmatpush1.bf16.xpose.msra.mxu0 %v3743
        %5374 = vmatprep.subr.bf16.mxu0 %v3750
        %5375 = vmatpush1.bf16.xpose.msra.mxu0 %v3749
        %5376 = vmatprep.subr.bf16.mxu0 %v3756
        %5377 = vmatpush1.bf16.xpose.msra.mxu0 %v3755
        %5378 = vmatprep.subr.bf16.mxu0 %v3762
        %5379 = vmatpush1.bf16.xpose.msra.mxu0 %v3761
        %5380 = vmatprep.subr.bf16.mxu0 %v3768
        %5381 = vmatpush1.bf16.xpose.msra.mxu0 %v3767
        %5382 = vmatprep.subr.bf16.mxu0 %v3774
        %5383 = vmatpush1.bf16.xpose.msra.mxu0 %v3773
        %5384 = vmatprep.subr.bf16.mxu0 %v3780
        %5385 = vmatpush1.bf16.xpose.msra.mxu0 %v3779
        %5386 = vmatprep.subr.bf16.mxu0 %v3786
        %5387 = vmatpush1.bf16.xpose.msra.mxu0 %v3785
        %5388 = vmatprep.subr.bf16.mxu0 %v3792
        %5389 = vmatpush1.bf16.xpose.msra.mxu0 %v3791
        %5390 = vmatprep.subr.bf16.mxu0 %v3798
        %5391 = vmatpush1.bf16.xpose.msra.mxu0 %v3797
        %5392 = vmatprep.subr.bf16.mxu0 %v3804
        %5393 = vmatpush1.bf16.xpose.msra.mxu0 %v3803
        %5394 = vmatprep.subr.bf16.mxu0 %v3810
        %5395 = vmatpush1.bf16.xpose.msra.mxu0 %v3809
        %5396 = vmatprep.subr.bf16.mxu0 %v3816
        %5397 = vmatpush1.bf16.xpose.msra.mxu0 %v3815
        %5398 = vmatprep.subr.bf16.mxu0 %v3822
        %5399 = vmatpush1.bf16.xpose.msra.mxu0 %v3821
        %5400 = vmatprep.subr.bf16.mxu0 %v3828
        %5401 = vmatpush1.bf16.xpose.msra.mxu0 %v3827
        %5402 = vmatprep.subr.bf16.mxu0 %v3834
        %5403 = vmatpush1.bf16.xpose.msra.mxu0 %v3833
        %5404 = vmatprep.mubr.bf16.mxu0 %v390
        %5405 = vmatmul.mubr.bf16.gmra.mrb[0].mxu0 %v389
        %v5406 = vpop.f32.mrb[0].mxu0
        %v5407 = vadd.f32 %v5366, %v5406
        %v5408 = vpop.f32.mrb[0].mxu0
        %v5409 = vadd.f32 %v5368, %v5408
        %v5410 = vpop.f32.mrb[0].mxu0
        %v5411 = vpop.f32.mrb[0].mxu0
        %5412 = vdwg.mxu0
        %5413 = vmatprep.subr.bf16.mxu0 %v3746
        %5414 = vmatpush1.bf16.xpose.msra.mxu0 %v3745
        %5415 = vmatprep.subr.bf16.mxu0 %v3752
        %5416 = vmatpush1.bf16.xpose.msra.mxu0 %v3751
        %5417 = vmatprep.subr.bf16.mxu0 %v3758
        %5418 = vmatpush1.bf16.xpose.msra.mxu0 %v3757
        %5419 = vmatprep.subr.bf16.mxu0 %v3764
        %5420 = vmatpush1.bf16.xpose.msra.mxu0 %v3763
        %5421 = vmatprep.subr.bf16.mxu0 %v3770
        %5422 = vmatpush1.bf16.xpose.msra.mxu0 %v3769
        %5423 = vmatprep.subr.bf16.mxu0 %v3776
        %5424 = vmatpush1.bf16.xpose.msra.mxu0 %v3775
        %5425 = vmatprep.subr.bf16.mxu0 %v3782
        %5426 = vmatpush1.bf16.xpose.msra.mxu0 %v3781
        %5427 = vmatprep.subr.bf16.mxu0 %v3788
        %5428 = vmatpush1.bf16.xpose.msra.mxu0 %v3787
        %5429 = vmatprep.subr.bf16.mxu0 %v3794
        %5430 = vmatpush1.bf16.xpose.msra.mxu0 %v3793
        %5431 = vmatprep.subr.bf16.mxu0 %v3800
        %5432 = vmatpush1.bf16.xpose.msra.mxu0 %v3799
        %5433 = vmatprep.subr.bf16.mxu0 %v3806
        %5434 = vmatpush1.bf16.xpose.msra.mxu0 %v3805
        %5435 = vmatprep.subr.bf16.mxu0 %v3812
        %5436 = vmatpush1.bf16.xpose.msra.mxu0 %v3811
        %5437 = vmatprep.subr.bf16.mxu0 %v3818
        %5438 = vmatpush1.bf16.xpose.msra.mxu0 %v3817
        %5439 = vmatprep.subr.bf16.mxu0 %v3824
        %5440 = vmatpush1.bf16.xpose.msra.mxu0 %v3823
        %5441 = vmatprep.subr.bf16.mxu0 %v3830
        %5442 = vmatpush1.bf16.xpose.msra.mxu0 %v3829
        %5443 = vmatprep.subr.bf16.mxu0 %v3836
        %5444 = vmatpush1.bf16.xpose.msra.mxu0 %v3835
        %5445 = vmatprep.mubr.bf16.mxu0 %v392
        %5446 = vmatmul.mubr.bf16.gmra.mrb[0].mxu0 %v391
        %v5447 = vpop.f32.mrb[0].mxu0
        %v5448 = vadd.f32 %v5407, %v5447
        %v5449 = vpop.f32.mrb[0].mxu0
        %v5450 = vadd.f32 %v5409, %v5449
        %v5451 = vpop.f32.mrb[0].mxu0
        %v5452 = vpop.f32.mrb[0].mxu0
        %5453 = vdwg.mxu0
        %5454 = vmatprep.subr.bf16.mxu0 %v3838
        %5455 = vmatpush1.bf16.xpose.msra.mxu0 %v3837
        %5456 = vmatprep.subr.bf16.mxu0 %v3844
        %5457 = vmatpush1.bf16.xpose.msra.mxu0 %v3843
        %5458 = vmatprep.subr.bf16.mxu0 %v3850
        %5459 = vmatpush1.bf16.xpose.msra.mxu0 %v3849
        %5460 = vmatprep.subr.bf16.mxu0 %v3856
        %5461 = vmatpush1.bf16.xpose.msra.mxu0 %v3855
        %5462 = vmatprep.subr.bf16.mxu0 %v3862
        %5463 = vmatpush1.bf16.xpose.msra.mxu0 %v3861
        %5464 = vmatprep.subr.bf16.mxu0 %v3868
        %5465 = vmatpush1.bf16.xpose.msra.mxu0 %v3867
        %5466 = vmatprep.subr.bf16.mxu0 %v3874
        %5467 = vmatpush1.bf16.xpose.msra.mxu0 %v3873
        %5468 = vmatprep.subr.bf16.mxu0 %v3880
        %5469 = vmatpush1.bf16.xpose.msra.mxu0 %v3879
        %5470 = vmatprep.subr.bf16.mxu0 %v3886
        %5471 = vmatpush1.bf16.xpose.msra.mxu0 %v3885
        %5472 = vmatprep.subr.bf16.mxu0 %v3892
        %5473 = vmatpush1.bf16.xpose.msra.mxu0 %v3891
        %5474 = vmatprep.subr.bf16.mxu0 %v3898
        %5475 = vmatpush1.bf16.xpose.msra.mxu0 %v3897
        %5476 = vmatprep.subr.bf16.mxu0 %v3904
        %5477 = vmatpush1.bf16.xpose.msra.mxu0 %v3903
        %5478 = vmatprep.subr.bf16.mxu0 %v3910
        %5479 = vmatpush1.bf16.xpose.msra.mxu0 %v3909
        %5480 = vmatprep.subr.bf16.mxu0 %v3916
        %5481 = vmatpush1.bf16.xpose.msra.mxu0 %v3915
        %5482 = vmatprep.subr.bf16.mxu0 %v3922
        %5483 = vmatpush1.bf16.xpose.msra.mxu0 %v3921
        %5484 = vmatprep.subr.bf16.mxu0 %v3928
        %5485 = vmatpush1.bf16.xpose.msra.mxu0 %v3927
        %5486 = vmatprep.mubr.bf16.mxu0 %v388
        %5487 = vmatmul.mubr.bf16.gmra.mrb[0].mxu0 %v387
        %v5488 = vpop.f32.mrb[0].mxu0
        %v5489 = vadd.f32 %v1192, %v5488
        %v5490 = vpop.f32.mrb[0].mxu0
        %v5491 = vadd.f32 %v1196, %v5490
        %v5492 = vpop.f32.mrb[0].mxu0
        %v5493 = vpop.f32.mrb[0].mxu0
        %5494 = vdwg.mxu0
        %5495 = vmatprep.subr.bf16.mxu0 %v3840
        %5496 = vmatpush1.bf16.xpose.msra.mxu0 %v3839
        %5497 = vmatprep.subr.bf16.mxu0 %v3846
        %5498 = vmatpush1.bf16.xpose.msra.mxu0 %v3845
        %5499 = vmatprep.subr.bf16.mxu0 %v3852
        %5500 = vmatpush1.bf16.xpose.msra.mxu0 %v3851
        %5501 = vmatprep.subr.bf16.mxu0 %v3858
        %5502 = vmatpush1.bf16.xpose.msra.mxu0 %v3857
        %5503 = vmatprep.subr.bf16.mxu0 %v3864
        %5504 = vmatpush1.bf16.xpose.msra.mxu0 %v3863
        %5505 = vmatprep.subr.bf16.mxu0 %v3870
        %5506 = vmatpush1.bf16.xpose.msra.mxu0 %v3869
        %5507 = vmatprep.subr.bf16.mxu0 %v3876
        %5508 = vmatpush1.bf16.xpose.msra.mxu0 %v3875
        %5509 = vmatprep.subr.bf16.mxu0 %v3882
        %5510 = vmatpush1.bf16.xpose.msra.mxu0 %v3881
        %5511 = vmatprep.subr.bf16.mxu0 %v3888
        %5512 = vmatpush1.bf16.xpose.msra.mxu0 %v3887
        %5513 = vmatprep.subr.bf16.mxu0 %v3894
        %5514 = vmatpush1.bf16.xpose.msra.mxu0 %v3893
        %5515 = vmatprep.subr.bf16.mxu0 %v3900
        %5516 = vmatpush1.bf16.xpose.msra.mxu0 %v3899
        %5517 = vmatprep.subr.bf16.mxu0 %v3906
        %5518 = vmatpush1.bf16.xpose.msra.mxu0 %v3905
        %5519 = vmatprep.subr.bf16.mxu0 %v3912
        %5520 = vmatpush1.bf16.xpose.msra.mxu0 %v3911
        %5521 = vmatprep.subr.bf16.mxu0 %v3918
        %5522 = vmatpush1.bf16.xpose.msra.mxu0 %v3917
        %5523 = vmatprep.subr.bf16.mxu0 %v3924
        %5524 = vmatpush1.bf16.xpose.msra.mxu0 %v3923
        %5525 = vmatprep.subr.bf16.mxu0 %v3930
        %5526 = vmatpush1.bf16.xpose.msra.mxu0 %v3929
        %5527 = vmatprep.mubr.bf16.mxu0 %v390
        %5528 = vmatmul.mubr.bf16.gmra.mrb[0].mxu0 %v389
        %v5529 = vpop.f32.mrb[0].mxu0
        %v5530 = vadd.f32 %v5489, %v5529
        %v5531 = vpop.f32.mrb[0].mxu0
        %v5532 = vadd.f32 %v5491, %v5531
        %v5533 = vpop.f32.mrb[0].mxu0
        %v5534 = vpop.f32.mrb[0].mxu0
        %5535 = vdwg.mxu0
        %5536 = vmatprep.subr.bf16.mxu0 %v3842
        %5537 = vmatpush1.bf16.xpose.msra.mxu0 %v3841
        %5538 = vmatprep.subr.bf16.mxu0 %v3848
        %5539 = vmatpush1.bf16.xpose.msra.mxu0 %v3847
        %5540 = vmatprep.subr.bf16.mxu0 %v3854
        %5541 = vmatpush1.bf16.xpose.msra.mxu0 %v3853
        %5542 = vmatprep.subr.bf16.mxu0 %v3860
        %5543 = vmatpush1.bf16.xpose.msra.mxu0 %v3859
        %5544 = vmatprep.subr.bf16.mxu0 %v3866
        %5545 = vmatpush1.bf16.xpose.msra.mxu0 %v3865
        %5546 = vmatprep.subr.bf16.mxu0 %v3872
        %5547 = vmatpush1.bf16.xpose.msra.mxu0 %v3871
        %5548 = vmatprep.subr.bf16.mxu0 %v3878
        %5549 = vmatpush1.bf16.xpose.msra.mxu0 %v3877
        %5550 = vmatprep.subr.bf16.mxu0 %v3884
        %5551 = vmatpush1.bf16.xpose.msra.mxu0 %v3883
        %5552 = vmatprep.subr.bf16.mxu0 %v3890
        %5553 = vmatpush1.bf16.xpose.msra.mxu0 %v3889
        %5554 = vmatprep.subr.bf16.mxu0 %v3896
        %5555 = vmatpush1.bf16.xpose.msra.mxu0 %v3895
        %5556 = vmatprep.subr.bf16.mxu0 %v3902
        %5557 = vmatpush1.bf16.xpose.msra.mxu0 %v3901
        %5558 = vmatprep.subr.bf16.mxu0 %v3908
        %5559 = vmatpush1.bf16.xpose.msra.mxu0 %v3907
        %5560 = vmatprep.subr.bf16.mxu0 %v3914
        %5561 = vmatpush1.bf16.xpose.msra.mxu0 %v3913
        %5562 = vmatprep.subr.bf16.mxu0 %v3920
        %5563 = vmatpush1.bf16.xpose.msra.mxu0 %v3919
        %5564 = vmatprep.subr.bf16.mxu0 %v3926
        %5565 = vmatpush1.bf16.xpose.msra.mxu0 %v3925
        %5566 = vmatprep.subr.bf16.mxu0 %v3932
        %5567 = vmatpush1.bf16.xpose.msra.mxu0 %v3931
        %5568 = vmatprep.mubr.bf16.mxu0 %v392
        %5569 = vmatmul.mubr.bf16.gmra.mrb[0].mxu0 %v391
        %v5570 = vpop.f32.mrb[0].mxu0
        %v5571 = vadd.f32 %v5530, %v5570
        %v5572 = vpop.f32.mrb[0].mxu0
        %v5573 = vadd.f32 %v5532, %v5572
        %v5574 = vpop.f32.mrb[0].mxu0
        %v5575 = vpop.f32.mrb[0].mxu0
        %5576 = vdwg.mxu0
        %5577 = vmatprep.subr.bf16.mxu0 %v3934
        %5578 = vmatpush1.bf16.xpose.msra.mxu0 %v3933
        %5579 = vmatprep.subr.bf16.mxu0 %v3940
        %5580 = vmatpush1.bf16.xpose.msra.mxu0 %v3939
        %5581 = vmatprep.subr.bf16.mxu0 %v3946
        %5582 = vmatpush1.bf16.xpose.msra.mxu0 %v3945
        %5583 = vmatprep.subr.bf16.mxu0 %v3952
        %5584 = vmatpush1.bf16.xpose.msra.mxu0 %v3951
        %5585 = vmatprep.subr.bf16.mxu0 %v3958
        %5586 = vmatpush1.bf16.xpose.msra.mxu0 %v3957
        %5587 = vmatprep.subr.bf16.mxu0 %v3964
        %5588 = vmatpush1.bf16.xpose.msra.mxu0 %v3963
        %5589 = vmatprep.subr.bf16.mxu0 %v3970
        %5590 = vmatpush1.bf16.xpose.msra.mxu0 %v3969
        %5591 = vmatprep.subr.bf16.mxu0 %v3976
        %5592 = vmatpush1.bf16.xpose.msra.mxu0 %v3975
        %5593 = vmatprep.subr.bf16.mxu0 %v3982
        %5594 = vmatpush1.bf16.xpose.msra.mxu0 %v3981
        %5595 = vmatprep.subr.bf16.mxu0 %v3988
        %5596 = vmatpush1.bf16.xpose.msra.mxu0 %v3987
        %5597 = vmatprep.subr.bf16.mxu0 %v3994
        %5598 = vmatpush1.bf16.xpose.msra.mxu0 %v3993
        %5599 = vmatprep.subr.bf16.mxu0 %v4000
        %5600 = vmatpush1.bf16.xpose.msra.mxu0 %v3999
        %5601 = vmatprep.subr.bf16.mxu0 %v4006
        %5602 = vmatpush1.bf16.xpose.msra.mxu0 %v4005
        %5603 = vmatprep.subr.bf16.mxu0 %v4012
        %5604 = vmatpush1.bf16.xpose.msra.mxu0 %v4011
        %5605 = vmatprep.subr.bf16.mxu0 %v4018
        %5606 = vmatpush1.bf16.xpose.msra.mxu0 %v4017
        %5607 = vmatprep.subr.bf16.mxu0 %v4024
        %5608 = vmatpush1.bf16.xpose.msra.mxu0 %v4023
        %5609 = vmatprep.mubr.bf16.mxu0 %v388
        %5610 = vmatmul.mubr.bf16.gmra.mrb[0].mxu0 %v387
        %v5611 = vpop.f32.mrb[0].mxu0
        %v5612 = vadd.f32 %v1200, %v5611
        %v5613 = vpop.f32.mrb[0].mxu0
        %v5614 = vadd.f32 %v1204, %v5613
        %v5615 = vpop.f32.mrb[0].mxu0
        %v5616 = vpop.f32.mrb[0].mxu0
        %5617 = vdwg.mxu0
        %5618 = vmatprep.subr.bf16.mxu0 %v3936
        %5619 = vmatpush1.bf16.xpose.msra.mxu0 %v3935
        %5620 = vmatprep.subr.bf16.mxu0 %v3942
        %5621 = vmatpush1.bf16.xpose.msra.mxu0 %v3941
        %5622 = vmatprep.subr.bf16.mxu0 %v3948
        %5623 = vmatpush1.bf16.xpose.msra.mxu0 %v3947
        %5624 = vmatprep.subr.bf16.mxu0 %v3954
        %5625 = vmatpush1.bf16.xpose.msra.mxu0 %v3953
        %5626 = vmatprep.subr.bf16.mxu0 %v3960
        %5627 = vmatpush1.bf16.xpose.msra.mxu0 %v3959
        %5628 = vmatprep.subr.bf16.mxu0 %v3966
        %5629 = vmatpush1.bf16.xpose.msra.mxu0 %v3965
        %5630 = vmatprep.subr.bf16.mxu0 %v3972
        %5631 = vmatpush1.bf16.xpose.msra.mxu0 %v3971
        %5632 = vmatprep.subr.bf16.mxu0 %v3978
        %5633 = vmatpush1.bf16.xpose.msra.mxu0 %v3977
        %5634 = vmatprep.subr.bf16.mxu0 %v3984
        %5635 = vmatpush1.bf16.xpose.msra.mxu0 %v3983
        %5636 = vmatprep.subr.bf16.mxu0 %v3990
        %5637 = vmatpush1.bf16.xpose.msra.mxu0 %v3989
        %5638 = vmatprep.subr.bf16.mxu0 %v3996
        %5639 = vmatpush1.bf16.xpose.msra.mxu0 %v3995
        %5640 = vmatprep.subr.bf16.mxu0 %v4002
        %5641 = vmatpush1.bf16.xpose.msra.mxu0 %v4001
        %5642 = vmatprep.subr.bf16.mxu0 %v4008
        %5643 = vmatpush1.bf16.xpose.msra.mxu0 %v4007
        %5644 = vmatprep.subr.bf16.mxu0 %v4014
        %5645 = vmatpush1.bf16.xpose.msra.mxu0 %v4013
        %5646 = vmatprep.subr.bf16.mxu0 %v4020
        %5647 = vmatpush1.bf16.xpose.msra.mxu0 %v4019
        %5648 = vmatprep.subr.bf16.mxu0 %v4026
        %5649 = vmatpush1.bf16.xpose.msra.mxu0 %v4025
        %5650 = vmatprep.mubr.bf16.mxu0 %v390
        %5651 = vmatmul.mubr.bf16.gmra.mrb[0].mxu0 %v389
        %v5652 = vpop.f32.mrb[0].mxu0
        %v5653 = vadd.f32 %v5612, %v5652
        %v5654 = vpop.f32.mrb[0].mxu0
        %v5655 = vadd.f32 %v5614, %v5654
        %v5656 = vpop.f32.mrb[0].mxu0
        %v5657 = vpop.f32.mrb[0].mxu0
        %5658 = vdwg.mxu0
        %5659 = vmatprep.subr.bf16.mxu0 %v3938
        %5660 = vmatpush1.bf16.xpose.msra.mxu0 %v3937
        %5661 = vmatprep.subr.bf16.mxu0 %v3944
        %5662 = vmatpush1.bf16.xpose.msra.mxu0 %v3943
        %5663 = vmatprep.subr.bf16.mxu0 %v3950
        %5664 = vmatpush1.bf16.xpose.msra.mxu0 %v3949
        %5665 = vmatprep.subr.bf16.mxu0 %v3956
        %5666 = vmatpush1.bf16.xpose.msra.mxu0 %v3955
        %5667 = vmatprep.subr.bf16.mxu0 %v3962
        %5668 = vmatpush1.bf16.xpose.msra.mxu0 %v3961
        %5669 = vmatprep.subr.bf16.mxu0 %v3968
        %5670 = vmatpush1.bf16.xpose.msra.mxu0 %v3967
        %5671 = vmatprep.subr.bf16.mxu0 %v3974
        %5672 = vmatpush1.bf16.xpose.msra.mxu0 %v3973
        %5673 = vmatprep.subr.bf16.mxu0 %v3980
        %5674 = vmatpush1.bf16.xpose.msra.mxu0 %v3979
        %5675 = vmatprep.subr.bf16.mxu0 %v3986
        %5676 = vmatpush1.bf16.xpose.msra.mxu0 %v3985
        %5677 = vmatprep.subr.bf16.mxu0 %v3992
        %5678 = vmatpush1.bf16.xpose.msra.mxu0 %v3991
        %5679 = vmatprep.subr.bf16.mxu0 %v3998
        %5680 = vmatpush1.bf16.xpose.msra.mxu0 %v3997
        %5681 = vmatprep.subr.bf16.mxu0 %v4004
        %5682 = vmatpush1.bf16.xpose.msra.mxu0 %v4003
        %5683 = vmatprep.subr.bf16.mxu0 %v4010
        %5684 = vmatpush1.bf16.xpose.msra.mxu0 %v4009
        %5685 = vmatprep.subr.bf16.mxu0 %v4016
        %5686 = vmatpush1.bf16.xpose.msra.mxu0 %v4015
        %5687 = vmatprep.subr.bf16.mxu0 %v4022
        %5688 = vmatpush1.bf16.xpose.msra.mxu0 %v4021
        %5689 = vmatprep.subr.bf16.mxu0 %v4028
        %5690 = vmatpush1.bf16.xpose.msra.mxu0 %v4027
        %5691 = vmatprep.mubr.bf16.mxu0 %v392
        %5692 = vmatmul.mubr.bf16.gmra.mrb[0].mxu0 %v391
        %v5693 = vpop.f32.mrb[0].mxu0
        %v5694 = vadd.f32 %v5653, %v5693
        %v5695 = vpop.f32.mrb[0].mxu0
        %v5696 = vadd.f32 %v5655, %v5695
        %v5697 = vpop.f32.mrb[0].mxu0
        %v5698 = vpop.f32.mrb[0].mxu0
        %5699 = vdwg.mxu0
        %5700 = vmatprep.subr.bf16.mxu0 %v4030
        %5701 = vmatpush1.bf16.xpose.msra.mxu0 %v4029
        %5702 = vmatprep.subr.bf16.mxu0 %v4036
        %5703 = vmatpush1.bf16.xpose.msra.mxu0 %v4035
        %5704 = vmatprep.subr.bf16.mxu0 %v4042
        %5705 = vmatpush1.bf16.xpose.msra.mxu0 %v4041
        %5706 = vmatprep.subr.bf16.mxu0 %v4048
        %5707 = vmatpush1.bf16.xpose.msra.mxu0 %v4047
        %5708 = vmatprep.subr.bf16.mxu0 %v4054
        %5709 = vmatpush1.bf16.xpose.msra.mxu0 %v4053
        %5710 = vmatprep.subr.bf16.mxu0 %v4060
        %5711 = vmatpush1.bf16.xpose.msra.mxu0 %v4059
        %5712 = vmatprep.subr.bf16.mxu0 %v4066
        %5713 = vmatpush1.bf16.xpose.msra.mxu0 %v4065
        %5714 = vmatprep.subr.bf16.mxu0 %v4072
        %5715 = vmatpush1.bf16.xpose.msra.mxu0 %v4071
        %5716 = vmatprep.subr.bf16.mxu0 %v4078
        %5717 = vmatpush1.bf16.xpose.msra.mxu0 %v4077
        %5718 = vmatprep.subr.bf16.mxu0 %v4084
        %5719 = vmatpush1.bf16.xpose.msra.mxu0 %v4083
        %5720 = vmatprep.subr.bf16.mxu0 %v4090
        %5721 = vmatpush1.bf16.xpose.msra.mxu0 %v4089
        %5722 = vmatprep.subr.bf16.mxu0 %v4096
        %5723 = vmatpush1.bf16.xpose.msra.mxu0 %v4095
        %5724 = vmatprep.subr.bf16.mxu0 %v4102
        %5725 = vmatpush1.bf16.xpose.msra.mxu0 %v4101
        %5726 = vmatprep.subr.bf16.mxu0 %v4108
        %5727 = vmatpush1.bf16.xpose.msra.mxu0 %v4107
        %5728 = vmatprep.subr.bf16.mxu0 %v4114
        %5729 = vmatpush1.bf16.xpose.msra.mxu0 %v4113
        %5730 = vmatprep.subr.bf16.mxu0 %v4120
        %5731 = vmatpush1.bf16.xpose.msra.mxu0 %v4119
        %5732 = vmatprep.mubr.bf16.mxu0 %v388
        %5733 = vmatmul.mubr.bf16.gmra.mrb[0].mxu0 %v387
        %v5734 = vpop.f32.mrb[0].mxu0
        %v5735 = vadd.f32 %v1208, %v5734
        %v5736 = vpop.f32.mrb[0].mxu0
        %v5737 = vadd.f32 %v1212, %v5736
        %v5738 = vpop.f32.mrb[0].mxu0
        %v5739 = vpop.f32.mrb[0].mxu0
        %5740 = vdwg.mxu0
        %5741 = vmatprep.subr.bf16.mxu0 %v4032
        %5742 = vmatpush1.bf16.xpose.msra.mxu0 %v4031
        %5743 = vmatprep.subr.bf16.mxu0 %v4038
        %5744 = vmatpush1.bf16.xpose.msra.mxu0 %v4037
        %5745 = vmatprep.subr.bf16.mxu0 %v4044
        %5746 = vmatpush1.bf16.xpose.msra.mxu0 %v4043
        %5747 = vmatprep.subr.bf16.mxu0 %v4050
        %5748 = vmatpush1.bf16.xpose.msra.mxu0 %v4049
        %5749 = vmatprep.subr.bf16.mxu0 %v4056
        %5750 = vmatpush1.bf16.xpose.msra.mxu0 %v4055
        %5751 = vmatprep.subr.bf16.mxu0 %v4062
        %5752 = vmatpush1.bf16.xpose.msra.mxu0 %v4061
        %5753 = vmatprep.subr.bf16.mxu0 %v4068
        %5754 = vmatpush1.bf16.xpose.msra.mxu0 %v4067
        %5755 = vmatprep.subr.bf16.mxu0 %v4074
        %5756 = vmatpush1.bf16.xpose.msra.mxu0 %v4073
        %5757 = vmatprep.subr.bf16.mxu0 %v4080
        %5758 = vmatpush1.bf16.xpose.msra.mxu0 %v4079
        %5759 = vmatprep.subr.bf16.mxu0 %v4086
        %5760 = vmatpush1.bf16.xpose.msra.mxu0 %v4085
        %5761 = vmatprep.subr.bf16.mxu0 %v4092
        %5762 = vmatpush1.bf16.xpose.msra.mxu0 %v4091
        %5763 = vmatprep.subr.bf16.mxu0 %v4098
        %5764 = vmatpush1.bf16.xpose.msra.mxu0 %v4097
        %5765 = vmatprep.subr.bf16.mxu0 %v4104
        %5766 = vmatpush1.bf16.xpose.msra.mxu0 %v4103
        %5767 = vmatprep.subr.bf16.mxu0 %v4110
        %5768 = vmatpush1.bf16.xpose.msra.mxu0 %v4109
        %5769 = vmatprep.subr.bf16.mxu0 %v4116
        %5770 = vmatpush1.bf16.xpose.msra.mxu0 %v4115
        %5771 = vmatprep.subr.bf16.mxu0 %v4122
        %5772 = vmatpush1.bf16.xpose.msra.mxu0 %v4121
        %5773 = vmatprep.mubr.bf16.mxu0 %v390
        %5774 = vmatmul.mubr.bf16.gmra.mrb[0].mxu0 %v389
        %v5775 = vpop.f32.mrb[0].mxu0
        %v5776 = vadd.f32 %v5735, %v5775
        %v5777 = vpop.f32.mrb[0].mxu0
        %v5778 = vadd.f32 %v5737, %v5777
        %v5779 = vpop.f32.mrb[0].mxu0
        %v5780 = vpop.f32.mrb[0].mxu0
        %5781 = vdwg.mxu0
        %5782 = vmatprep.subr.bf16.mxu0 %v4034
        %5783 = vmatpush1.bf16.xpose.msra.mxu0 %v4033
        %5784 = vmatprep.subr.bf16.mxu0 %v4040
        %5785 = vmatpush1.bf16.xpose.msra.mxu0 %v4039
        %5786 = vmatprep.subr.bf16.mxu0 %v4046
        %5787 = vmatpush1.bf16.xpose.msra.mxu0 %v4045
        %5788 = vmatprep.subr.bf16.mxu0 %v4052
        %5789 = vmatpush1.bf16.xpose.msra.mxu0 %v4051
        %5790 = vmatprep.subr.bf16.mxu0 %v4058
        %5791 = vmatpush1.bf16.xpose.msra.mxu0 %v4057
        %5792 = vmatprep.subr.bf16.mxu0 %v4064
        %5793 = vmatpush1.bf16.xpose.msra.mxu0 %v4063
        %5794 = vmatprep.subr.bf16.mxu0 %v4070
        %5795 = vmatpush1.bf16.xpose.msra.mxu0 %v4069
        %5796 = vmatprep.subr.bf16.mxu0 %v4076
        %5797 = vmatpush1.bf16.xpose.msra.mxu0 %v4075
        %5798 = vmatprep.subr.bf16.mxu0 %v4082
        %5799 = vmatpush1.bf16.xpose.msra.mxu0 %v4081
        %5800 = vmatprep.subr.bf16.mxu0 %v4088
        %5801 = vmatpush1.bf16.xpose.msra.mxu0 %v4087
        %5802 = vmatprep.subr.bf16.mxu0 %v4094
        %5803 = vmatpush1.bf16.xpose.msra.mxu0 %v4093
        %5804 = vmatprep.subr.bf16.mxu0 %v4100
        %5805 = vmatpush1.bf16.xpose.msra.mxu0 %v4099
        %5806 = vmatprep.subr.bf16.mxu0 %v4106
        %5807 = vmatpush1.bf16.xpose.msra.mxu0 %v4105
        %5808 = vmatprep.subr.bf16.mxu0 %v4112
        %5809 = vmatpush1.bf16.xpose.msra.mxu0 %v4111
        %5810 = vmatprep.subr.bf16.mxu0 %v4118
        %5811 = vmatpush1.bf16.xpose.msra.mxu0 %v4117
        %5812 = vmatprep.subr.bf16.mxu0 %v4124
        %5813 = vmatpush1.bf16.xpose.msra.mxu0 %v4123
        %5814 = vmatprep.mubr.bf16.mxu0 %v392
        %5815 = vmatmul.mubr.bf16.gmra.mrb[0].mxu0 %v391
        %v5816 = vpop.f32.mrb[0].mxu0
        %v5817 = vadd.f32 %v5776, %v5816
        %v5818 = vpop.f32.mrb[0].mxu0
        %v5819 = vadd.f32 %v5778, %v5818
        %v5820 = vpop.f32.mrb[0].mxu0
        %v5821 = vpop.f32.mrb[0].mxu0
        %5822 = vdwg.mxu0
        %5823 = vmatprep.subr.bf16.mxu0 %v4126
        %5824 = vmatpush1.bf16.xpose.msra.mxu0 %v4125
        %5825 = vmatprep.subr.bf16.mxu0 %v4132
        %5826 = vmatpush1.bf16.xpose.msra.mxu0 %v4131
        %5827 = vmatprep.subr.bf16.mxu0 %v4138
        %5828 = vmatpush1.bf16.xpose.msra.mxu0 %v4137
        %5829 = vmatprep.subr.bf16.mxu0 %v4144
        %5830 = vmatpush1.bf16.xpose.msra.mxu0 %v4143
        %5831 = vmatprep.subr.bf16.mxu0 %v4150
        %5832 = vmatpush1.bf16.xpose.msra.mxu0 %v4149
        %5833 = vmatprep.subr.bf16.mxu0 %v4156
        %5834 = vmatpush1.bf16.xpose.msra.mxu0 %v4155
        %5835 = vmatprep.subr.bf16.mxu0 %v4162
        %5836 = vmatpush1.bf16.xpose.msra.mxu0 %v4161
        %5837 = vmatprep.subr.bf16.mxu0 %v4168
        %5838 = vmatpush1.bf16.xpose.msra.mxu0 %v4167
        %5839 = vmatprep.subr.bf16.mxu0 %v4174
        %5840 = vmatpush1.bf16.xpose.msra.mxu0 %v4173
        %5841 = vmatprep.subr.bf16.mxu0 %v4180
        %5842 = vmatpush1.bf16.xpose.msra.mxu0 %v4179
        %5843 = vmatprep.subr.bf16.mxu0 %v4186
        %5844 = vmatpush1.bf16.xpose.msra.mxu0 %v4185
        %5845 = vmatprep.subr.bf16.mxu0 %v4192
        %5846 = vmatpush1.bf16.xpose.msra.mxu0 %v4191
        %5847 = vmatprep.subr.bf16.mxu0 %v4198
        %5848 = vmatpush1.bf16.xpose.msra.mxu0 %v4197
        %5849 = vmatprep.subr.bf16.mxu0 %v4204
        %5850 = vmatpush1.bf16.xpose.msra.mxu0 %v4203
        %5851 = vmatprep.subr.bf16.mxu0 %v4210
        %5852 = vmatpush1.bf16.xpose.msra.mxu0 %v4209
        %5853 = vmatprep.subr.bf16.mxu0 %v4216
        %5854 = vmatpush1.bf16.xpose.msra.mxu0 %v4215
        %5855 = vmatprep.mubr.bf16.mxu0 %v388
        %5856 = vmatmul.mubr.bf16.gmra.mrb[0].mxu0 %v387
        %v5857 = vpop.f32.mrb[0].mxu0
        %v5858 = vadd.f32 %v1216, %v5857
        %v5859 = vpop.f32.mrb[0].mxu0
        %v5860 = vadd.f32 %v1220, %v5859
        %v5861 = vpop.f32.mrb[0].mxu0
        %v5862 = vpop.f32.mrb[0].mxu0
        %5863 = vdwg.mxu0
        %5864 = vmatprep.subr.bf16.mxu0 %v4128
        %5865 = vmatpush1.bf16.xpose.msra.mxu0 %v4127
        %5866 = vmatprep.subr.bf16.mxu0 %v4134
        %5867 = vmatpush1.bf16.xpose.msra.mxu0 %v4133
        %5868 = vmatprep.subr.bf16.mxu0 %v4140
        %5869 = vmatpush1.bf16.xpose.msra.mxu0 %v4139
        %5870 = vmatprep.subr.bf16.mxu0 %v4146
        %5871 = vmatpush1.bf16.xpose.msra.mxu0 %v4145
        %5872 = vmatprep.subr.bf16.mxu0 %v4152
        %5873 = vmatpush1.bf16.xpose.msra.mxu0 %v4151
        %5874 = vmatprep.subr.bf16.mxu0 %v4158
        %5875 = vmatpush1.bf16.xpose.msra.mxu0 %v4157
        %5876 = vmatprep.subr.bf16.mxu0 %v4164
        %5877 = vmatpush1.bf16.xpose.msra.mxu0 %v4163
        %5878 = vmatprep.subr.bf16.mxu0 %v4170
        %5879 = vmatpush1.bf16.xpose.msra.mxu0 %v4169
        %5880 = vmatprep.subr.bf16.mxu0 %v4176
        %5881 = vmatpush1.bf16.xpose.msra.mxu0 %v4175
        %5882 = vmatprep.subr.bf16.mxu0 %v4182
        %5883 = vmatpush1.bf16.xpose.msra.mxu0 %v4181
        %5884 = vmatprep.subr.bf16.mxu0 %v4188
        %5885 = vmatpush1.bf16.xpose.msra.mxu0 %v4187
        %5886 = vmatprep.subr.bf16.mxu0 %v4194
        %5887 = vmatpush1.bf16.xpose.msra.mxu0 %v4193
        %5888 = vmatprep.subr.bf16.mxu0 %v4200
        %5889 = vmatpush1.bf16.xpose.msra.mxu0 %v4199
        %5890 = vmatprep.subr.bf16.mxu0 %v4206
        %5891 = vmatpush1.bf16.xpose.msra.mxu0 %v4205
        %5892 = vmatprep.subr.bf16.mxu0 %v4212
        %5893 = vmatpush1.bf16.xpose.msra.mxu0 %v4211
        %5894 = vmatprep.subr.bf16.mxu0 %v4218
        %5895 = vmatpush1.bf16.xpose.msra.mxu0 %v4217
        %5896 = vmatprep.mubr.bf16.mxu0 %v390
        %5897 = vmatmul.mubr.bf16.gmra.mrb[0].mxu0 %v389
        %v5898 = vpop.f32.mrb[0].mxu0
        %v5899 = vadd.f32 %v5858, %v5898
        %v5900 = vpop.f32.mrb[0].mxu0
        %v5901 = vadd.f32 %v5860, %v5900
        %v5902 = vpop.f32.mrb[0].mxu0
        %v5903 = vpop.f32.mrb[0].mxu0
        %5904 = vdwg.mxu0
        %5905 = vmatprep.subr.bf16.mxu0 %v4130
        %5906 = vmatpush1.bf16.xpose.msra.mxu0 %v4129
        %5907 = vmatprep.subr.bf16.mxu0 %v4136
        %5908 = vmatpush1.bf16.xpose.msra.mxu0 %v4135
        %5909 = vmatprep.subr.bf16.mxu0 %v4142
        %5910 = vmatpush1.bf16.xpose.msra.mxu0 %v4141
        %5911 = vmatprep.subr.bf16.mxu0 %v4148
        %5912 = vmatpush1.bf16.xpose.msra.mxu0 %v4147
        %5913 = vmatprep.subr.bf16.mxu0 %v4154
        %5914 = vmatpush1.bf16.xpose.msra.mxu0 %v4153
        %5915 = vmatprep.subr.bf16.mxu0 %v4160
        %5916 = vmatpush1.bf16.xpose.msra.mxu0 %v4159
        %5917 = vmatprep.subr.bf16.mxu0 %v4166
        %5918 = vmatpush1.bf16.xpose.msra.mxu0 %v4165
        %5919 = vmatprep.subr.bf16.mxu0 %v4172
        %5920 = vmatpush1.bf16.xpose.msra.mxu0 %v4171
        %5921 = vmatprep.subr.bf16.mxu0 %v4178
        %5922 = vmatpush1.bf16.xpose.msra.mxu0 %v4177
        %5923 = vmatprep.subr.bf16.mxu0 %v4184
        %5924 = vmatpush1.bf16.xpose.msra.mxu0 %v4183
        %5925 = vmatprep.subr.bf16.mxu0 %v4190
        %5926 = vmatpush1.bf16.xpose.msra.mxu0 %v4189
        %5927 = vmatprep.subr.bf16.mxu0 %v4196
        %5928 = vmatpush1.bf16.xpose.msra.mxu0 %v4195
        %5929 = vmatprep.subr.bf16.mxu0 %v4202
        %5930 = vmatpush1.bf16.xpose.msra.mxu0 %v4201
        %5931 = vmatprep.subr.bf16.mxu0 %v4208
        %5932 = vmatpush1.bf16.xpose.msra.mxu0 %v4207
        %5933 = vmatprep.subr.bf16.mxu0 %v4214
        %5934 = vmatpush1.bf16.xpose.msra.mxu0 %v4213
        %5935 = vmatprep.subr.bf16.mxu0 %v4220
        %5936 = vmatpush1.bf16.xpose.msra.mxu0 %v4219
        %5937 = vmatprep.mubr.bf16.mxu0 %v392
        %5938 = vmatmul.mubr.bf16.gmra.mrb[0].mxu0 %v391
        %v5939 = vpop.f32.mrb[0].mxu0
        %v5940 = vadd.f32 %v5899, %v5939
        %v5941 = vpop.f32.mrb[0].mxu0
        %v5942 = vadd.f32 %v5901, %v5941
        %v5943 = vpop.f32.mrb[0].mxu0
        %v5944 = vpop.f32.mrb[0].mxu0
        %5945 = vdwg.mxu0
        %5946 = vmatprep.subr.bf16.mxu0 %v4222
        %5947 = vmatpush1.bf16.xpose.msra.mxu0 %v4221
        %5948 = vmatprep.subr.bf16.mxu0 %v4228
        %5949 = vmatpush1.bf16.xpose.msra.mxu0 %v4227
        %5950 = vmatprep.subr.bf16.mxu0 %v4234
        %5951 = vmatpush1.bf16.xpose.msra.mxu0 %v4233
        %5952 = vmatprep.subr.bf16.mxu0 %v4240
        %5953 = vmatpush1.bf16.xpose.msra.mxu0 %v4239
        %5954 = vmatprep.subr.bf16.mxu0 %v4246
        %5955 = vmatpush1.bf16.xpose.msra.mxu0 %v4245
        %5956 = vmatprep.subr.bf16.mxu0 %v4252
        %5957 = vmatpush1.bf16.xpose.msra.mxu0 %v4251
        %5958 = vmatprep.subr.bf16.mxu0 %v4258
        %5959 = vmatpush1.bf16.xpose.msra.mxu0 %v4257
        %5960 = vmatprep.subr.bf16.mxu0 %v4264
        %5961 = vmatpush1.bf16.xpose.msra.mxu0 %v4263
        %5962 = vmatprep.subr.bf16.mxu0 %v4270
        %5963 = vmatpush1.bf16.xpose.msra.mxu0 %v4269
        %5964 = vmatprep.subr.bf16.mxu0 %v4276
        %5965 = vmatpush1.bf16.xpose.msra.mxu0 %v4275
        %5966 = vmatprep.subr.bf16.mxu0 %v4282
        %5967 = vmatpush1.bf16.xpose.msra.mxu0 %v4281
        %5968 = vmatprep.subr.bf16.mxu0 %v4288
        %5969 = vmatpush1.bf16.xpose.msra.mxu0 %v4287
        %5970 = vmatprep.subr.bf16.mxu0 %v4294
        %5971 = vmatpush1.bf16.xpose.msra.mxu0 %v4293
        %5972 = vmatprep.subr.bf16.mxu0 %v4300
        %5973 = vmatpush1.bf16.xpose.msra.mxu0 %v4299
        %5974 = vmatprep.subr.bf16.mxu0 %v4306
        %5975 = vmatpush1.bf16.xpose.msra.mxu0 %v4305
        %5976 = vmatprep.subr.bf16.mxu0 %v4312
        %5977 = vmatpush1.bf16.xpose.msra.mxu0 %v4311
        %5978 = vmatprep.mubr.bf16.mxu0 %v388
        %5979 = vmatmul.mubr.bf16.gmra.mrb[0].mxu0 %v387
        %v5980 = vpop.f32.mrb[0].mxu0
        %v5981 = vadd.f32 %v1224, %v5980
        %v5982 = vpop.f32.mrb[0].mxu0
        %v5983 = vadd.f32 %v1228, %v5982
        %v5984 = vpop.f32.mrb[0].mxu0
        %v5985 = vpop.f32.mrb[0].mxu0
        %5986 = vdwg.mxu0
        %5987 = vmatprep.subr.bf16.mxu0 %v4224
        %5988 = vmatpush1.bf16.xpose.msra.mxu0 %v4223
        %5989 = vmatprep.subr.bf16.mxu0 %v4230
        %5990 = vmatpush1.bf16.xpose.msra.mxu0 %v4229
        %5991 = vmatprep.subr.bf16.mxu0 %v4236
        %5992 = vmatpush1.bf16.xpose.msra.mxu0 %v4235
        %5993 = vmatprep.subr.bf16.mxu0 %v4242
        %5994 = vmatpush1.bf16.xpose.msra.mxu0 %v4241
        %5995 = vmatprep.subr.bf16.mxu0 %v4248
        %5996 = vmatpush1.bf16.xpose.msra.mxu0 %v4247
        %5997 = vmatprep.subr.bf16.mxu0 %v4254
        %5998 = vmatpush1.bf16.xpose.msra.mxu0 %v4253
        %5999 = vmatprep.subr.bf16.mxu0 %v4260
        %6000 = vmatpush1.bf16.xpose.msra.mxu0 %v4259
        %6001 = vmatprep.subr.bf16.mxu0 %v4266
        %6002 = vmatpush1.bf16.xpose.msra.mxu0 %v4265
        %6003 = vmatprep.subr.bf16.mxu0 %v4272
        %6004 = vmatpush1.bf16.xpose.msra.mxu0 %v4271
        %6005 = vmatprep.subr.bf16.mxu0 %v4278
        %6006 = vmatpush1.bf16.xpose.msra.mxu0 %v4277
        %6007 = vmatprep.subr.bf16.mxu0 %v4284
        %6008 = vmatpush1.bf16.xpose.msra.mxu0 %v4283
        %6009 = vmatprep.subr.bf16.mxu0 %v4290
        %6010 = vmatpush1.bf16.xpose.msra.mxu0 %v4289
        %6011 = vmatprep.subr.bf16.mxu0 %v4296
        %6012 = vmatpush1.bf16.xpose.msra.mxu0 %v4295
        %6013 = vmatprep.subr.bf16.mxu0 %v4302
        %6014 = vmatpush1.bf16.xpose.msra.mxu0 %v4301
        %6015 = vmatprep.subr.bf16.mxu0 %v4308
        %6016 = vmatpush1.bf16.xpose.msra.mxu0 %v4307
        %6017 = vmatprep.subr.bf16.mxu0 %v4314
        %6018 = vmatpush1.bf16.xpose.msra.mxu0 %v4313
        %6019 = vmatprep.mubr.bf16.mxu0 %v390
        %6020 = vmatmul.mubr.bf16.gmra.mrb[0].mxu0 %v389
        %v6021 = vpop.f32.mrb[0].mxu0
        %v6022 = vadd.f32 %v5981, %v6021
        %v6023 = vpop.f32.mrb[0].mxu0
        %v6024 = vadd.f32 %v5983, %v6023
        %v6025 = vpop.f32.mrb[0].mxu0
        %v6026 = vpop.f32.mrb[0].mxu0
        %6027 = vdwg.mxu0
        %6028 = vmatprep.subr.bf16.mxu0 %v4226
        %6029 = vmatpush1.bf16.xpose.msra.mxu0 %v4225
        %6030 = vmatprep.subr.bf16.mxu0 %v4232
        %6031 = vmatpush1.bf16.xpose.msra.mxu0 %v4231
        %6032 = vmatprep.subr.bf16.mxu0 %v4238
        %6033 = vmatpush1.bf16.xpose.msra.mxu0 %v4237
        %6034 = vmatprep.subr.bf16.mxu0 %v4244
        %6035 = vmatpush1.bf16.xpose.msra.mxu0 %v4243
        %6036 = vmatprep.subr.bf16.mxu0 %v4250
        %6037 = vmatpush1.bf16.xpose.msra.mxu0 %v4249
        %6038 = vmatprep.subr.bf16.mxu0 %v4256
        %6039 = vmatpush1.bf16.xpose.msra.mxu0 %v4255
        %6040 = vmatprep.subr.bf16.mxu0 %v4262
        %6041 = vmatpush1.bf16.xpose.msra.mxu0 %v4261
        %6042 = vmatprep.subr.bf16.mxu0 %v4268
        %6043 = vmatpush1.bf16.xpose.msra.mxu0 %v4267
        %6044 = vmatprep.subr.bf16.mxu0 %v4274
        %6045 = vmatpush1.bf16.xpose.msra.mxu0 %v4273
        %6046 = vmatprep.subr.bf16.mxu0 %v4280
        %6047 = vmatpush1.bf16.xpose.msra.mxu0 %v4279
        %6048 = vmatprep.subr.bf16.mxu0 %v4286
        %6049 = vmatpush1.bf16.xpose.msra.mxu0 %v4285
        %6050 = vmatprep.subr.bf16.mxu0 %v4292
        %6051 = vmatpush1.bf16.xpose.msra.mxu0 %v4291
        %6052 = vmatprep.subr.bf16.mxu0 %v4298
        %6053 = vmatpush1.bf16.xpose.msra.mxu0 %v4297
        %6054 = vmatprep.subr.bf16.mxu0 %v4304
        %6055 = vmatpush1.bf16.xpose.msra.mxu0 %v4303
        %6056 = vmatprep.subr.bf16.mxu0 %v4310
        %6057 = vmatpush1.bf16.xpose.msra.mxu0 %v4309
        %6058 = vmatprep.subr.bf16.mxu0 %v4316
        %6059 = vmatpush1.bf16.xpose.msra.mxu0 %v4315
        %6060 = vmatprep.mubr.bf16.mxu0 %v392
        %6061 = vmatmul.mubr.bf16.gmra.mrb[0].mxu0 %v391
        %v6062 = vpop.f32.mrb[0].mxu0
        %v6063 = vadd.f32 %v6022, %v6062
        %v6064 = vpop.f32.mrb[0].mxu0
        %v6065 = vadd.f32 %v6024, %v6064
        %v6066 = vpop.f32.mrb[0].mxu0
        %v6067 = vpop.f32.mrb[0].mxu0
        %6068 = vdwg.mxu0
        %vm6069 = vcmp.ge.f32.partialorder %v5202, 0.0
        %vm6070 = vcmp.ge.f32.partialorder %v5204, 0.0
        %vm6071 = vcmp.ge.f32.partialorder %v5325, 0.0
        %vm6072 = vcmp.ge.f32.partialorder %v5327, 0.0
        %vm6073 = vcmp.ge.f32.partialorder %v5448, 0.0
        %vm6074 = vcmp.ge.f32.partialorder %v5450, 0.0
        %vm6075 = vcmp.ge.f32.partialorder %v5571, 0.0
        %vm6076 = vcmp.ge.f32.partialorder %v5573, 0.0
        %vm6077 = vcmp.ge.f32.partialorder %v5694, 0.0
        %vm6078 = vcmp.ge.f32.partialorder %v5696, 0.0
        %vm6079 = vcmp.ge.f32.partialorder %v5817, 0.0
        %vm6080 = vcmp.ge.f32.partialorder %v5819, 0.0
        %vm6081 = vcmp.ge.f32.partialorder %v5940, 0.0
        %vm6082 = vcmp.ge.f32.partialorder %v5942, 0.0
        %vm6083 = vcmp.ge.f32.partialorder %v6063, 0.0
        %vm6084 = vcmp.ge.f32.partialorder %v6065, 0.0
        %v6085 = vmul.f32 %v5202, 0.01
        %v6086 = vmul.f32 %v5204, 0.01
        %v6087 = vmul.f32 %v5325, 0.01
        %v6088 = vmul.f32 %v5327, 0.01
        %v6089 = vmul.f32 %v5448, 0.01
        %v6090 = vmul.f32 %v5450, 0.01
        %v6091 = vmul.f32 %v5571, 0.01
        %v6092 = vmul.f32 %v5573, 0.01
        %v6093 = vmul.f32 %v5694, 0.01
        %v6094 = vmul.f32 %v5696, 0.01
        %v6095 = vmul.f32 %v5817, 0.01
        %v6096 = vmul.f32 %v5819, 0.01
        %v6097 = vmul.f32 %v5940, 0.01
        %v6098 = vmul.f32 %v5942, 0.01
        %v6099 = vmul.f32 %v6063, 0.01
        %v6100 = vmul.f32 %v6065, 0.01
        %v6101 = vsel %vm6069, %v5202, %v6085
        %v6102 = vsel %vm6070, %v5204, %v6086
        %v6103 = vsel %vm6071, %v5325, %v6087
        %v6104 = vsel %vm6072, %v5327, %v6088
        %v6105 = vsel %vm6073, %v5448, %v6089
        %v6106 = vsel %vm6074, %v5450, %v6090
        %v6107 = vsel %vm6075, %v5571, %v6091
        %v6108 = vsel %vm6076, %v5573, %v6092
        %v6109 = vsel %vm6077, %v5694, %v6093
        %v6110 = vsel %vm6078, %v5696, %v6094
        %v6111 = vsel %vm6079, %v5817, %v6095
        %v6112 = vsel %vm6080, %v5819, %v6096
        %v6113 = vsel %vm6081, %v5940, %v6097
        %v6114 = vsel %vm6082, %v5942, %v6098
        %v6115 = vsel %vm6083, %v6063, %v6099
        %v6116 = vsel %vm6084, %v6065, %v6100
        %v6117 = vld [vmem:[%s318] sm:$0xff]
        %v6118 = vld [vmem:[%s318 + $0x8] sm:$0xff]
        %v6121 = vlaneseq
        %v6122 = vshrl.u32 %v6121, 7
        %v6123 = vsub.s32 0, %v6122
        %v6124 = vrot.slane %v6117, %v6123
        %v6125 = vlaneseq
        %v6126 = vshrl.u32 %v6125, 7
        %v6127 = vsub.s32 1, %v6126
        %v6128 = vrot.slane %v6117, %v6127
        %v6129 = vlaneseq
        %v6130 = vshrl.u32 %v6129, 7
        %v6131 = vsub.s32 2, %v6130
        %v6132 = vrot.slane %v6117, %v6131
        %v6133 = vlaneseq
        %v6134 = vshrl.u32 %v6133, 7
        %v6135 = vsub.s32 3, %v6134
        %v6136 = vrot.slane %v6117, %v6135
        %v6137 = vlaneseq
        %v6138 = vshrl.u32 %v6137, 7
        %v6139 = vsub.s32 4, %v6138
        %v6140 = vrot.slane %v6117, %v6139
        %v6141 = vlaneseq
        %v6142 = vshrl.u32 %v6141, 7
        %v6143 = vsub.s32 5, %v6142
        %v6144 = vrot.slane %v6117, %v6143
        %v6145 = vlaneseq
        %v6146 = vshrl.u32 %v6145, 7
        %v6147 = vsub.s32 6, %v6146
        %v6148 = vrot.slane %v6117, %v6147
        %v6149 = vlaneseq
        %v6150 = vshrl.u32 %v6149, 7
        %v6151 = vsub.s32 7, %v6150
        %v6152 = vrot.slane %v6117, %v6151
        %v6153 = vlaneseq
        %v6154 = vshrl.u32 %v6153, 7
        %v6155 = vsub.s32 0, %v6154
        %v6156 = vrot.slane %v6118, %v6155
        %v6157 = vlaneseq
        %v6158 = vshrl.u32 %v6157, 7
        %v6159 = vsub.s32 1, %v6158
        %v6160 = vrot.slane %v6118, %v6159
        %v6161 = vlaneseq
        %v6162 = vshrl.u32 %v6161, 7
        %v6163 = vsub.s32 2, %v6162
        %v6164 = vrot.slane %v6118, %v6163
        %v6165 = vlaneseq
        %v6166 = vshrl.u32 %v6165, 7
        %v6167 = vsub.s32 3, %v6166
        %v6168 = vrot.slane %v6118, %v6167
        %v6169 = vlaneseq
        %v6170 = vshrl.u32 %v6169, 7
        %v6171 = vsub.s32 4, %v6170
        %v6172 = vrot.slane %v6118, %v6171
        %v6173 = vlaneseq
        %v6174 = vshrl.u32 %v6173, 7
        %v6175 = vsub.s32 5, %v6174
        %v6176 = vrot.slane %v6118, %v6175
        %v6177 = vlaneseq
        %v6178 = vshrl.u32 %v6177, 7
        %v6179 = vsub.s32 6, %v6178
        %v6180 = vrot.slane %v6118, %v6179
        %v6181 = vlaneseq
        %v6182 = vshrl.u32 %v6181, 7
        %v6183 = vsub.s32 7, %v6182
        %v6184 = vrot.slane %v6118, %v6183
        %v6201 = vmul.f32 %v6101, %v6124
        %v6202 = vmul.f32 %v6102, %v6128
        %v6203 = vmul.f32 %v6103, %v6132
        %v6204 = vmul.f32 %v6104, %v6136
        %v6205 = vmul.f32 %v6105, %v6140
        %v6206 = vmul.f32 %v6106, %v6144
        %v6207 = vmul.f32 %v6107, %v6148
        %v6208 = vmul.f32 %v6108, %v6152
        %v6209 = vmul.f32 %v6109, %v6156
        %v6210 = vmul.f32 %v6110, %v6160
        %v6211 = vmul.f32 %v6111, %v6164
        %v6212 = vmul.f32 %v6112, %v6168
        %v6213 = vmul.f32 %v6113, %v6172
        %v6214 = vmul.f32 %v6114, %v6176
        %v6215 = vmul.f32 %v6115, %v6180
        %v6216 = vmul.f32 %v6116, %v6184
        %v6217 = vadd.f32 %v6201, %v6202
        %v6218 = vadd.f32 %v6217, %v6203
        %v6219 = vadd.f32 %v6218, %v6204
        %v6220 = vadd.f32 %v6219, %v6205
        %v6221 = vadd.f32 %v6220, %v6206
        %v6222 = vadd.f32 %v6221, %v6207
        %v6223 = vadd.f32 %v6222, %v6208
        %v6224 = vadd.f32 %v6223, %v6209
        %v6225 = vadd.f32 %v6224, %v6210
        %v6226 = vadd.f32 %v6225, %v6211
        %v6227 = vadd.f32 %v6226, %v6212
        %v6228 = vadd.f32 %v6227, %v6213
        %v6229 = vadd.f32 %v6228, %v6214
        %v6230 = vadd.f32 %v6229, %v6215
        %v6231 = vadd.f32 %v6230, %v6216
        %v6232 = vld [vmem:[#allocation2] sm:$0xff]
        %v6233 = vadd.f32 %v6232, %v6231
        %6234 = vst [vmem:[#allocation2] sm:$0xff] %v6233
        // Predicated region
        $region65: #{mse_align_sts_loss.1} parent=39 // pred_check
          %p6235 = pneg %p364
        $region66: #{mse_align_sts_loss.1} parent=39 // pred_check_branch
          %6237 = sbr.rel (%p6235) target = $region68
        $region67: #{mse_align_sts_loss.1} parent=39 // pred_region
          %v6238 = vld [vmem:[#allocation2] sm:$0xff]
          %6239 = vst [vmem:[%s363] sm:$0xff] %v6238
        $region68: #{mse_align_sts_loss.1} parent=39 // pred_fallthru
          _
        %p6240 = scmp.lt.s32.totalorder %s22, 1
        %s6241 = scalar_select %p6240, %s22, 1
        %s6242 = smul.addr %s6241, 8
        %s6243 = scalar_lea.vmem %s5, %s6242
        // Predicated region
        $region69: #{mse_align_sts_loss.1} parent=39 // pred_check
          %p6244 = pneg %p174
        $region70: #{mse_align_sts_loss.1} parent=39 // pred_check_branch
          %6246 = sbr.rel (%p6244) target = $region72
        $region71: #{mse_align_sts_loss.1} parent=39 // pred_region
          _
        $region72: #{mse_align_sts_loss.1} parent=39 // pred_fallthru
          _
      $region40: #{mse_align_sts_loss.1} parent=5 // pred_fallthru
        _
      %p6247 = scmp.le.s32.totalorder 2, %s13
      // Predicated region
      $region73: #{mse_align_sts_loss.1} parent=5 // pred_check
        %p6248 = pneg %p6247
      $region74: #{mse_align_sts_loss.1} parent=5 // pred_check_branch
        %6250 = sbr.rel (%p6248) target = $region76
      $region75: #{mse_align_sts_loss.1} parent=5 // pred_region
        %s6251 = ssub.s32 %s13, 2
        // Predicated region
        $region77: #{mse_align_sts_loss.1} parent=75 // pred_check
          %p6252 = pneg %p180
        $region78: #{mse_align_sts_loss.1} parent=75 // pred_check_branch
          %6254 = sbr.rel (%p6252) target = $region80
        $region79: #{mse_align_sts_loss.1} parent=75 // pred_region
          %p6255 = scmp.lt.s32.totalorder %s24, 1
          %s6256 = scalar_select %p6255, %s24, 1
          %s6257 = smul.addr %s6256, 8
          %s6258 = scalar_lea.vmem %s5, %s6257
        $region80: #{mse_align_sts_loss.1} parent=75 // pred_fallthru
          _
      $region76: #{mse_align_sts_loss.1} parent=5 // pred_fallthru
        _
    $region6: #{mse_align_sts_loss.1} parent=1 // loop_footer
      %s17 = sadd.s32 1, %s13
    $region7: #{mse_align_sts_loss.1} parent=1 // loop_footer_branch
      %12 = sbr.rel target = $region3
    $region8: #{mse_align_sts_loss.1} parent=1 // loop_exit
      _
    %6259 = vsyncpa [#allocation4], 1
    %s6260 = scalar_lea.sflag [#allocation4], 1
    %6261 = vsyncpa %s6260, 1
    %6262 = vsyncpa [#allocation6], 1

</llo_original>
